<compile_context>
chip_gen: v7x
topology: tpu7x:2x2x1
jax: 0.10.0
libtpu: 0.0.40
codegen_flags: <defaults>
</compile_context>

<pallas_src>
import itertools

import numpy as np
import jax
import jax.numpy as jnp
from jax import lax
from jax.experimental import pallas as pl
from jax.experimental.pallas import tpu as pltpu


_BT = 8          # samples per grid step
_C1 = 20         # conv1 / conv2 output channels
_PQ = 64         # 8x8 max-pooled conv1 map
_K1 = 50         # conv1 im2col features (2 * 5 * 5)
_FEAT = _C1 * _PQ   # 1280 = conv2 contraction length
_H2 = 320        # conv2 flattened output features (20 * 4 * 4)


# ----------------------------------------------------------------------------
# Fused loc-net Pallas kernel (BT samples per grid step)
# ----------------------------------------------------------------------------
def _locnet_kernel(p_ref, w1_ref, b1_ref, w2_ref, b2_ref, w3_ref, b3_ref,
                   w4_ref, b4_ref, o_ref, hf_ref):
    bt = hf_ref.shape[0]
    s = bt * _PQ                                     # lanes per pooling phase

    # conv1 evaluated per pooling phase (lane layout: phase*(BT*64)+b*64+pq);
    # running max == 2x2/2 max-pool.  Bias + ReLU commute with the max, so
    # they are applied once on the pooled result.
    hp = None
    for ph in range(4):
        yp = jnp.dot(w1_ref[...], p_ref[:, ph * s:(ph + 1) * s],
                     preferred_element_type=jnp.float32)        # [20, BT*64]
        hp = yp if hp is None else jnp.maximum(hp, yp)
    hp = jnp.maximum(hp + b1_ref[...], 0.0)                     # [20, BT*64]

    # Channel-major -> batch-major regroup through VMEM scratch so conv2/fc
    # run with the batch on the M dimension:  hf[b, c*64+pq] = hp[c, b*64+pq].
    for b in range(bt):
        hb = hp[:, b * _PQ:(b + 1) * _PQ]                       # [20, 64]
        for c in range(_C1):
            hf_ref[b:b + 1, c * _PQ:(c + 1) * _PQ] = hb[c:c + 1, :]

    hpf = hf_ref[...]                                           # [BT, 1280]

    # conv2 densified to a single K=1280 matmul, then fc1 -> ReLU -> fc2.
    h2 = jnp.maximum(
        jnp.dot(hpf, w2_ref[...], preferred_element_type=jnp.float32)
        + b2_ref[...], 0.0)                                     # [BT, 320]
    h3 = jnp.maximum(
        jnp.dot(h2, w3_ref[...], preferred_element_type=jnp.float32)
        + b3_ref[...], 0.0)                                     # [BT, 32]
    out = jnp.dot(h3, w4_ref[...], preferred_element_type=jnp.float32) \
        + b4_ref[...]                                           # [BT, nout]
    o_ref[...] = out.astype(o_ref.dtype)


def _forward_impl(x, buffers):
    """x: [B, 2, 40, 40] float32 -> points [B, grid_h*grid_w, 2]."""
    B = x.shape[0]
    nout = buffers["b4"].shape[1]
    B_pad = ((B + _BT - 1) // _BT) * _BT
    nblk = B_pad // _BT
    if B_pad != B:
        x = jnp.pad(x, ((0, B_pad - B), (0, 0), (0, 0), (0, 0)))

    # AvgPool2d(2, stride=2):  [B, 2, 40, 40] -> [B, 2, 20, 20]   (XLA glue)
    xp = 0.25 * (x[:, :, 0::2, 0::2] + x[:, :, 0::2, 1::2]
                 + x[:, :, 1::2, 0::2] + x[:, :, 1::2, 1::2])
    xp = xp.astype(jnp.float32)

    # im2col for conv1 (5x5 valid on the 20x20 map -> 16x16 output), columns
    # ordered per BT-sample block as  phase*(BT*64) + b_local*64 + (p*8+q)
    # with (i, j) = (2p+a, 2q+bb) and phase = 2a+bb  (phase-major so the
    # max-pool is a contiguous 4-way lane max in the kernel -- no spool matmul).
    feats = []
    for cin in range(2):
        for dy in range(5):
            for dx in range(5):
                w = xp[:, cin, dy:dy + 16, dx:dx + 16]       # [Bp, 16, 16]
                w = w.reshape(B_pad, 8, 2, 8, 2)             # b, p, a, q, bb
                w = w.transpose(0, 2, 4, 1, 3)               # b, a, bb, p, q
                w = w.reshape(nblk, _BT, 4, _PQ)             # blk, b, phase, pq
                w = w.transpose(0, 2, 1, 3)                  # blk, phase, b, pq
                feats.append(w.reshape(1, -1))
    patches = jnp.concatenate(feats, axis=0)                 # [50, B_pad*256]

    out = pl.pallas_call(
        _locnet_kernel,
        out_shape=jax.ShapeDtypeStruct((B_pad, nout), jnp.float32),
        grid_spec=pltpu.PrefetchScalarGridSpec(
            num_scalar_prefetch=0,
            grid=(nblk,),
            in_specs=[
                pl.BlockSpec((_K1, _BT * 256), lambda i: (0, i)),      # patches
                pl.BlockSpec(buffers["w1"].shape, lambda i: (0, 0)),   # conv1 W
                pl.BlockSpec(buffers["b1"].shape, lambda i: (0, 0)),   # conv1 b
                pl.BlockSpec(buffers["w2"].shape, lambda i: (0, 0)),   # conv2 dense
                pl.BlockSpec(buffers["b2"].shape, lambda i: (0, 0)),   # conv2 b
                pl.BlockSpec(buffers["w3"].shape, lambda i: (0, 0)),   # fc1 W^T
                pl.BlockSpec(buffers["b3"].shape, lambda i: (0, 0)),   # fc1 b
                pl.BlockSpec(buffers["w4"].shape, lambda i: (0, 0)),   # fc2 W^T
                pl.BlockSpec(buffers["b4"].shape, lambda i: (0, 0)),   # fc2 b
            ],
            out_specs=pl.BlockSpec((_BT, nout), lambda i: (i, 0)),
            scratch_shapes=[pltpu.VMEM((_BT, _FEAT), jnp.float32)],
        ),
        compiler_params=pltpu.CompilerParams(
            dimension_semantics=("parallel",)),
    )(patches, buffers["w1"], buffers["b1"], buffers["w2"], buffers["b2"],
      buffers["w3"], buffers["b3"], buffers["w4"], buffers["b4"])

    return out[:B].reshape(B, -1, 2)


_forward = jax.jit(_forward_impl)


# ----------------------------------------------------------------------------
# Parameter construction / host-side packing
# ----------------------------------------------------------------------------
def make_target_control_points(r1, r2, gh, gw):
    ys = np.arange(-r1, r1 + 1e-5, 2.0 * r1 / (gh - 1))
    xs = np.arange(-r2, r2 + 1e-5, 2.0 * r2 / (gw - 1))
    pts = np.array(list(itertools.product(ys, xs)), dtype=np.float32)   # (Y, X)
    return np.stack([pts[:, 1], pts[:, 0]], axis=1)                     # (X, Y)


def init_locnet_params(key, target_control_points):
    """Mirror of CNN.__init__ + UnBoundedGridLocNet.__init__ (fc2 w=0, b=tcp)."""
    tcp = np.asarray(target_control_points, np.float32)
    num_output = tcp.size
    ks = jax.random.split(key, 6)

    def u(k, shape, fan_in):
        bound = 1.0 / np.sqrt(fan_in)
        return jax.random.uniform(k, shape, jnp.float32, -bound, bound)

    return {
        "conv1_w": u(ks[0], (20, 2, 5, 5), 2 * 25),
        "conv1_b": u(ks[1], (20,), 2 * 25),
        "conv2_w": u(ks[2], (20, 20, 5, 5), 20 * 25),
        "conv2_b": u(ks[3], (20,), 20 * 25),
        "fc1_w": u(ks[4], (32, 320), 320),
        "fc1_b": u(ks[5], (32,), 320),
        "fc2_w": jnp.zeros((num_output, 32), jnp.float32),
        "fc2_b": jnp.asarray(tcp.reshape(-1)),
    }


def pack_params(raw):
    """Precompute kernel-friendly buffers (done once, host-side numpy)."""
    c1w = np.asarray(raw["conv1_w"], np.float32)
    c2w = np.asarray(raw["conv2_w"], np.float32)

    # Densified conv2 as a single [1280, 320] matrix:
    #   w2f[c*64 + (ti+dy)*8 + (tj+dx), o*16 + ti*4 + tj] = conv2_w[o, c, dy, dx]
    w2f = np.zeros((_FEAT, _H2), np.float32)
    rows_c = np.arange(_C1) * _PQ
    cols_o = np.arange(_C1) * 16
    for ti in range(4):
        for tj in range(4):
            for dy in range(5):
                for dx in range(5):
                    rows = rows_c + (ti + dy) * 8 + (tj + dx)
                    cols = cols_o + ti * 4 + tj
                    w2f[np.ix_(rows, cols)] = c2w[:, :, dy, dx].T   # [c, o]

    return {
        "w1": jnp.asarray(c1w.reshape(20, 50)),
        "b1": jnp.asarray(np.asarray(raw["conv1_b"], np.float32).reshape(20, 1)),
        "w2": jnp.asarray(w2f),
        "b2": jnp.asarray(np.repeat(np.asarray(raw["conv2_b"], np.float32), 16)
                          .reshape(1, _H2)),
        "w3": jnp.asarray(np.asarray(raw["fc1_w"], np.float32).T),
        "b3": jnp.asarray(np.asarray(raw["fc1_b"], np.float32).reshape(1, -1)),
        "w4": jnp.asarray(np.asarray(raw["fc2_w"], np.float32).T),
        "b4": jnp.asarray(np.asarray(raw["fc2_b"], np.float32).reshape(1, -1)),
    }


class UnBoundedGridLocNetPallas:
    """Pallas-TPU forward of UnBoundedGridLocNet (CNN loc-net -> [B, N, 2] points)."""

    def __init__(self, grid_height, grid_width, target_control_points, key=None):
        tcp = np.asarray(target_control_points, np.float32)
        assert tcp.shape == (grid_height * grid_width, 2)
        key = jax.random.PRNGKey(0) if key is None else key
        self.raw = init_locnet_params(key, tcp)
        self.buffers = pack_params(self.raw)

    def __call__(self, x):
        return _forward(x, self.buffers)


# ----------------------------------------------------------------------------
# Pure-XLA reference (used only for a parity self-check in __main__)
# ----------------------------------------------------------------------------
@jax.jit
def _reference_forward(x, raw):
    B = x.shape[0]
    h = lax.reduce_window(x, 0.0, lax.add, (1, 1, 2, 2), (1, 1, 2, 2), "VALID") * 0.25
    h = lax.conv_general_dilated(h, raw["conv1_w"], (1, 1), "VALID",
                                 dimension_numbers=("NCHW", "OIHW", "NCHW"),
                                 precision=lax.Precision.HIGHEST)
    h = jnp.maximum(h + raw["conv1_b"][None, :, None, None], 0.0)
    h = lax.reduce_window(h, -jnp.inf, lax.max, (1, 1, 2, 2), (1, 1, 2, 2), "VALID")
    h = lax.conv_general_dilated(h, raw["conv2_w"], (1, 1), "VALID",
                                 dimension_numbers=("NCHW", "OIHW", "NCHW"),
                                 precision=lax.Precision.HIGHEST)
    h = jnp.maximum(h + raw["conv2_b"][None, :, None, None], 0.0)
    h = h.reshape(B, 320)
    h = jnp.maximum(
        jnp.dot(h, raw["fc1_w"].T, precision=lax.Precision.HIGHEST) + raw["fc1_b"], 0.0)
    h = jnp.dot(h, raw["fc2_w"].T, precision=lax.Precision.HIGHEST) + raw["fc2_b"]
    return h.reshape(B, -1, 2)


# ----------------------------------------------------------------------------
if __name__ == "__main__":
    key = jax.random.PRNGKey(0)
    kx, kp, kt = jax.random.split(key, 3)

    # 320 = 20*4*4 after two convs/pools -> input must be [B, 2, 40, 40].
    # B=10 exercises batch padding (to 16) and a 2-step grid (>=2 TC on v7x).
    B = 10
    x = jax.random.uniform(kx, (B, 2, 40, 40), dtype=jnp.float32)
    tcp = make_target_control_points(0.9, 0.9, 4, 4)                 # [16, 2]

    net = UnBoundedGridLocNetPallas(4, 4, tcp, key=kp)

    # Parity self-check vs. pure-XLA reference with a non-zero fc2 weight so the
    # full conv/pool/fc stack (and all the host-side repacking) is exercised.
    raw_t = dict(net.raw)
    raw_t["fc2_w"] = jax.random.uniform(kt, raw_t["fc2_w"].shape, jnp.float32,
                                        -0.2, 0.2)
    got = _forward(x, pack_params(raw_t))
    ref = _reference_forward(x, raw_t)
    err = float(jnp.max(jnp.abs(got - ref)))
    assert err < 1e-3, f"kernel/reference mismatch: max |diff| = {err}"

    # Actual module forward.
    pts = net(x)
    jax.block_until_ready(pts)
    assert pts.shape == (B, 16, 2) and pts.dtype == jnp.float32
    assert bool(jnp.all(jnp.isfinite(pts)))
    # fc2 weight is zeroed at init, so the points equal the target control points.
    assert float(jnp.max(jnp.abs(pts - jnp.asarray(tcp)[None]))) < 1e-5
    print("KERNEL_OK")
</pallas_src>

<mosaic_0001>
module attributes {stable_mosaic.version = 11 : i64} {
  func.func @_locnet_kernel(%arg0: i32, %arg1: memref<50x2048xf32, #tpu.memory_space<vmem>>, %arg2: memref<20x50xf32, #tpu.memory_space<vmem>>, %arg3: memref<20x1xf32, #tpu.memory_space<vmem>>, %arg4: memref<1280x320xf32, #tpu.memory_space<vmem>>, %arg5: memref<1x320xf32, #tpu.memory_space<vmem>>, %arg6: memref<320x32xf32, #tpu.memory_space<vmem>>, %arg7: memref<1x32xf32, #tpu.memory_space<vmem>>, %arg8: memref<32x32xf32, #tpu.memory_space<vmem>>, %arg9: memref<1x32xf32, #tpu.memory_space<vmem>>, %arg10: memref<8x32xf32, #tpu.memory_space<vmem>>, %arg11: memref<8x1280xf32, #tpu.memory_space<vmem>>) attributes {dimension_semantics = [#tpu.dimension_semantics<parallel>], iteration_bounds = array<i64: 2>, scalar_prefetch = 0 : i64, scratch_operands = 1 : i64, tpu.core_type = #tpu.core_type<tc>, window_params = [{transform_indices = @transform_0, window_bounds = array<i64: 50, 2048>}, {pipeline_mode = #tpu.pipeline_mode<synchronous>, transform_indices = @transform_1, window_bounds = array<i64: 20, 50>}, {pipeline_mode = #tpu.pipeline_mode<synchronous>, transform_indices = @transform_2, window_bounds = array<i64: 20, 1>}, {pipeline_mode = #tpu.pipeline_mode<synchronous>, transform_indices = @transform_3, window_bounds = array<i64: 1280, 320>}, {pipeline_mode = #tpu.pipeline_mode<synchronous>, transform_indices = @transform_4, window_bounds = array<i64: 1, 320>}, {pipeline_mode = #tpu.pipeline_mode<synchronous>, transform_indices = @transform_5, window_bounds = array<i64: 320, 32>}, {pipeline_mode = #tpu.pipeline_mode<synchronous>, transform_indices = @transform_6, window_bounds = array<i64: 1, 32>}, {pipeline_mode = #tpu.pipeline_mode<synchronous>, transform_indices = @transform_7, window_bounds = array<i64: 32, 32>}, {pipeline_mode = #tpu.pipeline_mode<synchronous>, transform_indices = @transform_8, window_bounds = array<i64: 1, 32>}, {transform_indices = @transform_9, window_bounds = array<i64: 8, 32>}]} {
    %c0 = arith.constant 0 : index
    %c0_0 = arith.constant 0 : index
    %0 = vector.load %arg2[%c0, %c0_0] : memref<20x50xf32, #tpu.memory_space<vmem>>, vector<20x50xf32>
    %c0_1 = arith.constant 0 : index
    %c0_2 = arith.constant 0 : index
    %1 = vector.load %arg1[%c0_1, %c0_2] : memref<50x2048xf32, #tpu.memory_space<vmem>>, vector<50x512xf32>
    %cst = arith.constant dense<0.000000e+00> : vector<20x512xf32>
    %2 = tpu.matmul %0, %1, %cst {dimension_numbers = #tpu.dot_dimension_numbers<[1], [0], [0], [1], [0, 0, 1, 1], [], []>} : vector<20x50xf32>, vector<50x512xf32>, vector<20x512xf32> -> vector<20x512xf32>
    %c0_3 = arith.constant 0 : index
    %c0_4 = arith.constant 0 : index
    %3 = vector.load %arg2[%c0_3, %c0_4] : memref<20x50xf32, #tpu.memory_space<vmem>>, vector<20x50xf32>
    %c0_5 = arith.constant 0 : index
    %c512 = arith.constant 512 : index
    %4 = vector.load %arg1[%c0_5, %c512] : memref<50x2048xf32, #tpu.memory_space<vmem>>, vector<50x512xf32>
    %cst_6 = arith.constant dense<0.000000e+00> : vector<20x512xf32>
    %5 = tpu.matmul %3, %4, %cst_6 {dimension_numbers = #tpu.dot_dimension_numbers<[1], [0], [0], [1], [0, 0, 1, 1], [], []>} : vector<20x50xf32>, vector<50x512xf32>, vector<20x512xf32> -> vector<20x512xf32>
    %6 = arith.maximumf %2, %5 : vector<20x512xf32>
    %c0_7 = arith.constant 0 : index
    %c0_8 = arith.constant 0 : index
    %7 = vector.load %arg2[%c0_7, %c0_8] : memref<20x50xf32, #tpu.memory_space<vmem>>, vector<20x50xf32>
    %c0_9 = arith.constant 0 : index
    %c1024 = arith.constant 1024 : index
    %8 = vector.load %arg1[%c0_9, %c1024] : memref<50x2048xf32, #tpu.memory_space<vmem>>, vector<50x512xf32>
    %cst_10 = arith.constant dense<0.000000e+00> : vector<20x512xf32>
    %9 = tpu.matmul %7, %8, %cst_10 {dimension_numbers = #tpu.dot_dimension_numbers<[1], [0], [0], [1], [0, 0, 1, 1], [], []>} : vector<20x50xf32>, vector<50x512xf32>, vector<20x512xf32> -> vector<20x512xf32>
    %10 = arith.maximumf %6, %9 : vector<20x512xf32>
    %c0_11 = arith.constant 0 : index
    %c0_12 = arith.constant 0 : index
    %11 = vector.load %arg2[%c0_11, %c0_12] : memref<20x50xf32, #tpu.memory_space<vmem>>, vector<20x50xf32>
    %c0_13 = arith.constant 0 : index
    %c1536 = arith.constant 1536 : index
    %12 = vector.load %arg1[%c0_13, %c1536] : memref<50x2048xf32, #tpu.memory_space<vmem>>, vector<50x512xf32>
    %cst_14 = arith.constant dense<0.000000e+00> : vector<20x512xf32>
    %13 = tpu.matmul %11, %12, %cst_14 {dimension_numbers = #tpu.dot_dimension_numbers<[1], [0], [0], [1], [0, 0, 1, 1], [], []>} : vector<20x50xf32>, vector<50x512xf32>, vector<20x512xf32> -> vector<20x512xf32>
    %14 = arith.maximumf %10, %13 : vector<20x512xf32>
    %c0_15 = arith.constant 0 : index
    %c0_16 = arith.constant 0 : index
    %15 = vector.load %arg3[%c0_15, %c0_16] : memref<20x1xf32, #tpu.memory_space<vmem>>, vector<20x1xf32>
    %16 = vector.broadcast %15 : vector<20x1xf32> to vector<20x512xf32>
    %17 = arith.addf %14, %16 : vector<20x512xf32>
    %cst_17 = arith.constant 0.000000e+00 : f32
    %18 = vector.broadcast %cst_17 : f32 to vector<20x512xf32>
    %19 = arith.maximumf %17, %18 : vector<20x512xf32>
    %20 = vector.extract_strided_slice %19 {offsets = [0, 0], sizes = [20, 64], strides = [1, 1]} : vector<20x512xf32> to vector<20x64xf32>
    %21 = vector.extract_strided_slice %20 {offsets = [0, 0], sizes = [1, 64], strides = [1, 1]} : vector<20x64xf32> to vector<1x64xf32>
    %c0_18 = arith.constant 0 : index
    %c0_19 = arith.constant 0 : index
    %22 = vector.load %arg11[%c0_18, %c0_19] : memref<8x1280xf32, #tpu.memory_space<vmem>>, vector<1x64xf32>
    tpu.vector_store %arg11[%c0_18, %c0_19], %21 {strides = array<i32>} : memref<8x1280xf32, #tpu.memory_space<vmem>>, vector<1x64xf32>,
    %23 = vector.extract_strided_slice %20 {offsets = [1, 0], sizes = [1, 64], strides = [1, 1]} : vector<20x64xf32> to vector<1x64xf32>
    %c0_20 = arith.constant 0 : index
    %c64 = arith.constant 64 : index
    %24 = vector.load %arg11[%c0_20, %c64] : memref<8x1280xf32, #tpu.memory_space<vmem>>, vector<1x64xf32>
    tpu.vector_store %arg11[%c0_20, %c64], %23 {strides = array<i32>} : memref<8x1280xf32, #tpu.memory_space<vmem>>, vector<1x64xf32>,
    %25 = vector.extract_strided_slice %20 {offsets = [2, 0], sizes = [1, 64], strides = [1, 1]} : vector<20x64xf32> to vector<1x64xf32>
    %c0_21 = arith.constant 0 : index
    %c128 = arith.constant 128 : index
    %26 = vector.load %arg11[%c0_21, %c128] : memref<8x1280xf32, #tpu.memory_space<vmem>>, vector<1x64xf32>
    tpu.vector_store %arg11[%c0_21, %c128], %25 {strides = array<i32>} : memref<8x1280xf32, #tpu.memory_space<vmem>>, vector<1x64xf32>,
    %27 = vector.extract_strided_slice %20 {offsets = [3, 0], sizes = [1, 64], strides = [1, 1]} : vector<20x64xf32> to vector<1x64xf32>
    %c0_22 = arith.constant 0 : index
    %c192 = arith.constant 192 : index
    %28 = vector.load %arg11[%c0_22, %c192] : memref<8x1280xf32, #tpu.memory_space<vmem>>, vector<1x64xf32>
    tpu.vector_store %arg11[%c0_22, %c192], %27 {strides = array<i32>} : memref<8x1280xf32, #tpu.memory_space<vmem>>, vector<1x64xf32>,
    %29 = vector.extract_strided_slice %20 {offsets = [4, 0], sizes = [1, 64], strides = [1, 1]} : vector<20x64xf32> to vector<1x64xf32>
    %c0_23 = arith.constant 0 : index
    %c256 = arith.constant 256 : index
    %30 = vector.load %arg11[%c0_23, %c256] : memref<8x1280xf32, #tpu.memory_space<vmem>>, vector<1x64xf32>
    tpu.vector_store %arg11[%c0_23, %c256], %29 {strides = array<i32>} : memref<8x1280xf32, #tpu.memory_space<vmem>>, vector<1x64xf32>,
    %31 = vector.extract_strided_slice %20 {offsets = [5, 0], sizes = [1, 64], strides = [1, 1]} : vector<20x64xf32> to vector<1x64xf32>
    %c0_24 = arith.constant 0 : index
    %c320 = arith.constant 320 : index
    %32 = vector.load %arg11[%c0_24, %c320] : memref<8x1280xf32, #tpu.memory_space<vmem>>, vector<1x64xf32>
    tpu.vector_store %arg11[%c0_24, %c320], %31 {strides = array<i32>} : memref<8x1280xf32, #tpu.memory_space<vmem>>, vector<1x64xf32>,
    %33 = vector.extract_strided_slice %20 {offsets = [6, 0], sizes = [1, 64], strides = [1, 1]} : vector<20x64xf32> to vector<1x64xf32>
    %c0_25 = arith.constant 0 : index
    %c384 = arith.constant 384 : index
    %34 = vector.load %arg11[%c0_25, %c384] : memref<8x1280xf32, #tpu.memory_space<vmem>>, vector<1x64xf32>
    tpu.vector_store %arg11[%c0_25, %c384], %33 {strides = array<i32>} : memref<8x1280xf32, #tpu.memory_space<vmem>>, vector<1x64xf32>,
    %35 = vector.extract_strided_slice %20 {offsets = [7, 0], sizes = [1, 64], strides = [1, 1]} : vector<20x64xf32> to vector<1x64xf32>
    %c0_26 = arith.constant 0 : index
    %c448 = arith.constant 448 : index
    %36 = vector.load %arg11[%c0_26, %c448] : memref<8x1280xf32, #tpu.memory_space<vmem>>, vector<1x64xf32>
    tpu.vector_store %arg11[%c0_26, %c448], %35 {strides = array<i32>} : memref<8x1280xf32, #tpu.memory_space<vmem>>, vector<1x64xf32>,
    %37 = vector.extract_strided_slice %20 {offsets = [8, 0], sizes = [1, 64], strides = [1, 1]} : vector<20x64xf32> to vector<1x64xf32>
    %c0_27 = arith.constant 0 : index
    %c512_28 = arith.constant 512 : index
    %38 = vector.load %arg11[%c0_27, %c512_28] : memref<8x1280xf32, #tpu.memory_space<vmem>>, vector<1x64xf32>
    tpu.vector_store %arg11[%c0_27, %c512_28], %37 {strides = array<i32>} : memref<8x1280xf32, #tpu.memory_space<vmem>>, vector<1x64xf32>,
    %39 = vector.extract_strided_slice %20 {offsets = [9, 0], sizes = [1, 64], strides = [1, 1]} : vector<20x64xf32> to vector<1x64xf32>
    %c0_29 = arith.constant 0 : index
    %c576 = arith.constant 576 : index
    %40 = vector.load %arg11[%c0_29, %c576] : memref<8x1280xf32, #tpu.memory_space<vmem>>, vector<1x64xf32>
    tpu.vector_store %arg11[%c0_29, %c576], %39 {strides = array<i32>} : memref<8x1280xf32, #tpu.memory_space<vmem>>, vector<1x64xf32>,
    %41 = vector.extract_strided_slice %20 {offsets = [10, 0], sizes = [1, 64], strides = [1, 1]} : vector<20x64xf32> to vector<1x64xf32>
    %c0_30 = arith.constant 0 : index
    %c640 = arith.constant 640 : index
    %42 = vector.load %arg11[%c0_30, %c640] : memref<8x1280xf32, #tpu.memory_space<vmem>>, vector<1x64xf32>
    tpu.vector_store %arg11[%c0_30, %c640], %41 {strides = array<i32>} : memref<8x1280xf32, #tpu.memory_space<vmem>>, vector<1x64xf32>,
    %43 = vector.extract_strided_slice %20 {offsets = [11, 0], sizes = [1, 64], strides = [1, 1]} : vector<20x64xf32> to vector<1x64xf32>
    %c0_31 = arith.constant 0 : index
    %c704 = arith.constant 704 : index
    %44 = vector.load %arg11[%c0_31, %c704] : memref<8x1280xf32, #tpu.memory_space<vmem>>, vector<1x64xf32>
    tpu.vector_store %arg11[%c0_31, %c704], %43 {strides = array<i32>} : memref<8x1280xf32, #tpu.memory_space<vmem>>, vector<1x64xf32>,
    %45 = vector.extract_strided_slice %20 {offsets = [12, 0], sizes = [1, 64], strides = [1, 1]} : vector<20x64xf32> to vector<1x64xf32>
    %c0_32 = arith.constant 0 : index
    %c768 = arith.constant 768 : index
    %46 = vector.load %arg11[%c0_32, %c768] : memref<8x1280xf32, #tpu.memory_space<vmem>>, vector<1x64xf32>
    tpu.vector_store %arg11[%c0_32, %c768], %45 {strides = array<i32>} : memref<8x1280xf32, #tpu.memory_space<vmem>>, vector<1x64xf32>,
    %47 = vector.extract_strided_slice %20 {offsets = [13, 0], sizes = [1, 64], strides = [1, 1]} : vector<20x64xf32> to vector<1x64xf32>
    %c0_33 = arith.constant 0 : index
    %c832 = arith.constant 832 : index
    %48 = vector.load %arg11[%c0_33, %c832] : memref<8x1280xf32, #tpu.memory_space<vmem>>, vector<1x64xf32>
    tpu.vector_store %arg11[%c0_33, %c832], %47 {strides = array<i32>} : memref<8x1280xf32, #tpu.memory_space<vmem>>, vector<1x64xf32>,
    %49 = vector.extract_strided_slice %20 {offsets = [14, 0], sizes = [1, 64], strides = [1, 1]} : vector<20x64xf32> to vector<1x64xf32>
    %c0_34 = arith.constant 0 : index
    %c896 = arith.constant 896 : index
    %50 = vector.load %arg11[%c0_34, %c896] : memref<8x1280xf32, #tpu.memory_space<vmem>>, vector<1x64xf32>
    tpu.vector_store %arg11[%c0_34, %c896], %49 {strides = array<i32>} : memref<8x1280xf32, #tpu.memory_space<vmem>>, vector<1x64xf32>,
    %51 = vector.extract_strided_slice %20 {offsets = [15, 0], sizes = [1, 64], strides = [1, 1]} : vector<20x64xf32> to vector<1x64xf32>
    %c0_35 = arith.constant 0 : index
    %c960 = arith.constant 960 : index
    %52 = vector.load %arg11[%c0_35, %c960] : memref<8x1280xf32, #tpu.memory_space<vmem>>, vector<1x64xf32>
    tpu.vector_store %arg11[%c0_35, %c960], %51 {strides = array<i32>} : memref<8x1280xf32, #tpu.memory_space<vmem>>, vector<1x64xf32>,
    %53 = vector.extract_strided_slice %20 {offsets = [16, 0], sizes = [1, 64], strides = [1, 1]} : vector<20x64xf32> to vector<1x64xf32>
    %c0_36 = arith.constant 0 : index
    %c1024_37 = arith.constant 1024 : index
    %54 = vector.load %arg11[%c0_36, %c1024_37] : memref<8x1280xf32, #tpu.memory_space<vmem>>, vector<1x64xf32>
    tpu.vector_store %arg11[%c0_36, %c1024_37], %53 {strides = array<i32>} : memref<8x1280xf32, #tpu.memory_space<vmem>>, vector<1x64xf32>,
    %55 = vector.extract_strided_slice %20 {offsets = [17, 0], sizes = [1, 64], strides = [1, 1]} : vector<20x64xf32> to vector<1x64xf32>
    %c0_38 = arith.constant 0 : index
    %c1088 = arith.constant 1088 : index
    %56 = vector.load %arg11[%c0_38, %c1088] : memref<8x1280xf32, #tpu.memory_space<vmem>>, vector<1x64xf32>
    tpu.vector_store %arg11[%c0_38, %c1088], %55 {strides = array<i32>} : memref<8x1280xf32, #tpu.memory_space<vmem>>, vector<1x64xf32>,
    %57 = vector.extract_strided_slice %20 {offsets = [18, 0], sizes = [1, 64], strides = [1, 1]} : vector<20x64xf32> to vector<1x64xf32>
    %c0_39 = arith.constant 0 : index
    %c1152 = arith.constant 1152 : index
    %58 = vector.load %arg11[%c0_39, %c1152] : memref<8x1280xf32, #tpu.memory_space<vmem>>, vector<1x64xf32>
    tpu.vector_store %arg11[%c0_39, %c1152], %57 {strides = array<i32>} : memref<8x1280xf32, #tpu.memory_space<vmem>>, vector<1x64xf32>,
    %59 = vector.extract_strided_slice %20 {offsets = [19, 0], sizes = [1, 64], strides = [1, 1]} : vector<20x64xf32> to vector<1x64xf32>
    %c0_40 = arith.constant 0 : index
    %c1216 = arith.constant 1216 : index
    %60 = vector.load %arg11[%c0_40, %c1216] : memref<8x1280xf32, #tpu.memory_space<vmem>>, vector<1x64xf32>
    tpu.vector_store %arg11[%c0_40, %c1216], %59 {strides = array<i32>} : memref<8x1280xf32, #tpu.memory_space<vmem>>, vector<1x64xf32>,
    %61 = vector.extract_strided_slice %19 {offsets = [0, 64], sizes = [20, 64], strides = [1, 1]} : vector<20x512xf32> to vector<20x64xf32>
    %62 = vector.extract_strided_slice %61 {offsets = [0, 0], sizes = [1, 64], strides = [1, 1]} : vector<20x64xf32> to vector<1x64xf32>
    %c1 = arith.constant 1 : index
    %c0_41 = arith.constant 0 : index
    %63 = vector.load %arg11[%c1, %c0_41] : memref<8x1280xf32, #tpu.memory_space<vmem>>, vector<1x64xf32>
    tpu.vector_store %arg11[%c1, %c0_41], %62 {strides = array<i32>} : memref<8x1280xf32, #tpu.memory_space<vmem>>, vector<1x64xf32>,
    %64 = vector.extract_strided_slice %61 {offsets = [1, 0], sizes = [1, 64], strides = [1, 1]} : vector<20x64xf32> to vector<1x64xf32>
    %c1_42 = arith.constant 1 : index
    %c64_43 = arith.constant 64 : index
    %65 = vector.load %arg11[%c1_42, %c64_43] : memref<8x1280xf32, #tpu.memory_space<vmem>>, vector<1x64xf32>
    tpu.vector_store %arg11[%c1_42, %c64_43], %64 {strides = array<i32>} : memref<8x1280xf32, #tpu.memory_space<vmem>>, vector<1x64xf32>,
    %66 = vector.extract_strided_slice %61 {offsets = [2, 0], sizes = [1, 64], strides = [1, 1]} : vector<20x64xf32> to vector<1x64xf32>
    %c1_44 = arith.constant 1 : index
    %c128_45 = arith.constant 128 : index
    %67 = vector.load %arg11[%c1_44, %c128_45] : memref<8x1280xf32, #tpu.memory_space<vmem>>, vector<1x64xf32>
    tpu.vector_store %arg11[%c1_44, %c128_45], %66 {strides = array<i32>} : memref<8x1280xf32, #tpu.memory_space<vmem>>, vector<1x64xf32>,
    %68 = vector.extract_strided_slice %61 {offsets = [3, 0], sizes = [1, 64], strides = [1, 1]} : vector<20x64xf32> to vector<1x64xf32>
    %c1_46 = arith.constant 1 : index
    %c192_47 = arith.constant 192 : index
    %69 = vector.load %arg11[%c1_46, %c192_47] : memref<8x1280xf32, #tpu.memory_space<vmem>>, vector<1x64xf32>
    tpu.vector_store %arg11[%c1_46, %c192_47], %68 {strides = array<i32>} : memref<8x1280xf32, #tpu.memory_space<vmem>>, vector<1x64xf32>,
    %70 = vector.extract_strided_slice %61 {offsets = [4, 0], sizes = [1, 64], strides = [1, 1]} : vector<20x64xf32> to vector<1x64xf32>
    %c1_48 = arith.constant 1 : index
    %c256_49 = arith.constant 256 : index
    %71 = vector.load %arg11[%c1_48, %c256_49] : memref<8x1280xf32, #tpu.memory_space<vmem>>, vector<1x64xf32>
    tpu.vector_store %arg11[%c1_48, %c256_49], %70 {strides = array<i32>} : memref<8x1280xf32, #tpu.memory_space<vmem>>, vector<1x64xf32>,
    %72 = vector.extract_strided_slice %61 {offsets = [5, 0], sizes = [1, 64], strides = [1, 1]} : vector<20x64xf32> to vector<1x64xf32>
    %c1_50 = arith.constant 1 : index
    %c320_51 = arith.constant 320 : index
    %73 = vector.load %arg11[%c1_50, %c320_51] : memref<8x1280xf32, #tpu.memory_space<vmem>>, vector<1x64xf32>
    tpu.vector_store %arg11[%c1_50, %c320_51], %72 {strides = array<i32>} : memref<8x1280xf32, #tpu.memory_space<vmem>>, vector<1x64xf32>,
    %74 = vector.extract_strided_slice %61 {offsets = [6, 0], sizes = [1, 64], strides = [1, 1]} : vector<20x64xf32> to vector<1x64xf32>
    %c1_52 = arith.constant 1 : index
    %c384_53 = arith.constant 384 : index
    %75 = vector.load %arg11[%c1_52, %c384_53] : memref<8x1280xf32, #tpu.memory_space<vmem>>, vector<1x64xf32>
    tpu.vector_store %arg11[%c1_52, %c384_53], %74 {strides = array<i32>} : memref<8x1280xf32, #tpu.memory_space<vmem>>, vector<1x64xf32>,
    %76 = vector.extract_strided_slice %61 {offsets = [7, 0], sizes = [1, 64], strides = [1, 1]} : vector<20x64xf32> to vector<1x64xf32>
    %c1_54 = arith.constant 1 : index
    %c448_55 = arith.constant 448 : index
    %77 = vector.load %arg11[%c1_54, %c448_55] : memref<8x1280xf32, #tpu.memory_space<vmem>>, vector<1x64xf32>
    tpu.vector_store %arg11[%c1_54, %c448_55], %76 {strides = array<i32>} : memref<8x1280xf32, #tpu.memory_space<vmem>>, vector<1x64xf32>,
    %78 = vector.extract_strided_slice %61 {offsets = [8, 0], sizes = [1, 64], strides = [1, 1]} : vector<20x64xf32> to vector<1x64xf32>
    %c1_56 = arith.constant 1 : index
    %c512_57 = arith.constant 512 : index
    %79 = vector.load %arg11[%c1_56, %c512_57] : memref<8x1280xf32, #tpu.memory_space<vmem>>, vector<1x64xf32>
    tpu.vector_store %arg11[%c1_56, %c512_57], %78 {strides = array<i32>} : memref<8x1280xf32, #tpu.memory_space<vmem>>, vector<1x64xf32>,
    %80 = vector.extract_strided_slice %61 {offsets = [9, 0], sizes = [1, 64], strides = [1, 1]} : vector<20x64xf32> to vector<1x64xf32>
    %c1_58 = arith.constant 1 : index
    %c576_59 = arith.constant 576 : index
    %81 = vector.load %arg11[%c1_58, %c576_59] : memref<8x1280xf32, #tpu.memory_space<vmem>>, vector<1x64xf32>
    tpu.vector_store %arg11[%c1_58, %c576_59], %80 {strides = array<i32>} : memref<8x1280xf32, #tpu.memory_space<vmem>>, vector<1x64xf32>,
    %82 = vector.extract_strided_slice %61 {offsets = [10, 0], sizes = [1, 64], strides = [1, 1]} : vector<20x64xf32> to vector<1x64xf32>
    %c1_60 = arith.constant 1 : index
    %c640_61 = arith.constant 640 : index
    %83 = vector.load %arg11[%c1_60, %c640_61] : memref<8x1280xf32, #tpu.memory_space<vmem>>, vector<1x64xf32>
    tpu.vector_store %arg11[%c1_60, %c640_61], %82 {strides = array<i32>} : memref<8x1280xf32, #tpu.memory_space<vmem>>, vector<1x64xf32>,
    %84 = vector.extract_strided_slice %61 {offsets = [11, 0], sizes = [1, 64], strides = [1, 1]} : vector<20x64xf32> to vector<1x64xf32>
    %c1_62 = arith.constant 1 : index
    %c704_63 = arith.constant 704 : index
    %85 = vector.load %arg11[%c1_62, %c704_63] : memref<8x1280xf32, #tpu.memory_space<vmem>>, vector<1x64xf32>
    tpu.vector_store %arg11[%c1_62, %c704_63], %84 {strides = array<i32>} : memref<8x1280xf32, #tpu.memory_space<vmem>>, vector<1x64xf32>,
    %86 = vector.extract_strided_slice %61 {offsets = [12, 0], sizes = [1, 64], strides = [1, 1]} : vector<20x64xf32> to vector<1x64xf32>
    %c1_64 = arith.constant 1 : index
    %c768_65 = arith.constant 768 : index
    %87 = vector.load %arg11[%c1_64, %c768_65] : memref<8x1280xf32, #tpu.memory_space<vmem>>, vector<1x64xf32>
    tpu.vector_store %arg11[%c1_64, %c768_65], %86 {strides = array<i32>} : memref<8x1280xf32, #tpu.memory_space<vmem>>, vector<1x64xf32>,
    %88 = vector.extract_strided_slice %61 {offsets = [13, 0], sizes = [1, 64], strides = [1, 1]} : vector<20x64xf32> to vector<1x64xf32>
    %c1_66 = arith.constant 1 : index
    %c832_67 = arith.constant 832 : index
    %89 = vector.load %arg11[%c1_66, %c832_67] : memref<8x1280xf32, #tpu.memory_space<vmem>>, vector<1x64xf32>
    tpu.vector_store %arg11[%c1_66, %c832_67], %88 {strides = array<i32>} : memref<8x1280xf32, #tpu.memory_space<vmem>>, vector<1x64xf32>,
    %90 = vector.extract_strided_slice %61 {offsets = [14, 0], sizes = [1, 64], strides = [1, 1]} : vector<20x64xf32> to vector<1x64xf32>
    %c1_68 = arith.constant 1 : index
    %c896_69 = arith.constant 896 : index
    %91 = vector.load %arg11[%c1_68, %c896_69] : memref<8x1280xf32, #tpu.memory_space<vmem>>, vector<1x64xf32>
    tpu.vector_store %arg11[%c1_68, %c896_69], %90 {strides = array<i32>} : memref<8x1280xf32, #tpu.memory_space<vmem>>, vector<1x64xf32>,
    %92 = vector.extract_strided_slice %61 {offsets = [15, 0], sizes = [1, 64], strides = [1, 1]} : vector<20x64xf32> to vector<1x64xf32>
    %c1_70 = arith.constant 1 : index
    %c960_71 = arith.constant 960 : index
    %93 = vector.load %arg11[%c1_70, %c960_71] : memref<8x1280xf32, #tpu.memory_space<vmem>>, vector<1x64xf32>
    tpu.vector_store %arg11[%c1_70, %c960_71], %92 {strides = array<i32>} : memref<8x1280xf32, #tpu.memory_space<vmem>>, vector<1x64xf32>,
    %94 = vector.extract_strided_slice %61 {offsets = [16, 0], sizes = [1, 64], strides = [1, 1]} : vector<20x64xf32> to vector<1x64xf32>
    %c1_72 = arith.constant 1 : index
    %c1024_73 = arith.constant 1024 : index
    %95 = vector.load %arg11[%c1_72, %c1024_73] : memref<8x1280xf32, #tpu.memory_space<vmem>>, vector<1x64xf32>
    tpu.vector_store %arg11[%c1_72, %c1024_73], %94 {strides = array<i32>} : memref<8x1280xf32, #tpu.memory_space<vmem>>, vector<1x64xf32>,
    %96 = vector.extract_strided_slice %61 {offsets = [17, 0], sizes = [1, 64], strides = [1, 1]} : vector<20x64xf32> to vector<1x64xf32>
    %c1_74 = arith.constant 1 : index
    %c1088_75 = arith.constant 1088 : index
    %97 = vector.load %arg11[%c1_74, %c1088_75] : memref<8x1280xf32, #tpu.memory_space<vmem>>, vector<1x64xf32>
    tpu.vector_store %arg11[%c1_74, %c1088_75], %96 {strides = array<i32>} : memref<8x1280xf32, #tpu.memory_space<vmem>>, vector<1x64xf32>,
    %98 = vector.extract_strided_slice %61 {offsets = [18, 0], sizes = [1, 64], strides = [1, 1]} : vector<20x64xf32> to vector<1x64xf32>
    %c1_76 = arith.constant 1 : index
    %c1152_77 = arith.constant 1152 : index
    %99 = vector.load %arg11[%c1_76, %c1152_77] : memref<8x1280xf32, #tpu.memory_space<vmem>>, vector<1x64xf32>
    tpu.vector_store %arg11[%c1_76, %c1152_77], %98 {strides = array<i32>} : memref<8x1280xf32, #tpu.memory_space<vmem>>, vector<1x64xf32>,
    %100 = vector.extract_strided_slice %61 {offsets = [19, 0], sizes = [1, 64], strides = [1, 1]} : vector<20x64xf32> to vector<1x64xf32>
    %c1_78 = arith.constant 1 : index
    %c1216_79 = arith.constant 1216 : index
    %101 = vector.load %arg11[%c1_78, %c1216_79] : memref<8x1280xf32, #tpu.memory_space<vmem>>, vector<1x64xf32>
    tpu.vector_store %arg11[%c1_78, %c1216_79], %100 {strides = array<i32>} : memref<8x1280xf32, #tpu.memory_space<vmem>>, vector<1x64xf32>,
    %102 = vector.extract_strided_slice %19 {offsets = [0, 128], sizes = [20, 64], strides = [1, 1]} : vector<20x512xf32> to vector<20x64xf32>
    %103 = vector.extract_strided_slice %102 {offsets = [0, 0], sizes = [1, 64], strides = [1, 1]} : vector<20x64xf32> to vector<1x64xf32>
    %c2 = arith.constant 2 : index
    %c0_80 = arith.constant 0 : index
    %104 = vector.load %arg11[%c2, %c0_80] : memref<8x1280xf32, #tpu.memory_space<vmem>>, vector<1x64xf32>
    tpu.vector_store %arg11[%c2, %c0_80], %103 {strides = array<i32>} : memref<8x1280xf32, #tpu.memory_space<vmem>>, vector<1x64xf32>,
    %105 = vector.extract_strided_slice %102 {offsets = [1, 0], sizes = [1, 64], strides = [1, 1]} : vector<20x64xf32> to vector<1x64xf32>
    %c2_81 = arith.constant 2 : index
    %c64_82 = arith.constant 64 : index
    %106 = vector.load %arg11[%c2_81, %c64_82] : memref<8x1280xf32, #tpu.memory_space<vmem>>, vector<1x64xf32>
    tpu.vector_store %arg11[%c2_81, %c64_82], %105 {strides = array<i32>} : memref<8x1280xf32, #tpu.memory_space<vmem>>, vector<1x64xf32>,
    %107 = vector.extract_strided_slice %102 {offsets = [2, 0], sizes = [1, 64], strides = [1, 1]} : vector<20x64xf32> to vector<1x64xf32>
    %c2_83 = arith.constant 2 : index
    %c128_84 = arith.constant 128 : index
    %108 = vector.load %arg11[%c2_83, %c128_84] : memref<8x1280xf32, #tpu.memory_space<vmem>>, vector<1x64xf32>
    tpu.vector_store %arg11[%c2_83, %c128_84], %107 {strides = array<i32>} : memref<8x1280xf32, #tpu.memory_space<vmem>>, vector<1x64xf32>,
    %109 = vector.extract_strided_slice %102 {offsets = [3, 0], sizes = [1, 64], strides = [1, 1]} : vector<20x64xf32> to vector<1x64xf32>
    %c2_85 = arith.constant 2 : index
    %c192_86 = arith.constant 192 : index
    %110 = vector.load %arg11[%c2_85, %c192_86] : memref<8x1280xf32, #tpu.memory_space<vmem>>, vector<1x64xf32>
    tpu.vector_store %arg11[%c2_85, %c192_86], %109 {strides = array<i32>} : memref<8x1280xf32, #tpu.memory_space<vmem>>, vector<1x64xf32>,
    %111 = vector.extract_strided_slice %102 {offsets = [4, 0], sizes = [1, 64], strides = [1, 1]} : vector<20x64xf32> to vector<1x64xf32>
    %c2_87 = arith.constant 2 : index
    %c256_88 = arith.constant 256 : index
    %112 = vector.load %arg11[%c2_87, %c256_88] : memref<8x1280xf32, #tpu.memory_space<vmem>>, vector<1x64xf32>
    tpu.vector_store %arg11[%c2_87, %c256_88], %111 {strides = array<i32>} : memref<8x1280xf32, #tpu.memory_space<vmem>>, vector<1x64xf32>,
    %113 = vector.extract_strided_slice %102 {offsets = [5, 0], sizes = [1, 64], strides = [1, 1]} : vector<20x64xf32> to vector<1x64xf32>
    %c2_89 = arith.constant 2 : index
    %c320_90 = arith.constant 320 : index
    %114 = vector.load %arg11[%c2_89, %c320_90] : memref<8x1280xf32, #tpu.memory_space<vmem>>, vector<1x64xf32>
    tpu.vector_store %arg11[%c2_89, %c320_90], %113 {strides = array<i32>} : memref<8x1280xf32, #tpu.memory_space<vmem>>, vector<1x64xf32>,
    %115 = vector.extract_strided_slice %102 {offsets = [6, 0], sizes = [1, 64], strides = [1, 1]} : vector<20x64xf32> to vector<1x64xf32>
    %c2_91 = arith.constant 2 : index
    %c384_92 = arith.constant 384 : index
    %116 = vector.load %arg11[%c2_91, %c384_92] : memref<8x1280xf32, #tpu.memory_space<vmem>>, vector<1x64xf32>
    tpu.vector_store %arg11[%c2_91, %c384_92], %115 {strides = array<i32>} : memref<8x1280xf32, #tpu.memory_space<vmem>>, vector<1x64xf32>,
    %117 = vector.extract_strided_slice %102 {offsets = [7, 0], sizes = [1, 64], strides = [1, 1]} : vector<20x64xf32> to vector<1x64xf32>
    %c2_93 = arith.constant 2 : index
    %c448_94 = arith.constant 448 : index
    %118 = vector.load %arg11[%c2_93, %c448_94] : memref<8x1280xf32, #tpu.memory_space<vmem>>, vector<1x64xf32>
    tpu.vector_store %arg11[%c2_93, %c448_94], %117 {strides = array<i32>} : memref<8x1280xf32, #tpu.memory_space<vmem>>, vector<1x64xf32>,
    %119 = vector.extract_strided_slice %102 {offsets = [8, 0], sizes = [1, 64], strides = [1, 1]} : vector<20x64xf32> to vector<1x64xf32>
    %c2_95 = arith.constant 2 : index
    %c512_96 = arith.constant 512 : index
    %120 = vector.load %arg11[%c2_95, %c512_96] : memref<8x1280xf32, #tpu.memory_space<vmem>>, vector<1x64xf32>
    tpu.vector_store %arg11[%c2_95, %c512_96], %119 {strides = array<i32>} : memref<8x1280xf32, #tpu.memory_space<vmem>>, vector<1x64xf32>,
    %121 = vector.extract_strided_slice %102 {offsets = [9, 0], sizes = [1, 64], strides = [1, 1]} : vector<20x64xf32> to vector<1x64xf32>
    %c2_97 = arith.constant 2 : index
    %c576_98 = arith.constant 576 : index
    %122 = vector.load %arg11[%c2_97, %c576_98] : memref<8x1280xf32, #tpu.memory_space<vmem>>, vector<1x64xf32>
    tpu.vector_store %arg11[%c2_97, %c576_98], %121 {strides = array<i32>} : memref<8x1280xf32, #tpu.memory_space<vmem>>, vector<1x64xf32>,
    %123 = vector.extract_strided_slice %102 {offsets = [10, 0], sizes = [1, 64], strides = [1, 1]} : vector<20x64xf32> to vector<1x64xf32>
    %c2_99 = arith.constant 2 : index
    %c640_100 = arith.constant 640 : index
    %124 = vector.load %arg11[%c2_99, %c640_100] : memref<8x1280xf32, #tpu.memory_space<vmem>>, vector<1x64xf32>
    tpu.vector_store %arg11[%c2_99, %c640_100], %123 {strides = array<i32>} : memref<8x1280xf32, #tpu.memory_space<vmem>>, vector<1x64xf32>,
    %125 = vector.extract_strided_slice %102 {offsets = [11, 0], sizes = [1, 64], strides = [1, 1]} : vector<20x64xf32> to vector<1x64xf32>
    %c2_101 = arith.constant 2 : index
    %c704_102 = arith.constant 704 : index
    %126 = vector.load %arg11[%c2_101, %c704_102] : memref<8x1280xf32, #tpu.memory_space<vmem>>, vector<1x64xf32>
    tpu.vector_store %arg11[%c2_101, %c704_102], %125 {strides = array<i32>} : memref<8x1280xf32, #tpu.memory_space<vmem>>, vector<1x64xf32>,
    %127 = vector.extract_strided_slice %102 {offsets = [12, 0], sizes = [1, 64], strides = [1, 1]} : vector<20x64xf32> to vector<1x64xf32>
    %c2_103 = arith.constant 2 : index
    %c768_104 = arith.constant 768 : index
    %128 = vector.load %arg11[%c2_103, %c768_104] : memref<8x1280xf32, #tpu.memory_space<vmem>>, vector<1x64xf32>
    tpu.vector_store %arg11[%c2_103, %c768_104], %127 {strides = array<i32>} : memref<8x1280xf32, #tpu.memory_space<vmem>>, vector<1x64xf32>,
    %129 = vector.extract_strided_slice %102 {offsets = [13, 0], sizes = [1, 64], strides = [1, 1]} : vector<20x64xf32> to vector<1x64xf32>
    %c2_105 = arith.constant 2 : index
    %c832_106 = arith.constant 832 : index
    %130 = vector.load %arg11[%c2_105, %c832_106] : memref<8x1280xf32, #tpu.memory_space<vmem>>, vector<1x64xf32>
    tpu.vector_store %arg11[%c2_105, %c832_106], %129 {strides = array<i32>} : memref<8x1280xf32, #tpu.memory_space<vmem>>, vector<1x64xf32>,
    %131 = vector.extract_strided_slice %102 {offsets = [14, 0], sizes = [1, 64], strides = [1, 1]} : vector<20x64xf32> to vector<1x64xf32>
    %c2_107 = arith.constant 2 : index
    %c896_108 = arith.constant 896 : index
    %132 = vector.load %arg11[%c2_107, %c896_108] : memref<8x1280xf32, #tpu.memory_space<vmem>>, vector<1x64xf32>
    tpu.vector_store %arg11[%c2_107, %c896_108], %131 {strides = array<i32>} : memref<8x1280xf32, #tpu.memory_space<vmem>>, vector<1x64xf32>,
    %133 = vector.extract_strided_slice %102 {offsets = [15, 0], sizes = [1, 64], strides = [1, 1]} : vector<20x64xf32> to vector<1x64xf32>
    %c2_109 = arith.constant 2 : index
    %c960_110 = arith.constant 960 : index
    %134 = vector.load %arg11[%c2_109, %c960_110] : memref<8x1280xf32, #tpu.memory_space<vmem>>, vector<1x64xf32>
    tpu.vector_store %arg11[%c2_109, %c960_110], %133 {strides = array<i32>} : memref<8x1280xf32, #tpu.memory_space<vmem>>, vector<1x64xf32>,
    %135 = vector.extract_strided_slice %102 {offsets = [16, 0], sizes = [1, 64], strides = [1, 1]} : vector<20x64xf32> to vector<1x64xf32>
    %c2_111 = arith.constant 2 : index
    %c1024_112 = arith.constant 1024 : index
    %136 = vector.load %arg11[%c2_111, %c1024_112] : memref<8x1280xf32, #tpu.memory_space<vmem>>, vector<1x64xf32>
    tpu.vector_store %arg11[%c2_111, %c1024_112], %135 {strides = array<i32>} : memref<8x1280xf32, #tpu.memory_space<vmem>>, vector<1x64xf32>,
    %137 = vector.extract_strided_slice %102 {offsets = [17, 0], sizes = [1, 64], strides = [1, 1]} : vector<20x64xf32> to vector<1x64xf32>
    %c2_113 = arith.constant 2 : index
    %c1088_114 = arith.constant 1088 : index
    %138 = vector.load %arg11[%c2_113, %c1088_114] : memref<8x1280xf32, #tpu.memory_space<vmem>>, vector<1x64xf32>
    tpu.vector_store %arg11[%c2_113, %c1088_114], %137 {strides = array<i32>} : memref<8x1280xf32, #tpu.memory_space<vmem>>, vector<1x64xf32>,
    %139 = vector.extract_strided_slice %102 {offsets = [18, 0], sizes = [1, 64], strides = [1, 1]} : vector<20x64xf32> to vector<1x64xf32>
    %c2_115 = arith.constant 2 : index
    %c1152_116 = arith.constant 1152 : index
    %140 = vector.load %arg11[%c2_115, %c1152_116] : memref<8x1280xf32, #tpu.memory_space<vmem>>, vector<1x64xf32>
    tpu.vector_store %arg11[%c2_115, %c1152_116], %139 {strides = array<i32>} : memref<8x1280xf32, #tpu.memory_space<vmem>>, vector<1x64xf32>,
    %141 = vector.extract_strided_slice %102 {offsets = [19, 0], sizes = [1, 64], strides = [1, 1]} : vector<20x64xf32> to vector<1x64xf32>
    %c2_117 = arith.constant 2 : index
    %c1216_118 = arith.constant 1216 : index
    %142 = vector.load %arg11[%c2_117, %c1216_118] : memref<8x1280xf32, #tpu.memory_space<vmem>>, vector<1x64xf32>
    tpu.vector_store %arg11[%c2_117, %c1216_118], %141 {strides = array<i32>} : memref<8x1280xf32, #tpu.memory_space<vmem>>, vector<1x64xf32>,
    %143 = vector.extract_strided_slice %19 {offsets = [0, 192], sizes = [20, 64], strides = [1, 1]} : vector<20x512xf32> to vector<20x64xf32>
    %144 = vector.extract_strided_slice %143 {offsets = [0, 0], sizes = [1, 64], strides = [1, 1]} : vector<20x64xf32> to vector<1x64xf32>
    %c3 = arith.constant 3 : index
    %c0_119 = arith.constant 0 : index
    %145 = vector.load %arg11[%c3, %c0_119] : memref<8x1280xf32, #tpu.memory_space<vmem>>, vector<1x64xf32>
    tpu.vector_store %arg11[%c3, %c0_119], %144 {strides = array<i32>} : memref<8x1280xf32, #tpu.memory_space<vmem>>, vector<1x64xf32>,
    %146 = vector.extract_strided_slice %143 {offsets = [1, 0], sizes = [1, 64], strides = [1, 1]} : vector<20x64xf32> to vector<1x64xf32>
    %c3_120 = arith.constant 3 : index
    %c64_121 = arith.constant 64 : index
    %147 = vector.load %arg11[%c3_120, %c64_121] : memref<8x1280xf32, #tpu.memory_space<vmem>>, vector<1x64xf32>
    tpu.vector_store %arg11[%c3_120, %c64_121], %146 {strides = array<i32>} : memref<8x1280xf32, #tpu.memory_space<vmem>>, vector<1x64xf32>,
    %148 = vector.extract_strided_slice %143 {offsets = [2, 0], sizes = [1, 64], strides = [1, 1]} : vector<20x64xf32> to vector<1x64xf32>
    %c3_122 = arith.constant 3 : index
    %c128_123 = arith.constant 128 : index
    %149 = vector.load %arg11[%c3_122, %c128_123] : memref<8x1280xf32, #tpu.memory_space<vmem>>, vector<1x64xf32>
    tpu.vector_store %arg11[%c3_122, %c128_123], %148 {strides = array<i32>} : memref<8x1280xf32, #tpu.memory_space<vmem>>, vector<1x64xf32>,
    %150 = vector.extract_strided_slice %143 {offsets = [3, 0], sizes = [1, 64], strides = [1, 1]} : vector<20x64xf32> to vector<1x64xf32>
    %c3_124 = arith.constant 3 : index
    %c192_125 = arith.constant 192 : index
    %151 = vector.load %arg11[%c3_124, %c192_125] : memref<8x1280xf32, #tpu.memory_space<vmem>>, vector<1x64xf32>
    tpu.vector_store %arg11[%c3_124, %c192_125], %150 {strides = array<i32>} : memref<8x1280xf32, #tpu.memory_space<vmem>>, vector<1x64xf32>,
    %152 = vector.extract_strided_slice %143 {offsets = [4, 0], sizes = [1, 64], strides = [1, 1]} : vector<20x64xf32> to vector<1x64xf32>
    %c3_126 = arith.constant 3 : index
    %c256_127 = arith.constant 256 : index
    %153 = vector.load %arg11[%c3_126, %c256_127] : memref<8x1280xf32, #tpu.memory_space<vmem>>, vector<1x64xf32>
    tpu.vector_store %arg11[%c3_126, %c256_127], %152 {strides = array<i32>} : memref<8x1280xf32, #tpu.memory_space<vmem>>, vector<1x64xf32>,
    %154 = vector.extract_strided_slice %143 {offsets = [5, 0], sizes = [1, 64], strides = [1, 1]} : vector<20x64xf32> to vector<1x64xf32>
    %c3_128 = arith.constant 3 : index
    %c320_129 = arith.constant 320 : index
    %155 = vector.load %arg11[%c3_128, %c320_129] : memref<8x1280xf32, #tpu.memory_space<vmem>>, vector<1x64xf32>
    tpu.vector_store %arg11[%c3_128, %c320_129], %154 {strides = array<i32>} : memref<8x1280xf32, #tpu.memory_space<vmem>>, vector<1x64xf32>,
    %156 = vector.extract_strided_slice %143 {offsets = [6, 0], sizes = [1, 64], strides = [1, 1]} : vector<20x64xf32> to vector<1x64xf32>
    %c3_130 = arith.constant 3 : index
    %c384_131 = arith.constant 384 : index
    %157 = vector.load %arg11[%c3_130, %c384_131] : memref<8x1280xf32, #tpu.memory_space<vmem>>, vector<1x64xf32>
    tpu.vector_store %arg11[%c3_130, %c384_131], %156 {strides = array<i32>} : memref<8x1280xf32, #tpu.memory_space<vmem>>, vector<1x64xf32>,
    %158 = vector.extract_strided_slice %143 {offsets = [7, 0], sizes = [1, 64], strides = [1, 1]} : vector<20x64xf32> to vector<1x64xf32>
    %c3_132 = arith.constant 3 : index
    %c448_133 = arith.constant 448 : index
    %159 = vector.load %arg11[%c3_132, %c448_133] : memref<8x1280xf32, #tpu.memory_space<vmem>>, vector<1x64xf32>
    tpu.vector_store %arg11[%c3_132, %c448_133], %158 {strides = array<i32>} : memref<8x1280xf32, #tpu.memory_space<vmem>>, vector<1x64xf32>,
    %160 = vector.extract_strided_slice %143 {offsets = [8, 0], sizes = [1, 64], strides = [1, 1]} : vector<20x64xf32> to vector<1x64xf32>
    %c3_134 = arith.constant 3 : index
    %c512_135 = arith.constant 512 : index
    %161 = vector.load %arg11[%c3_134, %c512_135] : memref<8x1280xf32, #tpu.memory_space<vmem>>, vector<1x64xf32>
    tpu.vector_store %arg11[%c3_134, %c512_135], %160 {strides = array<i32>} : memref<8x1280xf32, #tpu.memory_space<vmem>>, vector<1x64xf32>,
    %162 = vector.extract_strided_slice %143 {offsets = [9, 0], sizes = [1, 64], strides = [1, 1]} : vector<20x64xf32> to vector<1x64xf32>
    %c3_136 = arith.constant 3 : index
    %c576_137 = arith.constant 576 : index
    %163 = vector.load %arg11[%c3_136, %c576_137] : memref<8x1280xf32, #tpu.memory_space<vmem>>, vector<1x64xf32>
    tpu.vector_store %arg11[%c3_136, %c576_137], %162 {strides = array<i32>} : memref<8x1280xf32, #tpu.memory_space<vmem>>, vector<1x64xf32>,
    %164 = vector.extract_strided_slice %143 {offsets = [10, 0], sizes = [1, 64], strides = [1, 1]} : vector<20x64xf32> to vector<1x64xf32>
    %c3_138 = arith.constant 3 : index
    %c640_139 = arith.constant 640 : index
    %165 = vector.load %arg11[%c3_138, %c640_139] : memref<8x1280xf32, #tpu.memory_space<vmem>>, vector<1x64xf32>
    tpu.vector_store %arg11[%c3_138, %c640_139], %164 {strides = array<i32>} : memref<8x1280xf32, #tpu.memory_space<vmem>>, vector<1x64xf32>,
    %166 = vector.extract_strided_slice %143 {offsets = [11, 0], sizes = [1, 64], strides = [1, 1]} : vector<20x64xf32> to vector<1x64xf32>
    %c3_140 = arith.constant 3 : index
    %c704_141 = arith.constant 704 : index
    %167 = vector.load %arg11[%c3_140, %c704_141] : memref<8x1280xf32, #tpu.memory_space<vmem>>, vector<1x64xf32>
    tpu.vector_store %arg11[%c3_140, %c704_141], %166 {strides = array<i32>} : memref<8x1280xf32, #tpu.memory_space<vmem>>, vector<1x64xf32>,
    %168 = vector.extract_strided_slice %143 {offsets = [12, 0], sizes = [1, 64], strides = [1, 1]} : vector<20x64xf32> to vector<1x64xf32>
    %c3_142 = arith.constant 3 : index
    %c768_143 = arith.constant 768 : index
    %169 = vector.load %arg11[%c3_142, %c768_143] : memref<8x1280xf32, #tpu.memory_space<vmem>>, vector<1x64xf32>
    tpu.vector_store %arg11[%c3_142, %c768_143], %168 {strides = array<i32>} : memref<8x1280xf32, #tpu.memory_space<vmem>>, vector<1x64xf32>,
    %170 = vector.extract_strided_slice %143 {offsets = [13, 0], sizes = [1, 64], strides = [1, 1]} : vector<20x64xf32> to vector<1x64xf32>
    %c3_144 = arith.constant 3 : index
    %c832_145 = arith.constant 832 : index
    %171 = vector.load %arg11[%c3_144, %c832_145] : memref<8x1280xf32, #tpu.memory_space<vmem>>, vector<1x64xf32>
    tpu.vector_store %arg11[%c3_144, %c832_145], %170 {strides = array<i32>} : memref<8x1280xf32, #tpu.memory_space<vmem>>, vector<1x64xf32>,
    %172 = vector.extract_strided_slice %143 {offsets = [14, 0], sizes = [1, 64], strides = [1, 1]} : vector<20x64xf32> to vector<1x64xf32>
    %c3_146 = arith.constant 3 : index
    %c896_147 = arith.constant 896 : index
    %173 = vector.load %arg11[%c3_146, %c896_147] : memref<8x1280xf32, #tpu.memory_space<vmem>>, vector<1x64xf32>
    tpu.vector_store %arg11[%c3_146, %c896_147], %172 {strides = array<i32>} : memref<8x1280xf32, #tpu.memory_space<vmem>>, vector<1x64xf32>,
    %174 = vector.extract_strided_slice %143 {offsets = [15, 0], sizes = [1, 64], strides = [1, 1]} : vector<20x64xf32> to vector<1x64xf32>
    %c3_148 = arith.constant 3 : index
    %c960_149 = arith.constant 960 : index
    %175 = vector.load %arg11[%c3_148, %c960_149] : memref<8x1280xf32, #tpu.memory_space<vmem>>, vector<1x64xf32>
    tpu.vector_store %arg11[%c3_148, %c960_149], %174 {strides = array<i32>} : memref<8x1280xf32, #tpu.memory_space<vmem>>, vector<1x64xf32>,
    %176 = vector.extract_strided_slice %143 {offsets = [16, 0], sizes = [1, 64], strides = [1, 1]} : vector<20x64xf32> to vector<1x64xf32>
    %c3_150 = arith.constant 3 : index
    %c1024_151 = arith.constant 1024 : index
    %177 = vector.load %arg11[%c3_150, %c1024_151] : memref<8x1280xf32, #tpu.memory_space<vmem>>, vector<1x64xf32>
    tpu.vector_store %arg11[%c3_150, %c1024_151], %176 {strides = array<i32>} : memref<8x1280xf32, #tpu.memory_space<vmem>>, vector<1x64xf32>,
    %178 = vector.extract_strided_slice %143 {offsets = [17, 0], sizes = [1, 64], strides = [1, 1]} : vector<20x64xf32> to vector<1x64xf32>
    %c3_152 = arith.constant 3 : index
    %c1088_153 = arith.constant 1088 : index
    %179 = vector.load %arg11[%c3_152, %c1088_153] : memref<8x1280xf32, #tpu.memory_space<vmem>>, vector<1x64xf32>
    tpu.vector_store %arg11[%c3_152, %c1088_153], %178 {strides = array<i32>} : memref<8x1280xf32, #tpu.memory_space<vmem>>, vector<1x64xf32>,
    %180 = vector.extract_strided_slice %143 {offsets = [18, 0], sizes = [1, 64], strides = [1, 1]} : vector<20x64xf32> to vector<1x64xf32>
    %c3_154 = arith.constant 3 : index
    %c1152_155 = arith.constant 1152 : index
    %181 = vector.load %arg11[%c3_154, %c1152_155] : memref<8x1280xf32, #tpu.memory_space<vmem>>, vector<1x64xf32>
    tpu.vector_store %arg11[%c3_154, %c1152_155], %180 {strides = array<i32>} : memref<8x1280xf32, #tpu.memory_space<vmem>>, vector<1x64xf32>,
    %182 = vector.extract_strided_slice %143 {offsets = [19, 0], sizes = [1, 64], strides = [1, 1]} : vector<20x64xf32> to vector<1x64xf32>
    %c3_156 = arith.constant 3 : index
    %c1216_157 = arith.constant 1216 : index
    %183 = vector.load %arg11[%c3_156, %c1216_157] : memref<8x1280xf32, #tpu.memory_space<vmem>>, vector<1x64xf32>
    tpu.vector_store %arg11[%c3_156, %c1216_157], %182 {strides = array<i32>} : memref<8x1280xf32, #tpu.memory_space<vmem>>, vector<1x64xf32>,
    %184 = vector.extract_strided_slice %19 {offsets = [0, 256], sizes = [20, 64], strides = [1, 1]} : vector<20x512xf32> to vector<20x64xf32>
    %185 = vector.extract_strided_slice %184 {offsets = [0, 0], sizes = [1, 64], strides = [1, 1]} : vector<20x64xf32> to vector<1x64xf32>
    %c4 = arith.constant 4 : index
    %c0_158 = arith.constant 0 : index
    %186 = vector.load %arg11[%c4, %c0_158] : memref<8x1280xf32, #tpu.memory_space<vmem>>, vector<1x64xf32>
    tpu.vector_store %arg11[%c4, %c0_158], %185 {strides = array<i32>} : memref<8x1280xf32, #tpu.memory_space<vmem>>, vector<1x64xf32>,
    %187 = vector.extract_strided_slice %184 {offsets = [1, 0], sizes = [1, 64], strides = [1, 1]} : vector<20x64xf32> to vector<1x64xf32>
    %c4_159 = arith.constant 4 : index
    %c64_160 = arith.constant 64 : index
    %188 = vector.load %arg11[%c4_159, %c64_160] : memref<8x1280xf32, #tpu.memory_space<vmem>>, vector<1x64xf32>
    tpu.vector_store %arg11[%c4_159, %c64_160], %187 {strides = array<i32>} : memref<8x1280xf32, #tpu.memory_space<vmem>>, vector<1x64xf32>,
    %189 = vector.extract_strided_slice %184 {offsets = [2, 0], sizes = [1, 64], strides = [1, 1]} : vector<20x64xf32> to vector<1x64xf32>
    %c4_161 = arith.constant 4 : index
    %c128_162 = arith.constant 128 : index
    %190 = vector.load %arg11[%c4_161, %c128_162] : memref<8x1280xf32, #tpu.memory_space<vmem>>, vector<1x64xf32>
    tpu.vector_store %arg11[%c4_161, %c128_162], %189 {strides = array<i32>} : memref<8x1280xf32, #tpu.memory_space<vmem>>, vector<1x64xf32>,
    %191 = vector.extract_strided_slice %184 {offsets = [3, 0], sizes = [1, 64], strides = [1, 1]} : vector<20x64xf32> to vector<1x64xf32>
    %c4_163 = arith.constant 4 : index
    %c192_164 = arith.constant 192 : index
    %192 = vector.load %arg11[%c4_163, %c192_164] : memref<8x1280xf32, #tpu.memory_space<vmem>>, vector<1x64xf32>
    tpu.vector_store %arg11[%c4_163, %c192_164], %191 {strides = array<i32>} : memref<8x1280xf32, #tpu.memory_space<vmem>>, vector<1x64xf32>,
    %193 = vector.extract_strided_slice %184 {offsets = [4, 0], sizes = [1, 64], strides = [1, 1]} : vector<20x64xf32> to vector<1x64xf32>
    %c4_165 = arith.constant 4 : index
    %c256_166 = arith.constant 256 : index
    %194 = vector.load %arg11[%c4_165, %c256_166] : memref<8x1280xf32, #tpu.memory_space<vmem>>, vector<1x64xf32>
    tpu.vector_store %arg11[%c4_165, %c256_166], %193 {strides = array<i32>} : memref<8x1280xf32, #tpu.memory_space<vmem>>, vector<1x64xf32>,
    %195 = vector.extract_strided_slice %184 {offsets = [5, 0], sizes = [1, 64], strides = [1, 1]} : vector<20x64xf32> to vector<1x64xf32>
    %c4_167 = arith.constant 4 : index
    %c320_168 = arith.constant 320 : index
    %196 = vector.load %arg11[%c4_167, %c320_168] : memref<8x1280xf32, #tpu.memory_space<vmem>>, vector<1x64xf32>
    tpu.vector_store %arg11[%c4_167, %c320_168], %195 {strides = array<i32>} : memref<8x1280xf32, #tpu.memory_space<vmem>>, vector<1x64xf32>,
    %197 = vector.extract_strided_slice %184 {offsets = [6, 0], sizes = [1, 64], strides = [1, 1]} : vector<20x64xf32> to vector<1x64xf32>
    %c4_169 = arith.constant 4 : index
    %c384_170 = arith.constant 384 : index
    %198 = vector.load %arg11[%c4_169, %c384_170] : memref<8x1280xf32, #tpu.memory_space<vmem>>, vector<1x64xf32>
    tpu.vector_store %arg11[%c4_169, %c384_170], %197 {strides = array<i32>} : memref<8x1280xf32, #tpu.memory_space<vmem>>, vector<1x64xf32>,
    %199 = vector.extract_strided_slice %184 {offsets = [7, 0], sizes = [1, 64], strides = [1, 1]} : vector<20x64xf32> to vector<1x64xf32>
    %c4_171 = arith.constant 4 : index
    %c448_172 = arith.constant 448 : index
    %200 = vector.load %arg11[%c4_171, %c448_172] : memref<8x1280xf32, #tpu.memory_space<vmem>>, vector<1x64xf32>
    tpu.vector_store %arg11[%c4_171, %c448_172], %199 {strides = array<i32>} : memref<8x1280xf32, #tpu.memory_space<vmem>>, vector<1x64xf32>,
    %201 = vector.extract_strided_slice %184 {offsets = [8, 0], sizes = [1, 64], strides = [1, 1]} : vector<20x64xf32> to vector<1x64xf32>
    %c4_173 = arith.constant 4 : index
    %c512_174 = arith.constant 512 : index
    %202 = vector.load %arg11[%c4_173, %c512_174] : memref<8x1280xf32, #tpu.memory_space<vmem>>, vector<1x64xf32>
    tpu.vector_store %arg11[%c4_173, %c512_174], %201 {strides = array<i32>} : memref<8x1280xf32, #tpu.memory_space<vmem>>, vector<1x64xf32>,
    %203 = vector.extract_strided_slice %184 {offsets = [9, 0], sizes = [1, 64], strides = [1, 1]} : vector<20x64xf32> to vector<1x64xf32>
    %c4_175 = arith.constant 4 : index
    %c576_176 = arith.constant 576 : index
    %204 = vector.load %arg11[%c4_175, %c576_176] : memref<8x1280xf32, #tpu.memory_space<vmem>>, vector<1x64xf32>
    tpu.vector_store %arg11[%c4_175, %c576_176], %203 {strides = array<i32>} : memref<8x1280xf32, #tpu.memory_space<vmem>>, vector<1x64xf32>,
    %205 = vector.extract_strided_slice %184 {offsets = [10, 0], sizes = [1, 64], strides = [1, 1]} : vector<20x64xf32> to vector<1x64xf32>
    %c4_177 = arith.constant 4 : index
    %c640_178 = arith.constant 640 : index
    %206 = vector.load %arg11[%c4_177, %c640_178] : memref<8x1280xf32, #tpu.memory_space<vmem>>, vector<1x64xf32>
    tpu.vector_store %arg11[%c4_177, %c640_178], %205 {strides = array<i32>} : memref<8x1280xf32, #tpu.memory_space<vmem>>, vector<1x64xf32>,
    %207 = vector.extract_strided_slice %184 {offsets = [11, 0], sizes = [1, 64], strides = [1, 1]} : vector<20x64xf32> to vector<1x64xf32>
    %c4_179 = arith.constant 4 : index
    %c704_180 = arith.constant 704 : index
    %208 = vector.load %arg11[%c4_179, %c704_180] : memref<8x1280xf32, #tpu.memory_space<vmem>>, vector<1x64xf32>
    tpu.vector_store %arg11[%c4_179, %c704_180], %207 {strides = array<i32>} : memref<8x1280xf32, #tpu.memory_space<vmem>>, vector<1x64xf32>,
    %209 = vector.extract_strided_slice %184 {offsets = [12, 0], sizes = [1, 64], strides = [1, 1]} : vector<20x64xf32> to vector<1x64xf32>
    %c4_181 = arith.constant 4 : index
    %c768_182 = arith.constant 768 : index
    %210 = vector.load %arg11[%c4_181, %c768_182] : memref<8x1280xf32, #tpu.memory_space<vmem>>, vector<1x64xf32>
    tpu.vector_store %arg11[%c4_181, %c768_182], %209 {strides = array<i32>} : memref<8x1280xf32, #tpu.memory_space<vmem>>, vector<1x64xf32>,
    %211 = vector.extract_strided_slice %184 {offsets = [13, 0], sizes = [1, 64], strides = [1, 1]} : vector<20x64xf32> to vector<1x64xf32>
    %c4_183 = arith.constant 4 : index
    %c832_184 = arith.constant 832 : index
    %212 = vector.load %arg11[%c4_183, %c832_184] : memref<8x1280xf32, #tpu.memory_space<vmem>>, vector<1x64xf32>
    tpu.vector_store %arg11[%c4_183, %c832_184], %211 {strides = array<i32>} : memref<8x1280xf32, #tpu.memory_space<vmem>>, vector<1x64xf32>,
    %213 = vector.extract_strided_slice %184 {offsets = [14, 0], sizes = [1, 64], strides = [1, 1]} : vector<20x64xf32> to vector<1x64xf32>
    %c4_185 = arith.constant 4 : index
    %c896_186 = arith.constant 896 : index
    %214 = vector.load %arg11[%c4_185, %c896_186] : memref<8x1280xf32, #tpu.memory_space<vmem>>, vector<1x64xf32>
    tpu.vector_store %arg11[%c4_185, %c896_186], %213 {strides = array<i32>} : memref<8x1280xf32, #tpu.memory_space<vmem>>, vector<1x64xf32>,
    %215 = vector.extract_strided_slice %184 {offsets = [15, 0], sizes = [1, 64], strides = [1, 1]} : vector<20x64xf32> to vector<1x64xf32>
    %c4_187 = arith.constant 4 : index
    %c960_188 = arith.constant 960 : index
    %216 = vector.load %arg11[%c4_187, %c960_188] : memref<8x1280xf32, #tpu.memory_space<vmem>>, vector<1x64xf32>
    tpu.vector_store %arg11[%c4_187, %c960_188], %215 {strides = array<i32>} : memref<8x1280xf32, #tpu.memory_space<vmem>>, vector<1x64xf32>,
    %217 = vector.extract_strided_slice %184 {offsets = [16, 0], sizes = [1, 64], strides = [1, 1]} : vector<20x64xf32> to vector<1x64xf32>
    %c4_189 = arith.constant 4 : index
    %c1024_190 = arith.constant 1024 : index
    %218 = vector.load %arg11[%c4_189, %c1024_190] : memref<8x1280xf32, #tpu.memory_space<vmem>>, vector<1x64xf32>
    tpu.vector_store %arg11[%c4_189, %c1024_190], %217 {strides = array<i32>} : memref<8x1280xf32, #tpu.memory_space<vmem>>, vector<1x64xf32>,
    %219 = vector.extract_strided_slice %184 {offsets = [17, 0], sizes = [1, 64], strides = [1, 1]} : vector<20x64xf32> to vector<1x64xf32>
    %c4_191 = arith.constant 4 : index
    %c1088_192 = arith.constant 1088 : index
    %220 = vector.load %arg11[%c4_191, %c1088_192] : memref<8x1280xf32, #tpu.memory_space<vmem>>, vector<1x64xf32>
    tpu.vector_store %arg11[%c4_191, %c1088_192], %219 {strides = array<i32>} : memref<8x1280xf32, #tpu.memory_space<vmem>>, vector<1x64xf32>,
    %221 = vector.extract_strided_slice %184 {offsets = [18, 0], sizes = [1, 64], strides = [1, 1]} : vector<20x64xf32> to vector<1x64xf32>
    %c4_193 = arith.constant 4 : index
    %c1152_194 = arith.constant 1152 : index
    %222 = vector.load %arg11[%c4_193, %c1152_194] : memref<8x1280xf32, #tpu.memory_space<vmem>>, vector<1x64xf32>
    tpu.vector_store %arg11[%c4_193, %c1152_194], %221 {strides = array<i32>} : memref<8x1280xf32, #tpu.memory_space<vmem>>, vector<1x64xf32>,
    %223 = vector.extract_strided_slice %184 {offsets = [19, 0], sizes = [1, 64], strides = [1, 1]} : vector<20x64xf32> to vector<1x64xf32>
    %c4_195 = arith.constant 4 : index
    %c1216_196 = arith.constant 1216 : index
    %224 = vector.load %arg11[%c4_195, %c1216_196] : memref<8x1280xf32, #tpu.memory_space<vmem>>, vector<1x64xf32>
    tpu.vector_store %arg11[%c4_195, %c1216_196], %223 {strides = array<i32>} : memref<8x1280xf32, #tpu.memory_space<vmem>>, vector<1x64xf32>,
    %225 = vector.extract_strided_slice %19 {offsets = [0, 320], sizes = [20, 64], strides = [1, 1]} : vector<20x512xf32> to vector<20x64xf32>
    %226 = vector.extract_strided_slice %225 {offsets = [0, 0], sizes = [1, 64], strides = [1, 1]} : vector<20x64xf32> to vector<1x64xf32>
    %c5 = arith.constant 5 : index
    %c0_197 = arith.constant 0 : index
    %227 = vector.load %arg11[%c5, %c0_197] : memref<8x1280xf32, #tpu.memory_space<vmem>>, vector<1x64xf32>
    tpu.vector_store %arg11[%c5, %c0_197], %226 {strides = array<i32>} : memref<8x1280xf32, #tpu.memory_space<vmem>>, vector<1x64xf32>,
    %228 = vector.extract_strided_slice %225 {offsets = [1, 0], sizes = [1, 64], strides = [1, 1]} : vector<20x64xf32> to vector<1x64xf32>
    %c5_198 = arith.constant 5 : index
    %c64_199 = arith.constant 64 : index
    %229 = vector.load %arg11[%c5_198, %c64_199] : memref<8x1280xf32, #tpu.memory_space<vmem>>, vector<1x64xf32>
    tpu.vector_store %arg11[%c5_198, %c64_199], %228 {strides = array<i32>} : memref<8x1280xf32, #tpu.memory_space<vmem>>, vector<1x64xf32>,
    %230 = vector.extract_strided_slice %225 {offsets = [2, 0], sizes = [1, 64], strides = [1, 1]} : vector<20x64xf32> to vector<1x64xf32>
    %c5_200 = arith.constant 5 : index
    %c128_201 = arith.constant 128 : index
    %231 = vector.load %arg11[%c5_200, %c128_201] : memref<8x1280xf32, #tpu.memory_space<vmem>>, vector<1x64xf32>
    tpu.vector_store %arg11[%c5_200, %c128_201], %230 {strides = array<i32>} : memref<8x1280xf32, #tpu.memory_space<vmem>>, vector<1x64xf32>,
    %232 = vector.extract_strided_slice %225 {offsets = [3, 0], sizes = [1, 64], strides = [1, 1]} : vector<20x64xf32> to vector<1x64xf32>
    %c5_202 = arith.constant 5 : index
    %c192_203 = arith.constant 192 : index
    %233 = vector.load %arg11[%c5_202, %c192_203] : memref<8x1280xf32, #tpu.memory_space<vmem>>, vector<1x64xf32>
    tpu.vector_store %arg11[%c5_202, %c192_203], %232 {strides = array<i32>} : memref<8x1280xf32, #tpu.memory_space<vmem>>, vector<1x64xf32>,
    %234 = vector.extract_strided_slice %225 {offsets = [4, 0], sizes = [1, 64], strides = [1, 1]} : vector<20x64xf32> to vector<1x64xf32>
    %c5_204 = arith.constant 5 : index
    %c256_205 = arith.constant 256 : index
    %235 = vector.load %arg11[%c5_204, %c256_205] : memref<8x1280xf32, #tpu.memory_space<vmem>>, vector<1x64xf32>
    tpu.vector_store %arg11[%c5_204, %c256_205], %234 {strides = array<i32>} : memref<8x1280xf32, #tpu.memory_space<vmem>>, vector<1x64xf32>,
    %236 = vector.extract_strided_slice %225 {offsets = [5, 0], sizes = [1, 64], strides = [1, 1]} : vector<20x64xf32> to vector<1x64xf32>
    %c5_206 = arith.constant 5 : index
    %c320_207 = arith.constant 320 : index
    %237 = vector.load %arg11[%c5_206, %c320_207] : memref<8x1280xf32, #tpu.memory_space<vmem>>, vector<1x64xf32>
    tpu.vector_store %arg11[%c5_206, %c320_207], %236 {strides = array<i32>} : memref<8x1280xf32, #tpu.memory_space<vmem>>, vector<1x64xf32>,
    %238 = vector.extract_strided_slice %225 {offsets = [6, 0], sizes = [1, 64], strides = [1, 1]} : vector<20x64xf32> to vector<1x64xf32>
    %c5_208 = arith.constant 5 : index
    %c384_209 = arith.constant 384 : index
    %239 = vector.load %arg11[%c5_208, %c384_209] : memref<8x1280xf32, #tpu.memory_space<vmem>>, vector<1x64xf32>
    tpu.vector_store %arg11[%c5_208, %c384_209], %238 {strides = array<i32>} : memref<8x1280xf32, #tpu.memory_space<vmem>>, vector<1x64xf32>,
    %240 = vector.extract_strided_slice %225 {offsets = [7, 0], sizes = [1, 64], strides = [1, 1]} : vector<20x64xf32> to vector<1x64xf32>
    %c5_210 = arith.constant 5 : index
    %c448_211 = arith.constant 448 : index
    %241 = vector.load %arg11[%c5_210, %c448_211] : memref<8x1280xf32, #tpu.memory_space<vmem>>, vector<1x64xf32>
    tpu.vector_store %arg11[%c5_210, %c448_211], %240 {strides = array<i32>} : memref<8x1280xf32, #tpu.memory_space<vmem>>, vector<1x64xf32>,
    %242 = vector.extract_strided_slice %225 {offsets = [8, 0], sizes = [1, 64], strides = [1, 1]} : vector<20x64xf32> to vector<1x64xf32>
    %c5_212 = arith.constant 5 : index
    %c512_213 = arith.constant 512 : index
    %243 = vector.load %arg11[%c5_212, %c512_213] : memref<8x1280xf32, #tpu.memory_space<vmem>>, vector<1x64xf32>
    tpu.vector_store %arg11[%c5_212, %c512_213], %242 {strides = array<i32>} : memref<8x1280xf32, #tpu.memory_space<vmem>>, vector<1x64xf32>,
    %244 = vector.extract_strided_slice %225 {offsets = [9, 0], sizes = [1, 64], strides = [1, 1]} : vector<20x64xf32> to vector<1x64xf32>
    %c5_214 = arith.constant 5 : index
    %c576_215 = arith.constant 576 : index
    %245 = vector.load %arg11[%c5_214, %c576_215] : memref<8x1280xf32, #tpu.memory_space<vmem>>, vector<1x64xf32>
    tpu.vector_store %arg11[%c5_214, %c576_215], %244 {strides = array<i32>} : memref<8x1280xf32, #tpu.memory_space<vmem>>, vector<1x64xf32>,
    %246 = vector.extract_strided_slice %225 {offsets = [10, 0], sizes = [1, 64], strides = [1, 1]} : vector<20x64xf32> to vector<1x64xf32>
    %c5_216 = arith.constant 5 : index
    %c640_217 = arith.constant 640 : index
    %247 = vector.load %arg11[%c5_216, %c640_217] : memref<8x1280xf32, #tpu.memory_space<vmem>>, vector<1x64xf32>
    tpu.vector_store %arg11[%c5_216, %c640_217], %246 {strides = array<i32>} : memref<8x1280xf32, #tpu.memory_space<vmem>>, vector<1x64xf32>,
    %248 = vector.extract_strided_slice %225 {offsets = [11, 0], sizes = [1, 64], strides = [1, 1]} : vector<20x64xf32> to vector<1x64xf32>
    %c5_218 = arith.constant 5 : index
    %c704_219 = arith.constant 704 : index
    %249 = vector.load %arg11[%c5_218, %c704_219] : memref<8x1280xf32, #tpu.memory_space<vmem>>, vector<1x64xf32>
    tpu.vector_store %arg11[%c5_218, %c704_219], %248 {strides = array<i32>} : memref<8x1280xf32, #tpu.memory_space<vmem>>, vector<1x64xf32>,
    %250 = vector.extract_strided_slice %225 {offsets = [12, 0], sizes = [1, 64], strides = [1, 1]} : vector<20x64xf32> to vector<1x64xf32>
    %c5_220 = arith.constant 5 : index
    %c768_221 = arith.constant 768 : index
    %251 = vector.load %arg11[%c5_220, %c768_221] : memref<8x1280xf32, #tpu.memory_space<vmem>>, vector<1x64xf32>
    tpu.vector_store %arg11[%c5_220, %c768_221], %250 {strides = array<i32>} : memref<8x1280xf32, #tpu.memory_space<vmem>>, vector<1x64xf32>,
    %252 = vector.extract_strided_slice %225 {offsets = [13, 0], sizes = [1, 64], strides = [1, 1]} : vector<20x64xf32> to vector<1x64xf32>
    %c5_222 = arith.constant 5 : index
    %c832_223 = arith.constant 832 : index
    %253 = vector.load %arg11[%c5_222, %c832_223] : memref<8x1280xf32, #tpu.memory_space<vmem>>, vector<1x64xf32>
    tpu.vector_store %arg11[%c5_222, %c832_223], %252 {strides = array<i32>} : memref<8x1280xf32, #tpu.memory_space<vmem>>, vector<1x64xf32>,
    %254 = vector.extract_strided_slice %225 {offsets = [14, 0], sizes = [1, 64], strides = [1, 1]} : vector<20x64xf32> to vector<1x64xf32>
    %c5_224 = arith.constant 5 : index
    %c896_225 = arith.constant 896 : index
    %255 = vector.load %arg11[%c5_224, %c896_225] : memref<8x1280xf32, #tpu.memory_space<vmem>>, vector<1x64xf32>
    tpu.vector_store %arg11[%c5_224, %c896_225], %254 {strides = array<i32>} : memref<8x1280xf32, #tpu.memory_space<vmem>>, vector<1x64xf32>,
    %256 = vector.extract_strided_slice %225 {offsets = [15, 0], sizes = [1, 64], strides = [1, 1]} : vector<20x64xf32> to vector<1x64xf32>
    %c5_226 = arith.constant 5 : index
    %c960_227 = arith.constant 960 : index
    %257 = vector.load %arg11[%c5_226, %c960_227] : memref<8x1280xf32, #tpu.memory_space<vmem>>, vector<1x64xf32>
    tpu.vector_store %arg11[%c5_226, %c960_227], %256 {strides = array<i32>} : memref<8x1280xf32, #tpu.memory_space<vmem>>, vector<1x64xf32>,
    %258 = vector.extract_strided_slice %225 {offsets = [16, 0], sizes = [1, 64], strides = [1, 1]} : vector<20x64xf32> to vector<1x64xf32>
    %c5_228 = arith.constant 5 : index
    %c1024_229 = arith.constant 1024 : index
    %259 = vector.load %arg11[%c5_228, %c1024_229] : memref<8x1280xf32, #tpu.memory_space<vmem>>, vector<1x64xf32>
    tpu.vector_store %arg11[%c5_228, %c1024_229], %258 {strides = array<i32>} : memref<8x1280xf32, #tpu.memory_space<vmem>>, vector<1x64xf32>,
    %260 = vector.extract_strided_slice %225 {offsets = [17, 0], sizes = [1, 64], strides = [1, 1]} : vector<20x64xf32> to vector<1x64xf32>
    %c5_230 = arith.constant 5 : index
    %c1088_231 = arith.constant 1088 : index
    %261 = vector.load %arg11[%c5_230, %c1088_231] : memref<8x1280xf32, #tpu.memory_space<vmem>>, vector<1x64xf32>
    tpu.vector_store %arg11[%c5_230, %c1088_231], %260 {strides = array<i32>} : memref<8x1280xf32, #tpu.memory_space<vmem>>, vector<1x64xf32>,
    %262 = vector.extract_strided_slice %225 {offsets = [18, 0], sizes = [1, 64], strides = [1, 1]} : vector<20x64xf32> to vector<1x64xf32>
    %c5_232 = arith.constant 5 : index
    %c1152_233 = arith.constant 1152 : index
    %263 = vector.load %arg11[%c5_232, %c1152_233] : memref<8x1280xf32, #tpu.memory_space<vmem>>, vector<1x64xf32>
    tpu.vector_store %arg11[%c5_232, %c1152_233], %262 {strides = array<i32>} : memref<8x1280xf32, #tpu.memory_space<vmem>>, vector<1x64xf32>,
    %264 = vector.extract_strided_slice %225 {offsets = [19, 0], sizes = [1, 64], strides = [1, 1]} : vector<20x64xf32> to vector<1x64xf32>
    %c5_234 = arith.constant 5 : index
    %c1216_235 = arith.constant 1216 : index
    %265 = vector.load %arg11[%c5_234, %c1216_235] : memref<8x1280xf32, #tpu.memory_space<vmem>>, vector<1x64xf32>
    tpu.vector_store %arg11[%c5_234, %c1216_235], %264 {strides = array<i32>} : memref<8x1280xf32, #tpu.memory_space<vmem>>, vector<1x64xf32>,
    %266 = vector.extract_strided_slice %19 {offsets = [0, 384], sizes = [20, 64], strides = [1, 1]} : vector<20x512xf32> to vector<20x64xf32>
    %267 = vector.extract_strided_slice %266 {offsets = [0, 0], sizes = [1, 64], strides = [1, 1]} : vector<20x64xf32> to vector<1x64xf32>
    %c6 = arith.constant 6 : index
    %c0_236 = arith.constant 0 : index
    %268 = vector.load %arg11[%c6, %c0_236] : memref<8x1280xf32, #tpu.memory_space<vmem>>, vector<1x64xf32>
    tpu.vector_store %arg11[%c6, %c0_236], %267 {strides = array<i32>} : memref<8x1280xf32, #tpu.memory_space<vmem>>, vector<1x64xf32>,
    %269 = vector.extract_strided_slice %266 {offsets = [1, 0], sizes = [1, 64], strides = [1, 1]} : vector<20x64xf32> to vector<1x64xf32>
    %c6_237 = arith.constant 6 : index
    %c64_238 = arith.constant 64 : index
    %270 = vector.load %arg11[%c6_237, %c64_238] : memref<8x1280xf32, #tpu.memory_space<vmem>>, vector<1x64xf32>
    tpu.vector_store %arg11[%c6_237, %c64_238], %269 {strides = array<i32>} : memref<8x1280xf32, #tpu.memory_space<vmem>>, vector<1x64xf32>,
    %271 = vector.extract_strided_slice %266 {offsets = [2, 0], sizes = [1, 64], strides = [1, 1]} : vector<20x64xf32> to vector<1x64xf32>
    %c6_239 = arith.constant 6 : index
    %c128_240 = arith.constant 128 : index
    %272 = vector.load %arg11[%c6_239, %c128_240] : memref<8x1280xf32, #tpu.memory_space<vmem>>, vector<1x64xf32>
    tpu.vector_store %arg11[%c6_239, %c128_240], %271 {strides = array<i32>} : memref<8x1280xf32, #tpu.memory_space<vmem>>, vector<1x64xf32>,
    %273 = vector.extract_strided_slice %266 {offsets = [3, 0], sizes = [1, 64], strides = [1, 1]} : vector<20x64xf32> to vector<1x64xf32>
    %c6_241 = arith.constant 6 : index
    %c192_242 = arith.constant 192 : index
    %274 = vector.load %arg11[%c6_241, %c192_242] : memref<8x1280xf32, #tpu.memory_space<vmem>>, vector<1x64xf32>
    tpu.vector_store %arg11[%c6_241, %c192_242], %273 {strides = array<i32>} : memref<8x1280xf32, #tpu.memory_space<vmem>>, vector<1x64xf32>,
    %275 = vector.extract_strided_slice %266 {offsets = [4, 0], sizes = [1, 64], strides = [1, 1]} : vector<20x64xf32> to vector<1x64xf32>
    %c6_243 = arith.constant 6 : index
    %c256_244 = arith.constant 256 : index
    %276 = vector.load %arg11[%c6_243, %c256_244] : memref<8x1280xf32, #tpu.memory_space<vmem>>, vector<1x64xf32>
    tpu.vector_store %arg11[%c6_243, %c256_244], %275 {strides = array<i32>} : memref<8x1280xf32, #tpu.memory_space<vmem>>, vector<1x64xf32>,
    %277 = vector.extract_strided_slice %266 {offsets = [5, 0], sizes = [1, 64], strides = [1, 1]} : vector<20x64xf32> to vector<1x64xf32>
    %c6_245 = arith.constant 6 : index
    %c320_246 = arith.constant 320 : index
    %278 = vector.load %arg11[%c6_245, %c320_246] : memref<8x1280xf32, #tpu.memory_space<vmem>>, vector<1x64xf32>
    tpu.vector_store %arg11[%c6_245, %c320_246], %277 {strides = array<i32>} : memref<8x1280xf32, #tpu.memory_space<vmem>>, vector<1x64xf32>,
    %279 = vector.extract_strided_slice %266 {offsets = [6, 0], sizes = [1, 64], strides = [1, 1]} : vector<20x64xf32> to vector<1x64xf32>
    %c6_247 = arith.constant 6 : index
    %c384_248 = arith.constant 384 : index
    %280 = vector.load %arg11[%c6_247, %c384_248] : memref<8x1280xf32, #tpu.memory_space<vmem>>, vector<1x64xf32>
    tpu.vector_store %arg11[%c6_247, %c384_248], %279 {strides = array<i32>} : memref<8x1280xf32, #tpu.memory_space<vmem>>, vector<1x64xf32>,
    %281 = vector.extract_strided_slice %266 {offsets = [7, 0], sizes = [1, 64], strides = [1, 1]} : vector<20x64xf32> to vector<1x64xf32>
    %c6_249 = arith.constant 6 : index
    %c448_250 = arith.constant 448 : index
    %282 = vector.load %arg11[%c6_249, %c448_250] : memref<8x1280xf32, #tpu.memory_space<vmem>>, vector<1x64xf32>
    tpu.vector_store %arg11[%c6_249, %c448_250], %281 {strides = array<i32>} : memref<8x1280xf32, #tpu.memory_space<vmem>>, vector<1x64xf32>,
    %283 = vector.extract_strided_slice %266 {offsets = [8, 0], sizes = [1, 64], strides = [1, 1]} : vector<20x64xf32> to vector<1x64xf32>
    %c6_251 = arith.constant 6 : index
    %c512_252 = arith.constant 512 : index
    %284 = vector.load %arg11[%c6_251, %c512_252] : memref<8x1280xf32, #tpu.memory_space<vmem>>, vector<1x64xf32>
    tpu.vector_store %arg11[%c6_251, %c512_252], %283 {strides = array<i32>} : memref<8x1280xf32, #tpu.memory_space<vmem>>, vector<1x64xf32>,
    %285 = vector.extract_strided_slice %266 {offsets = [9, 0], sizes = [1, 64], strides = [1, 1]} : vector<20x64xf32> to vector<1x64xf32>
    %c6_253 = arith.constant 6 : index
    %c576_254 = arith.constant 576 : index
    %286 = vector.load %arg11[%c6_253, %c576_254] : memref<8x1280xf32, #tpu.memory_space<vmem>>, vector<1x64xf32>
    tpu.vector_store %arg11[%c6_253, %c576_254], %285 {strides = array<i32>} : memref<8x1280xf32, #tpu.memory_space<vmem>>, vector<1x64xf32>,
    %287 = vector.extract_strided_slice %266 {offsets = [10, 0], sizes = [1, 64], strides = [1, 1]} : vector<20x64xf32> to vector<1x64xf32>
    %c6_255 = arith.constant 6 : index
    %c640_256 = arith.constant 640 : index
    %288 = vector.load %arg11[%c6_255, %c640_256] : memref<8x1280xf32, #tpu.memory_space<vmem>>, vector<1x64xf32>
    tpu.vector_store %arg11[%c6_255, %c640_256], %287 {strides = array<i32>} : memref<8x1280xf32, #tpu.memory_space<vmem>>, vector<1x64xf32>,
    %289 = vector.extract_strided_slice %266 {offsets = [11, 0], sizes = [1, 64], strides = [1, 1]} : vector<20x64xf32> to vector<1x64xf32>
    %c6_257 = arith.constant 6 : index
    %c704_258 = arith.constant 704 : index
    %290 = vector.load %arg11[%c6_257, %c704_258] : memref<8x1280xf32, #tpu.memory_space<vmem>>, vector<1x64xf32>
    tpu.vector_store %arg11[%c6_257, %c704_258], %289 {strides = array<i32>} : memref<8x1280xf32, #tpu.memory_space<vmem>>, vector<1x64xf32>,
    %291 = vector.extract_strided_slice %266 {offsets = [12, 0], sizes = [1, 64], strides = [1, 1]} : vector<20x64xf32> to vector<1x64xf32>
    %c6_259 = arith.constant 6 : index
    %c768_260 = arith.constant 768 : index
    %292 = vector.load %arg11[%c6_259, %c768_260] : memref<8x1280xf32, #tpu.memory_space<vmem>>, vector<1x64xf32>
    tpu.vector_store %arg11[%c6_259, %c768_260], %291 {strides = array<i32>} : memref<8x1280xf32, #tpu.memory_space<vmem>>, vector<1x64xf32>,
    %293 = vector.extract_strided_slice %266 {offsets = [13, 0], sizes = [1, 64], strides = [1, 1]} : vector<20x64xf32> to vector<1x64xf32>
    %c6_261 = arith.constant 6 : index
    %c832_262 = arith.constant 832 : index
    %294 = vector.load %arg11[%c6_261, %c832_262] : memref<8x1280xf32, #tpu.memory_space<vmem>>, vector<1x64xf32>
    tpu.vector_store %arg11[%c6_261, %c832_262], %293 {strides = array<i32>} : memref<8x1280xf32, #tpu.memory_space<vmem>>, vector<1x64xf32>,
    %295 = vector.extract_strided_slice %266 {offsets = [14, 0], sizes = [1, 64], strides = [1, 1]} : vector<20x64xf32> to vector<1x64xf32>
    %c6_263 = arith.constant 6 : index
    %c896_264 = arith.constant 896 : index
    %296 = vector.load %arg11[%c6_263, %c896_264] : memref<8x1280xf32, #tpu.memory_space<vmem>>, vector<1x64xf32>
    tpu.vector_store %arg11[%c6_263, %c896_264], %295 {strides = array<i32>} : memref<8x1280xf32, #tpu.memory_space<vmem>>, vector<1x64xf32>,
    %297 = vector.extract_strided_slice %266 {offsets = [15, 0], sizes = [1, 64], strides = [1, 1]} : vector<20x64xf32> to vector<1x64xf32>
    %c6_265 = arith.constant 6 : index
    %c960_266 = arith.constant 960 : index
    %298 = vector.load %arg11[%c6_265, %c960_266] : memref<8x1280xf32, #tpu.memory_space<vmem>>, vector<1x64xf32>
    tpu.vector_store %arg11[%c6_265, %c960_266], %297 {strides = array<i32>} : memref<8x1280xf32, #tpu.memory_space<vmem>>, vector<1x64xf32>,
    %299 = vector.extract_strided_slice %266 {offsets = [16, 0], sizes = [1, 64], strides = [1, 1]} : vector<20x64xf32> to vector<1x64xf32>
    %c6_267 = arith.constant 6 : index
    %c1024_268 = arith.constant 1024 : index
    %300 = vector.load %arg11[%c6_267, %c1024_268] : memref<8x1280xf32, #tpu.memory_space<vmem>>, vector<1x64xf32>
    tpu.vector_store %arg11[%c6_267, %c1024_268], %299 {strides = array<i32>} : memref<8x1280xf32, #tpu.memory_space<vmem>>, vector<1x64xf32>,
    %301 = vector.extract_strided_slice %266 {offsets = [17, 0], sizes = [1, 64], strides = [1, 1]} : vector<20x64xf32> to vector<1x64xf32>
    %c6_269 = arith.constant 6 : index
    %c1088_270 = arith.constant 1088 : index
    %302 = vector.load %arg11[%c6_269, %c1088_270] : memref<8x1280xf32, #tpu.memory_space<vmem>>, vector<1x64xf32>
    tpu.vector_store %arg11[%c6_269, %c1088_270], %301 {strides = array<i32>} : memref<8x1280xf32, #tpu.memory_space<vmem>>, vector<1x64xf32>,
    %303 = vector.extract_strided_slice %266 {offsets = [18, 0], sizes = [1, 64], strides = [1, 1]} : vector<20x64xf32> to vector<1x64xf32>
    %c6_271 = arith.constant 6 : index
    %c1152_272 = arith.constant 1152 : index
    %304 = vector.load %arg11[%c6_271, %c1152_272] : memref<8x1280xf32, #tpu.memory_space<vmem>>, vector<1x64xf32>
    tpu.vector_store %arg11[%c6_271, %c1152_272], %303 {strides = array<i32>} : memref<8x1280xf32, #tpu.memory_space<vmem>>, vector<1x64xf32>,
    %305 = vector.extract_strided_slice %266 {offsets = [19, 0], sizes = [1, 64], strides = [1, 1]} : vector<20x64xf32> to vector<1x64xf32>
    %c6_273 = arith.constant 6 : index
    %c1216_274 = arith.constant 1216 : index
    %306 = vector.load %arg11[%c6_273, %c1216_274] : memref<8x1280xf32, #tpu.memory_space<vmem>>, vector<1x64xf32>
    tpu.vector_store %arg11[%c6_273, %c1216_274], %305 {strides = array<i32>} : memref<8x1280xf32, #tpu.memory_space<vmem>>, vector<1x64xf32>,
    %307 = vector.extract_strided_slice %19 {offsets = [0, 448], sizes = [20, 64], strides = [1, 1]} : vector<20x512xf32> to vector<20x64xf32>
    %308 = vector.extract_strided_slice %307 {offsets = [0, 0], sizes = [1, 64], strides = [1, 1]} : vector<20x64xf32> to vector<1x64xf32>
    %c7 = arith.constant 7 : index
    %c0_275 = arith.constant 0 : index
    %309 = vector.load %arg11[%c7, %c0_275] : memref<8x1280xf32, #tpu.memory_space<vmem>>, vector<1x64xf32>
    tpu.vector_store %arg11[%c7, %c0_275], %308 {strides = array<i32>} : memref<8x1280xf32, #tpu.memory_space<vmem>>, vector<1x64xf32>,
    %310 = vector.extract_strided_slice %307 {offsets = [1, 0], sizes = [1, 64], strides = [1, 1]} : vector<20x64xf32> to vector<1x64xf32>
    %c7_276 = arith.constant 7 : index
    %c64_277 = arith.constant 64 : index
    %311 = vector.load %arg11[%c7_276, %c64_277] : memref<8x1280xf32, #tpu.memory_space<vmem>>, vector<1x64xf32>
    tpu.vector_store %arg11[%c7_276, %c64_277], %310 {strides = array<i32>} : memref<8x1280xf32, #tpu.memory_space<vmem>>, vector<1x64xf32>,
    %312 = vector.extract_strided_slice %307 {offsets = [2, 0], sizes = [1, 64], strides = [1, 1]} : vector<20x64xf32> to vector<1x64xf32>
    %c7_278 = arith.constant 7 : index
    %c128_279 = arith.constant 128 : index
    %313 = vector.load %arg11[%c7_278, %c128_279] : memref<8x1280xf32, #tpu.memory_space<vmem>>, vector<1x64xf32>
    tpu.vector_store %arg11[%c7_278, %c128_279], %312 {strides = array<i32>} : memref<8x1280xf32, #tpu.memory_space<vmem>>, vector<1x64xf32>,
    %314 = vector.extract_strided_slice %307 {offsets = [3, 0], sizes = [1, 64], strides = [1, 1]} : vector<20x64xf32> to vector<1x64xf32>
    %c7_280 = arith.constant 7 : index
    %c192_281 = arith.constant 192 : index
    %315 = vector.load %arg11[%c7_280, %c192_281] : memref<8x1280xf32, #tpu.memory_space<vmem>>, vector<1x64xf32>
    tpu.vector_store %arg11[%c7_280, %c192_281], %314 {strides = array<i32>} : memref<8x1280xf32, #tpu.memory_space<vmem>>, vector<1x64xf32>,
    %316 = vector.extract_strided_slice %307 {offsets = [4, 0], sizes = [1, 64], strides = [1, 1]} : vector<20x64xf32> to vector<1x64xf32>
    %c7_282 = arith.constant 7 : index
    %c256_283 = arith.constant 256 : index
    %317 = vector.load %arg11[%c7_282, %c256_283] : memref<8x1280xf32, #tpu.memory_space<vmem>>, vector<1x64xf32>
    tpu.vector_store %arg11[%c7_282, %c256_283], %316 {strides = array<i32>} : memref<8x1280xf32, #tpu.memory_space<vmem>>, vector<1x64xf32>,
    %318 = vector.extract_strided_slice %307 {offsets = [5, 0], sizes = [1, 64], strides = [1, 1]} : vector<20x64xf32> to vector<1x64xf32>
    %c7_284 = arith.constant 7 : index
    %c320_285 = arith.constant 320 : index
    %319 = vector.load %arg11[%c7_284, %c320_285] : memref<8x1280xf32, #tpu.memory_space<vmem>>, vector<1x64xf32>
    tpu.vector_store %arg11[%c7_284, %c320_285], %318 {strides = array<i32>} : memref<8x1280xf32, #tpu.memory_space<vmem>>, vector<1x64xf32>,
    %320 = vector.extract_strided_slice %307 {offsets = [6, 0], sizes = [1, 64], strides = [1, 1]} : vector<20x64xf32> to vector<1x64xf32>
    %c7_286 = arith.constant 7 : index
    %c384_287 = arith.constant 384 : index
    %321 = vector.load %arg11[%c7_286, %c384_287] : memref<8x1280xf32, #tpu.memory_space<vmem>>, vector<1x64xf32>
    tpu.vector_store %arg11[%c7_286, %c384_287], %320 {strides = array<i32>} : memref<8x1280xf32, #tpu.memory_space<vmem>>, vector<1x64xf32>,
    %322 = vector.extract_strided_slice %307 {offsets = [7, 0], sizes = [1, 64], strides = [1, 1]} : vector<20x64xf32> to vector<1x64xf32>
    %c7_288 = arith.constant 7 : index
    %c448_289 = arith.constant 448 : index
    %323 = vector.load %arg11[%c7_288, %c448_289] : memref<8x1280xf32, #tpu.memory_space<vmem>>, vector<1x64xf32>
    tpu.vector_store %arg11[%c7_288, %c448_289], %322 {strides = array<i32>} : memref<8x1280xf32, #tpu.memory_space<vmem>>, vector<1x64xf32>,
    %324 = vector.extract_strided_slice %307 {offsets = [8, 0], sizes = [1, 64], strides = [1, 1]} : vector<20x64xf32> to vector<1x64xf32>
    %c7_290 = arith.constant 7 : index
    %c512_291 = arith.constant 512 : index
    %325 = vector.load %arg11[%c7_290, %c512_291] : memref<8x1280xf32, #tpu.memory_space<vmem>>, vector<1x64xf32>
    tpu.vector_store %arg11[%c7_290, %c512_291], %324 {strides = array<i32>} : memref<8x1280xf32, #tpu.memory_space<vmem>>, vector<1x64xf32>,
    %326 = vector.extract_strided_slice %307 {offsets = [9, 0], sizes = [1, 64], strides = [1, 1]} : vector<20x64xf32> to vector<1x64xf32>
    %c7_292 = arith.constant 7 : index
    %c576_293 = arith.constant 576 : index
    %327 = vector.load %arg11[%c7_292, %c576_293] : memref<8x1280xf32, #tpu.memory_space<vmem>>, vector<1x64xf32>
    tpu.vector_store %arg11[%c7_292, %c576_293], %326 {strides = array<i32>} : memref<8x1280xf32, #tpu.memory_space<vmem>>, vector<1x64xf32>,
    %328 = vector.extract_strided_slice %307 {offsets = [10, 0], sizes = [1, 64], strides = [1, 1]} : vector<20x64xf32> to vector<1x64xf32>
    %c7_294 = arith.constant 7 : index
    %c640_295 = arith.constant 640 : index
    %329 = vector.load %arg11[%c7_294, %c640_295] : memref<8x1280xf32, #tpu.memory_space<vmem>>, vector<1x64xf32>
    tpu.vector_store %arg11[%c7_294, %c640_295], %328 {strides = array<i32>} : memref<8x1280xf32, #tpu.memory_space<vmem>>, vector<1x64xf32>,
    %330 = vector.extract_strided_slice %307 {offsets = [11, 0], sizes = [1, 64], strides = [1, 1]} : vector<20x64xf32> to vector<1x64xf32>
    %c7_296 = arith.constant 7 : index
    %c704_297 = arith.constant 704 : index
    %331 = vector.load %arg11[%c7_296, %c704_297] : memref<8x1280xf32, #tpu.memory_space<vmem>>, vector<1x64xf32>
    tpu.vector_store %arg11[%c7_296, %c704_297], %330 {strides = array<i32>} : memref<8x1280xf32, #tpu.memory_space<vmem>>, vector<1x64xf32>,
    %332 = vector.extract_strided_slice %307 {offsets = [12, 0], sizes = [1, 64], strides = [1, 1]} : vector<20x64xf32> to vector<1x64xf32>
    %c7_298 = arith.constant 7 : index
    %c768_299 = arith.constant 768 : index
    %333 = vector.load %arg11[%c7_298, %c768_299] : memref<8x1280xf32, #tpu.memory_space<vmem>>, vector<1x64xf32>
    tpu.vector_store %arg11[%c7_298, %c768_299], %332 {strides = array<i32>} : memref<8x1280xf32, #tpu.memory_space<vmem>>, vector<1x64xf32>,
    %334 = vector.extract_strided_slice %307 {offsets = [13, 0], sizes = [1, 64], strides = [1, 1]} : vector<20x64xf32> to vector<1x64xf32>
    %c7_300 = arith.constant 7 : index
    %c832_301 = arith.constant 832 : index
    %335 = vector.load %arg11[%c7_300, %c832_301] : memref<8x1280xf32, #tpu.memory_space<vmem>>, vector<1x64xf32>
    tpu.vector_store %arg11[%c7_300, %c832_301], %334 {strides = array<i32>} : memref<8x1280xf32, #tpu.memory_space<vmem>>, vector<1x64xf32>,
    %336 = vector.extract_strided_slice %307 {offsets = [14, 0], sizes = [1, 64], strides = [1, 1]} : vector<20x64xf32> to vector<1x64xf32>
    %c7_302 = arith.constant 7 : index
    %c896_303 = arith.constant 896 : index
    %337 = vector.load %arg11[%c7_302, %c896_303] : memref<8x1280xf32, #tpu.memory_space<vmem>>, vector<1x64xf32>
    tpu.vector_store %arg11[%c7_302, %c896_303], %336 {strides = array<i32>} : memref<8x1280xf32, #tpu.memory_space<vmem>>, vector<1x64xf32>,
    %338 = vector.extract_strided_slice %307 {offsets = [15, 0], sizes = [1, 64], strides = [1, 1]} : vector<20x64xf32> to vector<1x64xf32>
    %c7_304 = arith.constant 7 : index
    %c960_305 = arith.constant 960 : index
    %339 = vector.load %arg11[%c7_304, %c960_305] : memref<8x1280xf32, #tpu.memory_space<vmem>>, vector<1x64xf32>
    tpu.vector_store %arg11[%c7_304, %c960_305], %338 {strides = array<i32>} : memref<8x1280xf32, #tpu.memory_space<vmem>>, vector<1x64xf32>,
    %340 = vector.extract_strided_slice %307 {offsets = [16, 0], sizes = [1, 64], strides = [1, 1]} : vector<20x64xf32> to vector<1x64xf32>
    %c7_306 = arith.constant 7 : index
    %c1024_307 = arith.constant 1024 : index
    %341 = vector.load %arg11[%c7_306, %c1024_307] : memref<8x1280xf32, #tpu.memory_space<vmem>>, vector<1x64xf32>
    tpu.vector_store %arg11[%c7_306, %c1024_307], %340 {strides = array<i32>} : memref<8x1280xf32, #tpu.memory_space<vmem>>, vector<1x64xf32>,
    %342 = vector.extract_strided_slice %307 {offsets = [17, 0], sizes = [1, 64], strides = [1, 1]} : vector<20x64xf32> to vector<1x64xf32>
    %c7_308 = arith.constant 7 : index
    %c1088_309 = arith.constant 1088 : index
    %343 = vector.load %arg11[%c7_308, %c1088_309] : memref<8x1280xf32, #tpu.memory_space<vmem>>, vector<1x64xf32>
    tpu.vector_store %arg11[%c7_308, %c1088_309], %342 {strides = array<i32>} : memref<8x1280xf32, #tpu.memory_space<vmem>>, vector<1x64xf32>,
    %344 = vector.extract_strided_slice %307 {offsets = [18, 0], sizes = [1, 64], strides = [1, 1]} : vector<20x64xf32> to vector<1x64xf32>
    %c7_310 = arith.constant 7 : index
    %c1152_311 = arith.constant 1152 : index
    %345 = vector.load %arg11[%c7_310, %c1152_311] : memref<8x1280xf32, #tpu.memory_space<vmem>>, vector<1x64xf32>
    tpu.vector_store %arg11[%c7_310, %c1152_311], %344 {strides = array<i32>} : memref<8x1280xf32, #tpu.memory_space<vmem>>, vector<1x64xf32>,
    %346 = vector.extract_strided_slice %307 {offsets = [19, 0], sizes = [1, 64], strides = [1, 1]} : vector<20x64xf32> to vector<1x64xf32>
    %c7_312 = arith.constant 7 : index
    %c1216_313 = arith.constant 1216 : index
    %347 = vector.load %arg11[%c7_312, %c1216_313] : memref<8x1280xf32, #tpu.memory_space<vmem>>, vector<1x64xf32>
    tpu.vector_store %arg11[%c7_312, %c1216_313], %346 {strides = array<i32>} : memref<8x1280xf32, #tpu.memory_space<vmem>>, vector<1x64xf32>,
    %c0_314 = arith.constant 0 : index
    %c0_315 = arith.constant 0 : index
    %348 = vector.load %arg11[%c0_314, %c0_315] : memref<8x1280xf32, #tpu.memory_space<vmem>>, vector<8x1280xf32>
    %c0_316 = arith.constant 0 : index
    %c0_317 = arith.constant 0 : index
    %349 = vector.load %arg4[%c0_316, %c0_317] : memref<1280x320xf32, #tpu.memory_space<vmem>>, vector<1280x320xf32>
    %cst_318 = arith.constant dense<0.000000e+00> : vector<8x320xf32>
    %350 = tpu.matmul %348, %349, %cst_318 {dimension_numbers = #tpu.dot_dimension_numbers<[1], [0], [0], [1], [0, 0, 1, 1], [], []>} : vector<8x1280xf32>, vector<1280x320xf32>, vector<8x320xf32> -> vector<8x320xf32>
    %c0_319 = arith.constant 0 : index
    %c0_320 = arith.constant 0 : index
    %351 = vector.load %arg5[%c0_319, %c0_320] : memref<1x320xf32, #tpu.memory_space<vmem>>, vector<1x320xf32>
    %352 = vector.broadcast %351 : vector<1x320xf32> to vector<8x320xf32>
    %353 = arith.addf %350, %352 : vector<8x320xf32>
    %cst_321 = arith.constant 0.000000e+00 : f32
    %354 = vector.broadcast %cst_321 : f32 to vector<8x320xf32>
    %355 = arith.maximumf %353, %354 : vector<8x320xf32>
    %c0_322 = arith.constant 0 : index
    %c0_323 = arith.constant 0 : index
    %356 = vector.load %arg6[%c0_322, %c0_323] : memref<320x32xf32, #tpu.memory_space<vmem>>, vector<320x32xf32>
    %cst_324 = arith.constant dense<0.000000e+00> : vector<8x32xf32>
    %357 = tpu.matmul %355, %356, %cst_324 {dimension_numbers = #tpu.dot_dimension_numbers<[1], [0], [0], [1], [0, 0, 1, 1], [], []>} : vector<8x320xf32>, vector<320x32xf32>, vector<8x32xf32> -> vector<8x32xf32>
    %c0_325 = arith.constant 0 : index
    %c0_326 = arith.constant 0 : index
    %358 = vector.load %arg7[%c0_325, %c0_326] : memref<1x32xf32, #tpu.memory_space<vmem>>, vector<1x32xf32>
    %359 = vector.broadcast %358 : vector<1x32xf32> to vector<8x32xf32>
    %360 = arith.addf %357, %359 : vector<8x32xf32>
    %cst_327 = arith.constant 0.000000e+00 : f32
    %361 = vector.broadcast %cst_327 : f32 to vector<8x32xf32>
    %362 = arith.maximumf %360, %361 : vector<8x32xf32>
    %c0_328 = arith.constant 0 : index
    %c0_329 = arith.constant 0 : index
    %363 = vector.load %arg8[%c0_328, %c0_329] : memref<32x32xf32, #tpu.memory_space<vmem>>, vector<32x32xf32>
    %cst_330 = arith.constant dense<0.000000e+00> : vector<8x32xf32>
    %364 = tpu.matmul %362, %363, %cst_330 {dimension_numbers = #tpu.dot_dimension_numbers<[1], [0], [0], [1], [0, 0, 1, 1], [], []>} : vector<8x32xf32>, vector<32x32xf32>, vector<8x32xf32> -> vector<8x32xf32>
    %c0_331 = arith.constant 0 : index
    %c0_332 = arith.constant 0 : index
    %365 = vector.load %arg9[%c0_331, %c0_332] : memref<1x32xf32, #tpu.memory_space<vmem>>, vector<1x32xf32>
    %366 = vector.broadcast %365 : vector<1x32xf32> to vector<8x32xf32>
    %367 = arith.addf %364, %366 : vector<8x32xf32>
    %c0_333 = arith.constant 0 : index
    %c0_334 = arith.constant 0 : index
    %368 = vector.load %arg10[%c0_333, %c0_334] : memref<8x32xf32, #tpu.memory_space<vmem>>, vector<8x32xf32>
    tpu.vector_store %arg10[%c0_333, %c0_334], %367 {strides = array<i32>} : memref<8x32xf32, #tpu.memory_space<vmem>>, vector<8x32xf32>,
    return
  }
  func.func @transform_0(%arg0: i32) -> (i32, i32) {
    %c0_i32 = arith.constant 0 : i32
    %c0_i32_0 = arith.constant 0 : i32
    return %c0_i32, %arg0 : i32, i32
  }
  func.func @transform_1(%arg0: i32) -> (i32, i32) {
    %c0_i32 = arith.constant 0 : i32
    %c0_i32_0 = arith.constant 0 : i32
    %c0_i32_1 = arith.constant 0 : i32
    return %c0_i32, %c0_i32_0 : i32, i32
  }
  func.func @transform_2(%arg0: i32) -> (i32, i32) {
    %c0_i32 = arith.constant 0 : i32
    %c0_i32_0 = arith.constant 0 : i32
    %c0_i32_1 = arith.constant 0 : i32
    return %c0_i32, %c0_i32_0 : i32, i32
  }
  func.func @transform_3(%arg0: i32) -> (i32, i32) {
    %c0_i32 = arith.constant 0 : i32
    %c0_i32_0 = arith.constant 0 : i32
    %c0_i32_1 = arith.constant 0 : i32
    return %c0_i32, %c0_i32_0 : i32, i32
  }
  func.func @transform_4(%arg0: i32) -> (i32, i32) {
    %c0_i32 = arith.constant 0 : i32
    %c0_i32_0 = arith.constant 0 : i32
    %c0_i32_1 = arith.constant 0 : i32
    return %c0_i32, %c0_i32_0 : i32, i32
  }
  func.func @transform_5(%arg0: i32) -> (i32, i32) {
    %c0_i32 = arith.constant 0 : i32
    %c0_i32_0 = arith.constant 0 : i32
    %c0_i32_1 = arith.constant 0 : i32
    return %c0_i32, %c0_i32_0 : i32, i32
  }
  func.func @transform_6(%arg0: i32) -> (i32, i32) {
    %c0_i32 = arith.constant 0 : i32
    %c0_i32_0 = arith.constant 0 : i32
    %c0_i32_1 = arith.constant 0 : i32
    return %c0_i32, %c0_i32_0 : i32, i32
  }
  func.func @transform_7(%arg0: i32) -> (i32, i32) {
    %c0_i32 = arith.constant 0 : i32
    %c0_i32_0 = arith.constant 0 : i32
    %c0_i32_1 = arith.constant 0 : i32
    return %c0_i32, %c0_i32_0 : i32, i32
  }
  func.func @transform_8(%arg0: i32) -> (i32, i32) {
    %c0_i32 = arith.constant 0 : i32
    %c0_i32_0 = arith.constant 0 : i32
    %c0_i32_1 = arith.constant 0 : i32
    return %c0_i32, %c0_i32_0 : i32, i32
  }
  func.func @transform_9(%arg0: i32) -> (i32, i32) {
    %c0_i32 = arith.constant 0 : i32
    %c0_i32_0 = arith.constant 0 : i32
    return %arg0, %c0_i32 : i32, i32
  }
}

</mosaic_0001>

<llo_original>
// kernel: _forward_impl.1
$region0: #{_forward_impl.1}
  #allocation0 [shape = 'u32[]', space=smem, size = 0x4, offset = 0x4, fixed_abs, tag = 'smem constant byte address 0x4 - core index']
  #allocation1 [shape = 'u32[144,128]{1,0:T(1,128)}', space=vmem, size = 0x12000, scoped, tag = 'internal scratch']
  #allocation2 [shape = 'f32[8,1280]{1,0:T(8,128)}', space=vmem, size = 0xa000, scoped, tag = 'scratch operand']
  %s0 = inlined_call_operand.vmem [shape: f32[50,4096], index: 0, kind: input, shape index: {}]
  %s1 = inlined_call_operand.vmem [shape: f32[20,50], index: 1, kind: input, shape index: {}]
  %s2 = inlined_call_operand.vmem [shape: f32[20,1], index: 2, kind: input, shape index: {}]
  %s3 = inlined_call_operand.vmem [shape: f32[1280,320], index: 3, kind: input, shape index: {}]
  %s4 = inlined_call_operand.vmem [shape: f32[1,320], index: 4, kind: input, shape index: {}]
  %s5 = inlined_call_operand.vmem [shape: f32[320,32], index: 5, kind: input, shape index: {}]
  %s6 = inlined_call_operand.vmem [shape: f32[1,32], index: 6, kind: input, shape index: {}]
  %s7 = inlined_call_operand.vmem [shape: f32[32,32], index: 7, kind: input, shape index: {}]
  %s8 = inlined_call_operand.vmem [shape: f32[1,32], index: 8, kind: input, shape index: {}]
  %s9 = inlined_call_operand.vmem [shape: f32[16,32], index: 9, kind: output, shape index: {}]
  %s10 = sld [smem:[#allocation0]]
  $region92: #{_forward_impl.1} parent=0
    _
  %s12 = ssub.s32 1, %s10
  %s13 = scalar_select 0, %s12, %s10
  $region1: #{_forward_impl.1} parent=0
    #allocation3 [shape = 'u8[917504]{0}', space=vmem, size = 0xe0000, scoped, tag = 'input window, operand 0']
    loop: start=0, step=1, limit=4
    $region2: #{_forward_impl.1} parent=1 // loop_pre_header
      _
    $region3: #{_forward_impl.1} parent=1 // loop_header
      %s15 = sphi 0, %s19
      %p16 = scmp.ge.s32.totalorder %s15, 4
      %s25 = sphi 0, %s27
      %s28 = sphi 0, %s25
      %s29 = sphi 0, %s28
      %s45 = sphi 0, %s29
      %s49 = sphi 0, %s49
      %s51 = sphi 0, %s49
      %s52 = sphi 0, %s51
      %s66 = sphi 0, %s52
      %s70 = sphi 0, %s70
      %s72 = sphi 0, %s70
      %s73 = sphi 0, %s72
      %s87 = sphi 0, %s73
      %s91 = sphi 0, %s91
      %s93 = sphi 0, %s91
      %s94 = sphi 0, %s93
      %s108 = sphi 0, %s94
      %s112 = sphi 0, %s112
      %s114 = sphi 0, %s112
      %s115 = sphi 0, %s114
      %s129 = sphi 0, %s115
      %s133 = sphi 0, %s133
      %s135 = sphi 0, %s133
      %s136 = sphi 0, %s135
      %s150 = sphi 0, %s136
      %s154 = sphi 0, %s154
      %s156 = sphi 0, %s154
      %s157 = sphi 0, %s156
      %s171 = sphi 0, %s157
      %s175 = sphi 0, %s175
      %s177 = sphi 0, %s175
      %s178 = sphi 0, %s177
      %s192 = sphi 0, %s178
      %s196 = sphi 0, %s196
      %s198 = sphi 0, %s196
      %s199 = sphi 0, %s198
      %s213 = sphi 0, %s199
      %s219 = sphi 0, %s221
      %s222 = sphi 0, %s219
      %s223 = sphi 0, %s222
      %s239 = sphi 0, %s223
    $region4: #{_forward_impl.1} parent=1 // loop_header_branch
      %18 = sbr.rel (%p16) target = $region8
    $region5: #{_forward_impl.1} parent=1 // loop_body
      %s20 = ssub.s32 %s15, 1
      %s21 = ssub.s32 %s15, 2
      %s22 = sadd.s32 %s15, 1
      %s23 = ssub.s32 %s15, %s22
      %p24 = scmp.eq.s32.totalorder %s23, 0
      %s26 = sadd.s32 %s25, 1
      %s27 = scalar_select %p24, %s25, %s26
      %p30 = pneg %p24
      %p31 = scmp.eq.s32.totalorder %s15, 1
      %p32 = por %p30, %p31
      %p33 = scmp.ne.s32.totalorder %s25, %s28
      %p34 = scmp.eq.s32.totalorder %s15, 0
      %p35 = por %p33, %p34
      %p36 = scmp.ne.s32.totalorder %s25, %s28
      %p37 = scmp.eq.s32.totalorder %s20, 1
      %p38 = por %p36, %p37
      %p39 = scmp.ne.s32.totalorder %s28, %s29
      %p40 = scmp.eq.s32.totalorder %s20, 0
      %p41 = por %p39, %p40
      %p42 = scmp.ne.s32.totalorder %s28, %s29
      %p43 = scmp.eq.s32.totalorder %s21, 1
      %p44 = por %p42, %p43
      %p46 = scmp.ne.s32.totalorder %s29, %s45
      %p47 = scmp.eq.s32.totalorder %s21, 0
      %p48 = por %p46, %p47
      %s50 = sadd.s32 %s49, 1
      %p53 = scmp.eq.s32.totalorder %s15, 1
      %p54 = scmp.ne.s32.totalorder %s49, %s51
      %p55 = scmp.eq.s32.totalorder %s15, 0
      %p56 = por %p54, %p55
      %p57 = scmp.ne.s32.totalorder %s49, %s51
      %p58 = scmp.eq.s32.totalorder %s20, 1
      %p59 = por %p57, %p58
      %p60 = scmp.ne.s32.totalorder %s51, %s52
      %p61 = scmp.eq.s32.totalorder %s20, 0
      %p62 = por %p60, %p61
      %p63 = scmp.ne.s32.totalorder %s51, %s52
      %p64 = scmp.eq.s32.totalorder %s21, 1
      %p65 = por %p63, %p64
      %p67 = scmp.ne.s32.totalorder %s52, %s66
      %p68 = scmp.eq.s32.totalorder %s21, 0
      %p69 = por %p67, %p68
      %s71 = sadd.s32 %s70, 1
      %p74 = scmp.eq.s32.totalorder %s15, 1
      %p75 = scmp.ne.s32.totalorder %s70, %s72
      %p76 = scmp.eq.s32.totalorder %s15, 0
      %p77 = por %p75, %p76
      %p78 = scmp.ne.s32.totalorder %s70, %s72
      %p79 = scmp.eq.s32.totalorder %s20, 1
      %p80 = por %p78, %p79
      %p81 = scmp.ne.s32.totalorder %s72, %s73
      %p82 = scmp.eq.s32.totalorder %s20, 0
      %p83 = por %p81, %p82
      %p84 = scmp.ne.s32.totalorder %s72, %s73
      %p85 = scmp.eq.s32.totalorder %s21, 1
      %p86 = por %p84, %p85
      %p88 = scmp.ne.s32.totalorder %s73, %s87
      %p89 = scmp.eq.s32.totalorder %s21, 0
      %p90 = por %p88, %p89
      %s92 = sadd.s32 %s91, 1
      %p95 = scmp.eq.s32.totalorder %s15, 1
      %p96 = scmp.ne.s32.totalorder %s91, %s93
      %p97 = scmp.eq.s32.totalorder %s15, 0
      %p98 = por %p96, %p97
      %p99 = scmp.ne.s32.totalorder %s91, %s93
      %p100 = scmp.eq.s32.totalorder %s20, 1
      %p101 = por %p99, %p100
      %p102 = scmp.ne.s32.totalorder %s93, %s94
      %p103 = scmp.eq.s32.totalorder %s20, 0
      %p104 = por %p102, %p103
      %p105 = scmp.ne.s32.totalorder %s93, %s94
      %p106 = scmp.eq.s32.totalorder %s21, 1
      %p107 = por %p105, %p106
      %p109 = scmp.ne.s32.totalorder %s94, %s108
      %p110 = scmp.eq.s32.totalorder %s21, 0
      %p111 = por %p109, %p110
      %s113 = sadd.s32 %s112, 1
      %p116 = scmp.eq.s32.totalorder %s15, 1
      %p117 = scmp.ne.s32.totalorder %s112, %s114
      %p118 = scmp.eq.s32.totalorder %s15, 0
      %p119 = por %p117, %p118
      %p120 = scmp.ne.s32.totalorder %s112, %s114
      %p121 = scmp.eq.s32.totalorder %s20, 1
      %p122 = por %p120, %p121
      %p123 = scmp.ne.s32.totalorder %s114, %s115
      %p124 = scmp.eq.s32.totalorder %s20, 0
      %p125 = por %p123, %p124
      %p126 = scmp.ne.s32.totalorder %s114, %s115
      %p127 = scmp.eq.s32.totalorder %s21, 1
      %p128 = por %p126, %p127
      %p130 = scmp.ne.s32.totalorder %s115, %s129
      %p131 = scmp.eq.s32.totalorder %s21, 0
      %p132 = por %p130, %p131
      %s134 = sadd.s32 %s133, 1
      %p137 = scmp.eq.s32.totalorder %s15, 1
      %p138 = scmp.ne.s32.totalorder %s133, %s135
      %p139 = scmp.eq.s32.totalorder %s15, 0
      %p140 = por %p138, %p139
      %p141 = scmp.ne.s32.totalorder %s133, %s135
      %p142 = scmp.eq.s32.totalorder %s20, 1
      %p143 = por %p141, %p142
      %p144 = scmp.ne.s32.totalorder %s135, %s136
      %p145 = scmp.eq.s32.totalorder %s20, 0
      %p146 = por %p144, %p145
      %p147 = scmp.ne.s32.totalorder %s135, %s136
      %p148 = scmp.eq.s32.totalorder %s21, 1
      %p149 = por %p147, %p148
      %p151 = scmp.ne.s32.totalorder %s136, %s150
      %p152 = scmp.eq.s32.totalorder %s21, 0
      %p153 = por %p151, %p152
      %s155 = sadd.s32 %s154, 1
      %p158 = scmp.eq.s32.totalorder %s15, 1
      %p159 = scmp.ne.s32.totalorder %s154, %s156
      %p160 = scmp.eq.s32.totalorder %s15, 0
      %p161 = por %p159, %p160
      %p162 = scmp.ne.s32.totalorder %s154, %s156
      %p163 = scmp.eq.s32.totalorder %s20, 1
      %p164 = por %p162, %p163
      %p165 = scmp.ne.s32.totalorder %s156, %s157
      %p166 = scmp.eq.s32.totalorder %s20, 0
      %p167 = por %p165, %p166
      %p168 = scmp.ne.s32.totalorder %s156, %s157
      %p169 = scmp.eq.s32.totalorder %s21, 1
      %p170 = por %p168, %p169
      %p172 = scmp.ne.s32.totalorder %s157, %s171
      %p173 = scmp.eq.s32.totalorder %s21, 0
      %p174 = por %p172, %p173
      %s176 = sadd.s32 %s175, 1
      %p179 = scmp.eq.s32.totalorder %s15, 1
      %p180 = scmp.ne.s32.totalorder %s175, %s177
      %p181 = scmp.eq.s32.totalorder %s15, 0
      %p182 = por %p180, %p181
      %p183 = scmp.ne.s32.totalorder %s175, %s177
      %p184 = scmp.eq.s32.totalorder %s20, 1
      %p185 = por %p183, %p184
      %p186 = scmp.ne.s32.totalorder %s177, %s178
      %p187 = scmp.eq.s32.totalorder %s20, 0
      %p188 = por %p186, %p187
      %p189 = scmp.ne.s32.totalorder %s177, %s178
      %p190 = scmp.eq.s32.totalorder %s21, 1
      %p191 = por %p189, %p190
      %p193 = scmp.ne.s32.totalorder %s178, %s192
      %p194 = scmp.eq.s32.totalorder %s21, 0
      %p195 = por %p193, %p194
      %s197 = sadd.s32 %s196, 1
      %p200 = scmp.eq.s32.totalorder %s15, 1
      %p201 = scmp.ne.s32.totalorder %s196, %s198
      %p202 = scmp.eq.s32.totalorder %s15, 0
      %p203 = por %p201, %p202
      %p204 = scmp.ne.s32.totalorder %s196, %s198
      %p205 = scmp.eq.s32.totalorder %s20, 1
      %p206 = por %p204, %p205
      %p207 = scmp.ne.s32.totalorder %s198, %s199
      %p208 = scmp.eq.s32.totalorder %s20, 0
      %p209 = por %p207, %p208
      %p210 = scmp.ne.s32.totalorder %s198, %s199
      %p211 = scmp.eq.s32.totalorder %s21, 1
      %p212 = por %p210, %p211
      %p214 = scmp.ne.s32.totalorder %s199, %s213
      %p215 = scmp.eq.s32.totalorder %s21, 0
      %p216 = por %p214, %p215
      %s217 = ssub.s32 %s15, %s22
      %p218 = scmp.eq.s32.totalorder %s217, 0
      %s220 = sadd.s32 %s219, 1
      %s221 = scalar_select %p218, %s219, %s220
      %p224 = pneg %p218
      %p225 = scmp.eq.s32.totalorder %s15, 1
      %p226 = por %p224, %p225
      %p227 = scmp.ne.s32.totalorder %s219, %s222
      %p228 = scmp.eq.s32.totalorder %s15, 0
      %p229 = por %p227, %p228
      %p230 = scmp.ne.s32.totalorder %s219, %s222
      %p231 = scmp.eq.s32.totalorder %s20, 1
      %p232 = por %p230, %p231
      %p233 = scmp.ne.s32.totalorder %s222, %s223
      %p234 = scmp.eq.s32.totalorder %s20, 0
      %p235 = por %p233, %p234
      %p236 = scmp.ne.s32.totalorder %s222, %s223
      %p237 = scmp.eq.s32.totalorder %s21, 1
      %p238 = por %p236, %p237
      %p240 = scmp.ne.s32.totalorder %s223, %s239
      %p241 = scmp.eq.s32.totalorder %s21, 0
      %p242 = por %p240, %p241
      %p243 = scmp.le.s32.totalorder 1, %s15
      %p244 = scmp.lt.s32.totalorder %s15, 3
      %p245 = pnand %p243, %p244
      %p246 = pneg %p245
      // Predicated region
      $region9: #{_forward_impl.1} parent=5 // pred_check
        _
      $region10: #{_forward_impl.1} parent=5 // pred_check_branch
        %248 = sbr.rel (%p245) target = $region12
      $region11: #{_forward_impl.1} parent=5 // pred_region
        %s249 = ssub.s32 %s15, 1
        // Predicated region
        $region13: #{_forward_impl.1} parent=11 // pred_check
          %p250 = pneg %p62
        $region14: #{_forward_impl.1} parent=11 // pred_check_branch
          %252 = sbr.rel (%p250) target = $region16
        $region15: #{_forward_impl.1} parent=11 // pred_region
          _
        $region16: #{_forward_impl.1} parent=11 // pred_fallthru
          _
        // Predicated region
        $region17: #{_forward_impl.1} parent=11 // pred_check
          %p253 = pneg %p83
        $region18: #{_forward_impl.1} parent=11 // pred_check_branch
          %255 = sbr.rel (%p253) target = $region20
        $region19: #{_forward_impl.1} parent=11 // pred_region
          _
        $region20: #{_forward_impl.1} parent=11 // pred_fallthru
          _
        // Predicated region
        $region21: #{_forward_impl.1} parent=11 // pred_check
          %p256 = pneg %p104
        $region22: #{_forward_impl.1} parent=11 // pred_check_branch
          %258 = sbr.rel (%p256) target = $region24
        $region23: #{_forward_impl.1} parent=11 // pred_region
          _
        $region24: #{_forward_impl.1} parent=11 // pred_fallthru
          _
        // Predicated region
        $region25: #{_forward_impl.1} parent=11 // pred_check
          %p259 = pneg %p125
        $region26: #{_forward_impl.1} parent=11 // pred_check_branch
          %261 = sbr.rel (%p259) target = $region28
        $region27: #{_forward_impl.1} parent=11 // pred_region
          _
        $region28: #{_forward_impl.1} parent=11 // pred_fallthru
          _
        // Predicated region
        $region29: #{_forward_impl.1} parent=11 // pred_check
          %p262 = pneg %p146
        $region30: #{_forward_impl.1} parent=11 // pred_check_branch
          %264 = sbr.rel (%p262) target = $region32
        $region31: #{_forward_impl.1} parent=11 // pred_region
          _
        $region32: #{_forward_impl.1} parent=11 // pred_fallthru
          _
        // Predicated region
        $region33: #{_forward_impl.1} parent=11 // pred_check
          %p265 = pneg %p167
        $region34: #{_forward_impl.1} parent=11 // pred_check_branch
          %267 = sbr.rel (%p265) target = $region36
        $region35: #{_forward_impl.1} parent=11 // pred_region
          _
        $region36: #{_forward_impl.1} parent=11 // pred_fallthru
          _
        // Predicated region
        $region37: #{_forward_impl.1} parent=11 // pred_check
          %p268 = pneg %p188
        $region38: #{_forward_impl.1} parent=11 // pred_check_branch
          %270 = sbr.rel (%p268) target = $region40
        $region39: #{_forward_impl.1} parent=11 // pred_region
          _
        $region40: #{_forward_impl.1} parent=11 // pred_fallthru
          _
        // Predicated region
        $region41: #{_forward_impl.1} parent=11 // pred_check
          %p271 = pneg %p209
        $region42: #{_forward_impl.1} parent=11 // pred_check_branch
          %273 = sbr.rel (%p271) target = $region44
        $region43: #{_forward_impl.1} parent=11 // pred_region
          _
        $region44: #{_forward_impl.1} parent=11 // pred_fallthru
          _
      $region12: #{_forward_impl.1} parent=5 // pred_fallthru
        _
      %p274 = scmp.lt.s32.totalorder %s15, 2
      // Predicated region
      $region45: #{_forward_impl.1} parent=5 // pred_check
        %p275 = pneg %p274
      $region46: #{_forward_impl.1} parent=5 // pred_check_branch
        %277 = sbr.rel (%p275) target = $region48
      $region47: #{_forward_impl.1} parent=5 // pred_region
        // Predicated region
        $region49: #{_forward_impl.1} parent=47 // pred_check
          %p278 = pneg %p35
        $region50: #{_forward_impl.1} parent=47 // pred_check_branch
          %280 = sbr.rel (%p278) target = $region52
        $region51: #{_forward_impl.1} parent=47 // pred_region
          %s281 = sand.u32 %s25, 1
          %s282 = sand.u32 %s25, 1
          %s283 = smul.addr %s282, 896
          %s284 = scalar_lea.vmem [#allocation3], %s283
          %s285 = smul.u32 16, %s15
          %s286 = smul.addr %s285, 8
          %s287 = scalar_lea.vmem %s0, %s286
          // Predicated region
          $region53: #{_forward_impl.1} parent=51 // pred_check
            _
          $region54: #{_forward_impl.1} parent=51 // pred_check_branch
            %289 = sbr.rel (0) target = $region56
          $region55: #{_forward_impl.1} parent=51 // pred_region
            // Predicated region
            $region57: #{_forward_impl.1} parent=55 // pred_check
              _
            $region58: #{_forward_impl.1} parent=55 // pred_check_branch
              %291 = sbr.rel (0) target = $region60
            $region59: #{_forward_impl.1} parent=55 // pred_region
              loop: start=0, step=1, limit=1
              $region61: #{_forward_impl.1} parent=59 // loop_pre_header
                _
              $region62: #{_forward_impl.1} parent=59 // loop_header
                %s293 = sphi 0, %s297
                %p294 = scmp.ge.s32.totalorder %s293, 1
                %s298 = sphi %s287, %s287
                %s299 = sphi %s284, %s284
              $region63: #{_forward_impl.1} parent=59 // loop_header_branch
                %296 = sbr.rel (%p294) target = $region67
              $region64: #{_forward_impl.1} parent=59 // loop_body
                %v300 = vld [vmem:[%s298] sm:$0xff]
                %301 = vst [vmem:[%s299] sm:$0xff] %v300
                %v302 = vld [vmem:[%s298 + $0x8] sm:$0xff]
                %303 = vst [vmem:[%s299 + $0x8] sm:$0xff] %v302
                %v304 = vld [vmem:[%s298 + $0x10] sm:$0xff]
                %305 = vst [vmem:[%s299 + $0x10] sm:$0xff] %v304
                %v306 = vld [vmem:[%s298 + $0x18] sm:$0xff]
                %307 = vst [vmem:[%s299 + $0x18] sm:$0xff] %v306
                %v308 = vld [vmem:[%s298 + $0x20] sm:$0xff]
                %309 = vst [vmem:[%s299 + $0x20] sm:$0xff] %v308
                %v310 = vld [vmem:[%s298 + $0x28] sm:$0xff]
                %311 = vst [vmem:[%s299 + $0x28] sm:$0xff] %v310
                %v312 = vld [vmem:[%s298 + $0x30] sm:$0xff]
                %313 = vst [vmem:[%s299 + $0x30] sm:$0xff] %v312
                %v314 = vld [vmem:[%s298 + $0x38] sm:$0xff]
                %315 = vst [vmem:[%s299 + $0x38] sm:$0xff] %v314
                %v316 = vld [vmem:[%s298 + $0x40] sm:$0xff]
                %317 = vst [vmem:[%s299 + $0x40] sm:$0xff] %v316
                %v318 = vld [vmem:[%s298 + $0x48] sm:$0xff]
                %319 = vst [vmem:[%s299 + $0x48] sm:$0xff] %v318
                %v320 = vld [vmem:[%s298 + $0x50] sm:$0xff]
                %321 = vst [vmem:[%s299 + $0x50] sm:$0xff] %v320
                %v322 = vld [vmem:[%s298 + $0x58] sm:$0xff]
                %323 = vst [vmem:[%s299 + $0x58] sm:$0xff] %v322
                %v324 = vld [vmem:[%s298 + $0x60] sm:$0xff]
                %325 = vst [vmem:[%s299 + $0x60] sm:$0xff] %v324
                %v326 = vld [vmem:[%s298 + $0x68] sm:$0xff]
                %327 = vst [vmem:[%s299 + $0x68] sm:$0xff] %v326
                %v328 = vld [vmem:[%s298 + $0x70] sm:$0xff]
                %329 = vst [vmem:[%s299 + $0x70] sm:$0xff] %v328
                %v330 = vld [vmem:[%s298 + $0x78] sm:$0xff]
                %331 = vst [vmem:[%s299 + $0x78] sm:$0xff] %v330
                %v332 = vld [vmem:[%s298 + $0x100] sm:$0xff]
                %333 = vst [vmem:[%s299 + $0x80] sm:$0xff] %v332
                %v334 = vld [vmem:[%s298 + $0x108] sm:$0xff]
                %335 = vst [vmem:[%s299 + $0x88] sm:$0xff] %v334
                %v336 = vld [vmem:[%s298 + $0x110] sm:$0xff]
                %337 = vst [vmem:[%s299 + $0x90] sm:$0xff] %v336
                %v338 = vld [vmem:[%s298 + $0x118] sm:$0xff]
                %339 = vst [vmem:[%s299 + $0x98] sm:$0xff] %v338
                %v340 = vld [vmem:[%s298 + $0x120] sm:$0xff]
                %341 = vst [vmem:[%s299 + $0xa0] sm:$0xff] %v340
                %v342 = vld [vmem:[%s298 + $0x128] sm:$0xff]
                %343 = vst [vmem:[%s299 + $0xa8] sm:$0xff] %v342
                %v344 = vld [vmem:[%s298 + $0x130] sm:$0xff]
                %345 = vst [vmem:[%s299 + $0xb0] sm:$0xff] %v344
                %v346 = vld [vmem:[%s298 + $0x138] sm:$0xff]
                %347 = vst [vmem:[%s299 + $0xb8] sm:$0xff] %v346
                %v348 = vld [vmem:[%s298 + $0x140] sm:$0xff]
                %349 = vst [vmem:[%s299 + $0xc0] sm:$0xff] %v348
                %v350 = vld [vmem:[%s298 + $0x148] sm:$0xff]
                %351 = vst [vmem:[%s299 + $0xc8] sm:$0xff] %v350
                %v352 = vld [vmem:[%s298 + $0x150] sm:$0xff]
                %353 = vst [vmem:[%s299 + $0xd0] sm:$0xff] %v352
                %v354 = vld [vmem:[%s298 + $0x158] sm:$0xff]
                %355 = vst [vmem:[%s299 + $0xd8] sm:$0xff] %v354
                %v356 = vld [vmem:[%s298 + $0x160] sm:$0xff]
                %357 = vst [vmem:[%s299 + $0xe0] sm:$0xff] %v356
                %v358 = vld [vmem:[%s298 + $0x168] sm:$0xff]
                %359 = vst [vmem:[%s299 + $0xe8] sm:$0xff] %v358
                %v360 = vld [vmem:[%s298 + $0x170] sm:$0xff]
                %361 = vst [vmem:[%s299 + $0xf0] sm:$0xff] %v360
                %v362 = vld [vmem:[%s298 + $0x178] sm:$0xff]
                %363 = vst [vmem:[%s299 + $0xf8] sm:$0xff] %v362
                %v364 = vld [vmem:[%s298 + $0x200] sm:$0xff]
                %365 = vst [vmem:[%s299 + $0x100] sm:$0xff] %v364
                %v366 = vld [vmem:[%s298 + $0x208] sm:$0xff]
                %367 = vst [vmem:[%s299 + $0x108] sm:$0xff] %v366
                %v368 = vld [vmem:[%s298 + $0x210] sm:$0xff]
                %369 = vst [vmem:[%s299 + $0x110] sm:$0xff] %v368
                %v370 = vld [vmem:[%s298 + $0x218] sm:$0xff]
                %371 = vst [vmem:[%s299 + $0x118] sm:$0xff] %v370
                %v372 = vld [vmem:[%s298 + $0x220] sm:$0xff]
                %373 = vst [vmem:[%s299 + $0x120] sm:$0xff] %v372
                %v374 = vld [vmem:[%s298 + $0x228] sm:$0xff]
                %375 = vst [vmem:[%s299 + $0x128] sm:$0xff] %v374
                %v376 = vld [vmem:[%s298 + $0x230] sm:$0xff]
                %377 = vst [vmem:[%s299 + $0x130] sm:$0xff] %v376
                %v378 = vld [vmem:[%s298 + $0x238] sm:$0xff]
                %379 = vst [vmem:[%s299 + $0x138] sm:$0xff] %v378
                %v380 = vld [vmem:[%s298 + $0x240] sm:$0xff]
                %381 = vst [vmem:[%s299 + $0x140] sm:$0xff] %v380
                %v382 = vld [vmem:[%s298 + $0x248] sm:$0xff]
                %383 = vst [vmem:[%s299 + $0x148] sm:$0xff] %v382
                %v384 = vld [vmem:[%s298 + $0x250] sm:$0xff]
                %385 = vst [vmem:[%s299 + $0x150] sm:$0xff] %v384
                %v386 = vld [vmem:[%s298 + $0x258] sm:$0xff]
                %387 = vst [vmem:[%s299 + $0x158] sm:$0xff] %v386
                %v388 = vld [vmem:[%s298 + $0x260] sm:$0xff]
                %389 = vst [vmem:[%s299 + $0x160] sm:$0xff] %v388
                %v390 = vld [vmem:[%s298 + $0x268] sm:$0xff]
                %391 = vst [vmem:[%s299 + $0x168] sm:$0xff] %v390
                %v392 = vld [vmem:[%s298 + $0x270] sm:$0xff]
                %393 = vst [vmem:[%s299 + $0x170] sm:$0xff] %v392
                %v394 = vld [vmem:[%s298 + $0x278] sm:$0xff]
                %395 = vst [vmem:[%s299 + $0x178] sm:$0xff] %v394
                %v396 = vld [vmem:[%s298 + $0x300] sm:$0xff]
                %397 = vst [vmem:[%s299 + $0x180] sm:$0xff] %v396
                %v398 = vld [vmem:[%s298 + $0x308] sm:$0xff]
                %399 = vst [vmem:[%s299 + $0x188] sm:$0xff] %v398
                %v400 = vld [vmem:[%s298 + $0x310] sm:$0xff]
                %401 = vst [vmem:[%s299 + $0x190] sm:$0xff] %v400
                %v402 = vld [vmem:[%s298 + $0x318] sm:$0xff]
                %403 = vst [vmem:[%s299 + $0x198] sm:$0xff] %v402
                %v404 = vld [vmem:[%s298 + $0x320] sm:$0xff]
                %405 = vst [vmem:[%s299 + $0x1a0] sm:$0xff] %v404
                %v406 = vld [vmem:[%s298 + $0x328] sm:$0xff]
                %407 = vst [vmem:[%s299 + $0x1a8] sm:$0xff] %v406
                %v408 = vld [vmem:[%s298 + $0x330] sm:$0xff]
                %409 = vst [vmem:[%s299 + $0x1b0] sm:$0xff] %v408
                %v410 = vld [vmem:[%s298 + $0x338] sm:$0xff]
                %411 = vst [vmem:[%s299 + $0x1b8] sm:$0xff] %v410
                %v412 = vld [vmem:[%s298 + $0x340] sm:$0xff]
                %413 = vst [vmem:[%s299 + $0x1c0] sm:$0xff] %v412
                %v414 = vld [vmem:[%s298 + $0x348] sm:$0xff]
                %415 = vst [vmem:[%s299 + $0x1c8] sm:$0xff] %v414
                %v416 = vld [vmem:[%s298 + $0x350] sm:$0xff]
                %417 = vst [vmem:[%s299 + $0x1d0] sm:$0xff] %v416
                %v418 = vld [vmem:[%s298 + $0x358] sm:$0xff]
                %419 = vst [vmem:[%s299 + $0x1d8] sm:$0xff] %v418
                %v420 = vld [vmem:[%s298 + $0x360] sm:$0xff]
                %421 = vst [vmem:[%s299 + $0x1e0] sm:$0xff] %v420
                %v422 = vld [vmem:[%s298 + $0x368] sm:$0xff]
                %423 = vst [vmem:[%s299 + $0x1e8] sm:$0xff] %v422
                %v424 = vld [vmem:[%s298 + $0x370] sm:$0xff]
                %425 = vst [vmem:[%s299 + $0x1f0] sm:$0xff] %v424
                %v426 = vld [vmem:[%s298 + $0x378] sm:$0xff]
                %427 = vst [vmem:[%s299 + $0x1f8] sm:$0xff] %v426
                %v428 = vld [vmem:[%s298 + $0x400] sm:$0xff]
                %429 = vst [vmem:[%s299 + $0x200] sm:$0xff] %v428
                %v430 = vld [vmem:[%s298 + $0x408] sm:$0xff]
                %431 = vst [vmem:[%s299 + $0x208] sm:$0xff] %v430
                %v432 = vld [vmem:[%s298 + $0x410] sm:$0xff]
                %433 = vst [vmem:[%s299 + $0x210] sm:$0xff] %v432
                %v434 = vld [vmem:[%s298 + $0x418] sm:$0xff]
                %435 = vst [vmem:[%s299 + $0x218] sm:$0xff] %v434
                %v436 = vld [vmem:[%s298 + $0x420] sm:$0xff]
                %437 = vst [vmem:[%s299 + $0x220] sm:$0xff] %v436
                %v438 = vld [vmem:[%s298 + $0x428] sm:$0xff]
                %439 = vst [vmem:[%s299 + $0x228] sm:$0xff] %v438
                %v440 = vld [vmem:[%s298 + $0x430] sm:$0xff]
                %441 = vst [vmem:[%s299 + $0x230] sm:$0xff] %v440
                %v442 = vld [vmem:[%s298 + $0x438] sm:$0xff]
                %443 = vst [vmem:[%s299 + $0x238] sm:$0xff] %v442
                %v444 = vld [vmem:[%s298 + $0x440] sm:$0xff]
                %445 = vst [vmem:[%s299 + $0x240] sm:$0xff] %v444
                %v446 = vld [vmem:[%s298 + $0x448] sm:$0xff]
                %447 = vst [vmem:[%s299 + $0x248] sm:$0xff] %v446
                %v448 = vld [vmem:[%s298 + $0x450] sm:$0xff]
                %449 = vst [vmem:[%s299 + $0x250] sm:$0xff] %v448
                %v450 = vld [vmem:[%s298 + $0x458] sm:$0xff]
                %451 = vst [vmem:[%s299 + $0x258] sm:$0xff] %v450
                %v452 = vld [vmem:[%s298 + $0x460] sm:$0xff]
                %453 = vst [vmem:[%s299 + $0x260] sm:$0xff] %v452
                %v454 = vld [vmem:[%s298 + $0x468] sm:$0xff]
                %455 = vst [vmem:[%s299 + $0x268] sm:$0xff] %v454
                %v456 = vld [vmem:[%s298 + $0x470] sm:$0xff]
                %457 = vst [vmem:[%s299 + $0x270] sm:$0xff] %v456
                %v458 = vld [vmem:[%s298 + $0x478] sm:$0xff]
                %459 = vst [vmem:[%s299 + $0x278] sm:$0xff] %v458
                %v460 = vld [vmem:[%s298 + $0x500] sm:$0xff]
                %461 = vst [vmem:[%s299 + $0x280] sm:$0xff] %v460
                %v462 = vld [vmem:[%s298 + $0x508] sm:$0xff]
                %463 = vst [vmem:[%s299 + $0x288] sm:$0xff] %v462
                %v464 = vld [vmem:[%s298 + $0x510] sm:$0xff]
                %465 = vst [vmem:[%s299 + $0x290] sm:$0xff] %v464
                %v466 = vld [vmem:[%s298 + $0x518] sm:$0xff]
                %467 = vst [vmem:[%s299 + $0x298] sm:$0xff] %v466
                %v468 = vld [vmem:[%s298 + $0x520] sm:$0xff]
                %469 = vst [vmem:[%s299 + $0x2a0] sm:$0xff] %v468
                %v470 = vld [vmem:[%s298 + $0x528] sm:$0xff]
                %471 = vst [vmem:[%s299 + $0x2a8] sm:$0xff] %v470
                %v472 = vld [vmem:[%s298 + $0x530] sm:$0xff]
                %473 = vst [vmem:[%s299 + $0x2b0] sm:$0xff] %v472
                %v474 = vld [vmem:[%s298 + $0x538] sm:$0xff]
                %475 = vst [vmem:[%s299 + $0x2b8] sm:$0xff] %v474
                %v476 = vld [vmem:[%s298 + $0x540] sm:$0xff]
                %477 = vst [vmem:[%s299 + $0x2c0] sm:$0xff] %v476
                %v478 = vld [vmem:[%s298 + $0x548] sm:$0xff]
                %479 = vst [vmem:[%s299 + $0x2c8] sm:$0xff] %v478
                %v480 = vld [vmem:[%s298 + $0x550] sm:$0xff]
                %481 = vst [vmem:[%s299 + $0x2d0] sm:$0xff] %v480
                %v482 = vld [vmem:[%s298 + $0x558] sm:$0xff]
                %483 = vst [vmem:[%s299 + $0x2d8] sm:$0xff] %v482
                %v484 = vld [vmem:[%s298 + $0x560] sm:$0xff]
                %485 = vst [vmem:[%s299 + $0x2e0] sm:$0xff] %v484
                %v486 = vld [vmem:[%s298 + $0x568] sm:$0xff]
                %487 = vst [vmem:[%s299 + $0x2e8] sm:$0xff] %v486
                %v488 = vld [vmem:[%s298 + $0x570] sm:$0xff]
                %489 = vst [vmem:[%s299 + $0x2f0] sm:$0xff] %v488
                %v490 = vld [vmem:[%s298 + $0x578] sm:$0xff]
                %491 = vst [vmem:[%s299 + $0x2f8] sm:$0xff] %v490
                %v492 = vld [vmem:[%s298 + $0x600] sm:$0xff]
                %493 = vst [vmem:[%s299 + $0x300] sm:$0xff] %v492
                %v494 = vld [vmem:[%s298 + $0x608] sm:$0xff]
                %495 = vst [vmem:[%s299 + $0x308] sm:$0xff] %v494
                %v496 = vld [vmem:[%s298 + $0x610] sm:$0xff]
                %497 = vst [vmem:[%s299 + $0x310] sm:$0xff] %v496
                %v498 = vld [vmem:[%s298 + $0x618] sm:$0xff]
                %499 = vst [vmem:[%s299 + $0x318] sm:$0xff] %v498
                %v500 = vld [vmem:[%s298 + $0x620] sm:$0xff]
                %501 = vst [vmem:[%s299 + $0x320] sm:$0xff] %v500
                %v502 = vld [vmem:[%s298 + $0x628] sm:$0xff]
                %503 = vst [vmem:[%s299 + $0x328] sm:$0xff] %v502
                %v504 = vld [vmem:[%s298 + $0x630] sm:$0xff]
                %505 = vst [vmem:[%s299 + $0x330] sm:$0xff] %v504
                %v506 = vld [vmem:[%s298 + $0x638] sm:$0xff]
                %507 = vst [vmem:[%s299 + $0x338] sm:$0xff] %v506
                %v508 = vld [vmem:[%s298 + $0x640] sm:$0xff]
                %509 = vst [vmem:[%s299 + $0x340] sm:$0xff] %v508
                %v510 = vld [vmem:[%s298 + $0x648] sm:$0xff]
                %511 = vst [vmem:[%s299 + $0x348] sm:$0xff] %v510
                %v512 = vld [vmem:[%s298 + $0x650] sm:$0xff]
                %513 = vst [vmem:[%s299 + $0x350] sm:$0xff] %v512
                %v514 = vld [vmem:[%s298 + $0x658] sm:$0xff]
                %515 = vst [vmem:[%s299 + $0x358] sm:$0xff] %v514
                %v516 = vld [vmem:[%s298 + $0x660] sm:$0xff]
                %517 = vst [vmem:[%s299 + $0x360] sm:$0xff] %v516
                %v518 = vld [vmem:[%s298 + $0x668] sm:$0xff]
                %519 = vst [vmem:[%s299 + $0x368] sm:$0xff] %v518
                %v520 = vld [vmem:[%s298 + $0x670] sm:$0xff]
                %521 = vst [vmem:[%s299 + $0x370] sm:$0xff] %v520
                %v522 = vld [vmem:[%s298 + $0x678] sm:$0xff]
                %523 = vst [vmem:[%s299 + $0x378] sm:$0xff] %v522
              $region65: #{_forward_impl.1} parent=59 // loop_footer
                %s297 = sadd.s32 1, %s293
              $region66: #{_forward_impl.1} parent=59 // loop_footer_branch
                %292 = sbr.rel target = $region62
              $region67: #{_forward_impl.1} parent=59 // loop_exit
                _
            $region60: #{_forward_impl.1} parent=55 // pred_fallthru
              _
            // Predicated region
            $region68: #{_forward_impl.1} parent=55 // pred_check
              _
            $region69: #{_forward_impl.1} parent=55 // pred_check_branch
              %525 = sbr.rel target = $region71
            $region70: #{_forward_impl.1} parent=55 // pred_region
              _
            $region71: #{_forward_impl.1} parent=55 // pred_fallthru
              _
          $region56: #{_forward_impl.1} parent=51 // pred_fallthru
            _
          %526 = vnop
        $region52: #{_forward_impl.1} parent=47 // pred_fallthru
          _
      $region48: #{_forward_impl.1} parent=5 // pred_fallthru
        _
      %p527 = scmp.le.s32.totalorder 1, %s15
      %p528 = scmp.lt.s32.totalorder %s15, 3
      %p529 = pnand %p527, %p528
      %p530 = pneg %p529
      // Predicated region
      $region72: #{_forward_impl.1} parent=5 // pred_check
        _
      $region73: #{_forward_impl.1} parent=5 // pred_check_branch
        %532 = sbr.rel (%p529) target = $region75
      $region74: #{_forward_impl.1} parent=5 // pred_region
        %s533 = ssub.s32 %s15, 1
        %s534 = sand.u32 %s28, 1
        %s535 = sand.u32 %s28, 1
        %s536 = smul.addr %s535, 896
        %s537 = scalar_lea.vmem [#allocation3], %s536
        // Predicated region
        $region76: #{_forward_impl.1} parent=74 // pred_check
          %p538 = pneg %p41
        $region77: #{_forward_impl.1} parent=74 // pred_check_branch
          %540 = sbr.rel (%p538) target = $region79
        $region78: #{_forward_impl.1} parent=74 // pred_region
          _
        $region79: #{_forward_impl.1} parent=74 // pred_fallthru
          _
        %s541 = sand.u32 %s28, 1
        %s542 = sand.u32 %s28, 1
        %s543 = smul.addr %s542, 896
        %s544 = scalar_lea.vmem [#allocation3], %s543
        %p545 = pneg %p41
        %p546 = pneg %p38
        %p547 = pneg %p62
        %p548 = pneg %p59
        %p549 = pneg %p83
        %p550 = pneg %p80
        %p551 = pneg %p104
        %p552 = pneg %p101
        %p553 = pneg %p125
        %p554 = pneg %p122
        %p555 = pneg %p146
        %p556 = pneg %p143
        %p557 = pneg %p167
        %p558 = pneg %p164
        %p559 = pneg %p188
        %p560 = pneg %p185
        %p561 = pneg %p209
        %p562 = pneg %p206
        %p563 = pneg %p235
        %p564 = pneg %p232
        %p565 = scmp.lt.s32.totalorder %s20, 1
        %s566 = scalar_select %p565, %s20, 1
        %s567 = smul.addr %s566, 8
        %s568 = scalar_lea.vmem %s9, %s567
        %s569 = smul.u32 16, %s20
        %p570 = scmp.lt.s32.totalorder %s20, 1
        %s571 = scalar_select %p570, %s20, 1
        %s572 = smul.addr %s571, 8
        %s573 = scalar_lea.vmem %s9, %s572
        %v574 = vld [vmem:[%s1] sm:$0xff]
        %v575 = vld [vmem:[%s1 + $0x8] sm:$0xff]
        %v576 = vld [vmem:[%s1 + $0x10] sm:$0xf]
        %v577 = vld [vmem:[%s537] sm:$0xff]
        %v578 = vld [vmem:[%s537 + $0x8] sm:$0xff]
        %v579 = vld [vmem:[%s537 + $0x10] sm:$0xff]
        %v580 = vld [vmem:[%s537 + $0x18] sm:$0xff]
        %v581 = vld [vmem:[%s537 + $0x80] sm:$0xff]
        %v582 = vld [vmem:[%s537 + $0x88] sm:$0xff]
        %v583 = vld [vmem:[%s537 + $0x90] sm:$0xff]
        %v584 = vld [vmem:[%s537 + $0x98] sm:$0xff]
        %v585 = vld [vmem:[%s537 + $0x100] sm:$0xff]
        %v586 = vld [vmem:[%s537 + $0x108] sm:$0xff]
        %v587 = vld [vmem:[%s537 + $0x110] sm:$0xff]
        %v588 = vld [vmem:[%s537 + $0x118] sm:$0xff]
        %v589 = vld [vmem:[%s537 + $0x180] sm:$0xff]
        %v590 = vld [vmem:[%s537 + $0x188] sm:$0xff]
        %v591 = vld [vmem:[%s537 + $0x190] sm:$0xff]
        %v592 = vld [vmem:[%s537 + $0x198] sm:$0xff]
        %v593 = vld [vmem:[%s537 + $0x200] sm:$0xff]
        %v594 = vld [vmem:[%s537 + $0x208] sm:$0xff]
        %v595 = vld [vmem:[%s537 + $0x210] sm:$0xff]
        %v596 = vld [vmem:[%s537 + $0x218] sm:$0xff]
        %v597 = vld [vmem:[%s537 + $0x280] sm:$0xff]
        %v598 = vld [vmem:[%s537 + $0x288] sm:$0xff]
        %v599 = vld [vmem:[%s537 + $0x290] sm:$0xff]
        %v600 = vld [vmem:[%s537 + $0x298] sm:$0xff]
        %v601 = vld [vmem:[%s537 + $0x300] sm:$0x3]
        %v602 = vld [vmem:[%s537 + $0x308] sm:$0x3]
        %v603 = vld [vmem:[%s537 + $0x310] sm:$0x3]
        %v604 = vld [vmem:[%s537 + $0x318] sm:$0x3]
        %vm605 = vcmask 408576
        %v607 = vsel %vm605, %v574, 0
        %v610 = vsel %vm605, %v575, 0
        %v613 = vsel %vm605, %v576, 0
        %vm615 = vcmask 1041408
        %v617 = vsel %vm615, %v601, 0
        %v620 = vsel %vm615, %v602, 0
        %v623 = vsel %vm615, %v603, 0
        %v626 = vsel %vm615, %v604, 0
        %628 = vmatprep.subr.mxu0 %v578
        %629 = vmatpush1.msra.mxu0 %v577
        %630 = vmatprep.subr.mxu0 %v582
        %631 = vmatpush1.msra.mxu0 %v581
        %632 = vmatprep.subr.mxu0 %v586
        %633 = vmatpush1.msra.mxu0 %v585
        %634 = vmatprep.subr.mxu0 %v590
        %635 = vmatpush1.msra.mxu0 %v589
        %636 = vmatprep.subr.mxu0 %v594
        %637 = vmatpush1.msra.mxu0 %v593
        %638 = vmatprep.subr.mxu0 %v598
        %639 = vmatpush1.msra.mxu0 %v597
        %640 = vmatprep.subr.mxu0 %v620
        %641 = vmatpush1.msra.mxu0 %v617
        %642 = vmatprep.subr.mxu0 0.0
        %643 = vmatpush1.msra.mxu0 0.0
        %644 = vmatprep.subr.mxu0 0.0
        %645 = vmatpush1.msra.mxu0 0.0
        %646 = vmatprep.subr.mxu0 0.0
        %647 = vmatpush1.msra.mxu0 0.0
        %648 = vmatprep.subr.mxu0 0.0
        %649 = vmatpush1.msra.mxu0 0.0
        %650 = vmatprep.subr.mxu0 0.0
        %651 = vmatpush1.msra.mxu0 0.0
        %652 = vmatprep.subr.mxu0 0.0
        %653 = vmatpush1.msra.mxu0 0.0
        %654 = vmatprep.subr.mxu0 0.0
        %655 = vmatpush1.msra.mxu0 0.0
        %656 = vmatprep.subr.mxu0 0.0
        %657 = vmatpush1.msra.mxu0 0.0
        %658 = vmatprep.subr.mxu0 0.0
        %659 = vmatpush1.msra.mxu0 0.0
        %660 = vmatprep.subr.mxu0 0.0
        %661 = vmatpush1.msra.mxu0 0.0
        %662 = vmatprep.subr.mxu0 0.0
        %663 = vmatpush1.msra.mxu0 0.0
        %664 = vmatprep.subr.mxu0 0.0
        %665 = vmatpush1.msra.mxu0 0.0
        %666 = vmatprep.subr.mxu0 0.0
        %667 = vmatpush1.msra.mxu0 0.0
        %668 = vmatprep.subr.mxu0 0.0
        %669 = vmatpush1.msra.mxu0 0.0
        %670 = vmatprep.subr.mxu0 0.0
        %671 = vmatpush1.msra.mxu0 0.0
        %672 = vmatprep.subr.mxu0 0.0
        %673 = vmatpush1.msra.mxu0 0.0
        %674 = vmatprep.subr.mxu0 0.0
        %675 = vmatpush1.msra.mxu0 0.0
        %676 = vmatprep.subr.mxu0 0.0
        %677 = vmatpush1.msra.mxu0 0.0
        %678 = vmatprep.subr.mxu0 0.0
        %679 = vmatpush1.msra.mxu0 0.0
        %680 = vmatprep.subr.mxu0 0.0
        %681 = vmatpush1.msra.mxu0 0.0
        %682 = vmatprep.subr.mxu0 0.0
        %683 = vmatpush1.msra.mxu0 0.0
        %684 = vmatprep.subr.mxu0 0.0
        %685 = vmatpush1.msra.mxu0 0.0
        %686 = vmatprep.subr.mxu0 0.0
        %687 = vmatpush1.msra.mxu0 0.0
        %688 = vmatprep.subr.mxu0 0.0
        %689 = vmatpush1.msra.mxu0 0.0
        %690 = vmatprep.subr.mxu0 0.0
        %691 = vmatpush1.msra.mxu0 0.0
        %692 = vmatprep.mubr.f32.mxu0 0.0
        %693 = vmatmul.mubr.f32.gmra.mrb[0].mxu0 %v607
        %v694 = vpop.f32.mrb[0].mxu0
        %v695 = vadd.f32 0.0, %v694
        %v696 = vpop.f32.mrb[0].mxu0
        %v697 = vadd.f32 0.0, %v696
        %698 = vmatprep.mubr.f32.mxu0 0.0
        %699 = vmatmul.mubr.f32.gmra.mrb[0].mxu0 %v610
        %v700 = vpop.f32.mrb[0].mxu0
        %v701 = vadd.f32 0.0, %v700
        %v702 = vpop.f32.mrb[0].mxu0
        %v703 = vadd.f32 0.0, %v702
        %704 = vmatprep.mubr.f32.mxu0 0.0
        %705 = vmatmul.mubr.f32.gmra.mrb[0].mxu0 %v613
        %v706 = vpop.f32.mrb[0].mxu0
        %v707 = vadd.f32 0.0, %v706
        %v708 = vpop.f32.mrb[0].mxu0
        %v709 = vadd.f32 0.0, %v708
        %710 = vdwg.mxu0
        %711 = vmatprep.subr.mxu0 %v580
        %712 = vmatpush1.msra.mxu0 %v579
        %713 = vmatprep.subr.mxu0 %v584
        %714 = vmatpush1.msra.mxu0 %v583
        %715 = vmatprep.subr.mxu0 %v588
        %716 = vmatpush1.msra.mxu0 %v587
        %717 = vmatprep.subr.mxu0 %v592
        %718 = vmatpush1.msra.mxu0 %v591
        %719 = vmatprep.subr.mxu0 %v596
        %720 = vmatpush1.msra.mxu0 %v595
        %721 = vmatprep.subr.mxu0 %v600
        %722 = vmatpush1.msra.mxu0 %v599
        %723 = vmatprep.subr.mxu0 %v626
        %724 = vmatpush1.msra.mxu0 %v623
        %725 = vmatprep.subr.mxu0 0.0
        %726 = vmatpush1.msra.mxu0 0.0
        %727 = vmatprep.subr.mxu0 0.0
        %728 = vmatpush1.msra.mxu0 0.0
        %729 = vmatprep.subr.mxu0 0.0
        %730 = vmatpush1.msra.mxu0 0.0
        %731 = vmatprep.subr.mxu0 0.0
        %732 = vmatpush1.msra.mxu0 0.0
        %733 = vmatprep.subr.mxu0 0.0
        %734 = vmatpush1.msra.mxu0 0.0
        %735 = vmatprep.subr.mxu0 0.0
        %736 = vmatpush1.msra.mxu0 0.0
        %737 = vmatprep.subr.mxu0 0.0
        %738 = vmatpush1.msra.mxu0 0.0
        %739 = vmatprep.subr.mxu0 0.0
        %740 = vmatpush1.msra.mxu0 0.0
        %741 = vmatprep.subr.mxu0 0.0
        %742 = vmatpush1.msra.mxu0 0.0
        %743 = vmatprep.subr.mxu0 0.0
        %744 = vmatpush1.msra.mxu0 0.0
        %745 = vmatprep.subr.mxu0 0.0
        %746 = vmatpush1.msra.mxu0 0.0
        %747 = vmatprep.subr.mxu0 0.0
        %748 = vmatpush1.msra.mxu0 0.0
        %749 = vmatprep.subr.mxu0 0.0
        %750 = vmatpush1.msra.mxu0 0.0
        %751 = vmatprep.subr.mxu0 0.0
        %752 = vmatpush1.msra.mxu0 0.0
        %753 = vmatprep.subr.mxu0 0.0
        %754 = vmatpush1.msra.mxu0 0.0
        %755 = vmatprep.subr.mxu0 0.0
        %756 = vmatpush1.msra.mxu0 0.0
        %757 = vmatprep.subr.mxu0 0.0
        %758 = vmatpush1.msra.mxu0 0.0
        %759 = vmatprep.subr.mxu0 0.0
        %760 = vmatpush1.msra.mxu0 0.0
        %761 = vmatprep.subr.mxu0 0.0
        %762 = vmatpush1.msra.mxu0 0.0
        %763 = vmatprep.subr.mxu0 0.0
        %764 = vmatpush1.msra.mxu0 0.0
        %765 = vmatprep.subr.mxu0 0.0
        %766 = vmatpush1.msra.mxu0 0.0
        %767 = vmatprep.subr.mxu0 0.0
        %768 = vmatpush1.msra.mxu0 0.0
        %769 = vmatprep.subr.mxu0 0.0
        %770 = vmatpush1.msra.mxu0 0.0
        %771 = vmatprep.subr.mxu0 0.0
        %772 = vmatpush1.msra.mxu0 0.0
        %773 = vmatprep.subr.mxu0 0.0
        %774 = vmatpush1.msra.mxu0 0.0
        %775 = vmatprep.mubr.f32.mxu0 0.0
        %776 = vmatmul.mubr.f32.gmra.mrb[0].mxu0 %v607
        %v777 = vpop.f32.mrb[0].mxu0
        %v778 = vadd.f32 0.0, %v777
        %v779 = vpop.f32.mrb[0].mxu0
        %v780 = vadd.f32 0.0, %v779
        %781 = vmatprep.mubr.f32.mxu0 0.0
        %782 = vmatmul.mubr.f32.gmra.mrb[0].mxu0 %v610
        %v783 = vpop.f32.mrb[0].mxu0
        %v784 = vadd.f32 0.0, %v783
        %v785 = vpop.f32.mrb[0].mxu0
        %v786 = vadd.f32 0.0, %v785
        %787 = vmatprep.mubr.f32.mxu0 0.0
        %788 = vmatmul.mubr.f32.gmra.mrb[0].mxu0 %v613
        %v789 = vpop.f32.mrb[0].mxu0
        %v790 = vadd.f32 0.0, %v789
        %v791 = vpop.f32.mrb[0].mxu0
        %v792 = vadd.f32 0.0, %v791
        %793 = vdwg.mxu0
        %v794 = vld [vmem:[%s537 + $0x20] sm:$0xff]
        %v795 = vld [vmem:[%s537 + $0x28] sm:$0xff]
        %v796 = vld [vmem:[%s537 + $0x30] sm:$0xff]
        %v797 = vld [vmem:[%s537 + $0x38] sm:$0xff]
        %v798 = vld [vmem:[%s537 + $0xa0] sm:$0xff]
        %v799 = vld [vmem:[%s537 + $0xa8] sm:$0xff]
        %v800 = vld [vmem:[%s537 + $0xb0] sm:$0xff]
        %v801 = vld [vmem:[%s537 + $0xb8] sm:$0xff]
        %v802 = vld [vmem:[%s537 + $0x120] sm:$0xff]
        %v803 = vld [vmem:[%s537 + $0x128] sm:$0xff]
        %v804 = vld [vmem:[%s537 + $0x130] sm:$0xff]
        %v805 = vld [vmem:[%s537 + $0x138] sm:$0xff]
        %v806 = vld [vmem:[%s537 + $0x1a0] sm:$0xff]
        %v807 = vld [vmem:[%s537 + $0x1a8] sm:$0xff]
        %v808 = vld [vmem:[%s537 + $0x1b0] sm:$0xff]
        %v809 = vld [vmem:[%s537 + $0x1b8] sm:$0xff]
        %v810 = vld [vmem:[%s537 + $0x220] sm:$0xff]
        %v811 = vld [vmem:[%s537 + $0x228] sm:$0xff]
        %v812 = vld [vmem:[%s537 + $0x230] sm:$0xff]
        %v813 = vld [vmem:[%s537 + $0x238] sm:$0xff]
        %v814 = vld [vmem:[%s537 + $0x2a0] sm:$0xff]
        %v815 = vld [vmem:[%s537 + $0x2a8] sm:$0xff]
        %v816 = vld [vmem:[%s537 + $0x2b0] sm:$0xff]
        %v817 = vld [vmem:[%s537 + $0x2b8] sm:$0xff]
        %v818 = vld [vmem:[%s537 + $0x320] sm:$0x3]
        %v819 = vld [vmem:[%s537 + $0x328] sm:$0x3]
        %v820 = vld [vmem:[%s537 + $0x330] sm:$0x3]
        %v821 = vld [vmem:[%s537 + $0x338] sm:$0x3]
        %v823 = vsel %vm615, %v818, 0
        %v826 = vsel %vm615, %v819, 0
        %v829 = vsel %vm615, %v820, 0
        %v832 = vsel %vm615, %v821, 0
        %834 = vmatprep.subr.mxu0 %v795
        %835 = vmatpush1.msra.mxu0 %v794
        %836 = vmatprep.subr.mxu0 %v799
        %837 = vmatpush1.msra.mxu0 %v798
        %838 = vmatprep.subr.mxu0 %v803
        %839 = vmatpush1.msra.mxu0 %v802
        %840 = vmatprep.subr.mxu0 %v807
        %841 = vmatpush1.msra.mxu0 %v806
        %842 = vmatprep.subr.mxu0 %v811
        %843 = vmatpush1.msra.mxu0 %v810
        %844 = vmatprep.subr.mxu0 %v815
        %845 = vmatpush1.msra.mxu0 %v814
        %846 = vmatprep.subr.mxu0 %v826
        %847 = vmatpush1.msra.mxu0 %v823
        %848 = vmatprep.subr.mxu0 0.0
        %849 = vmatpush1.msra.mxu0 0.0
        %850 = vmatprep.subr.mxu0 0.0
        %851 = vmatpush1.msra.mxu0 0.0
        %852 = vmatprep.subr.mxu0 0.0
        %853 = vmatpush1.msra.mxu0 0.0
        %854 = vmatprep.subr.mxu0 0.0
        %855 = vmatpush1.msra.mxu0 0.0
        %856 = vmatprep.subr.mxu0 0.0
        %857 = vmatpush1.msra.mxu0 0.0
        %858 = vmatprep.subr.mxu0 0.0
        %859 = vmatpush1.msra.mxu0 0.0
        %860 = vmatprep.subr.mxu0 0.0
        %861 = vmatpush1.msra.mxu0 0.0
        %862 = vmatprep.subr.mxu0 0.0
        %863 = vmatpush1.msra.mxu0 0.0
        %864 = vmatprep.subr.mxu0 0.0
        %865 = vmatpush1.msra.mxu0 0.0
        %866 = vmatprep.subr.mxu0 0.0
        %867 = vmatpush1.msra.mxu0 0.0
        %868 = vmatprep.subr.mxu0 0.0
        %869 = vmatpush1.msra.mxu0 0.0
        %870 = vmatprep.subr.mxu0 0.0
        %871 = vmatpush1.msra.mxu0 0.0
        %872 = vmatprep.subr.mxu0 0.0
        %873 = vmatpush1.msra.mxu0 0.0
        %874 = vmatprep.subr.mxu0 0.0
        %875 = vmatpush1.msra.mxu0 0.0
        %876 = vmatprep.subr.mxu0 0.0
        %877 = vmatpush1.msra.mxu0 0.0
        %878 = vmatprep.subr.mxu0 0.0
        %879 = vmatpush1.msra.mxu0 0.0
        %880 = vmatprep.subr.mxu0 0.0
        %881 = vmatpush1.msra.mxu0 0.0
        %882 = vmatprep.subr.mxu0 0.0
        %883 = vmatpush1.msra.mxu0 0.0
        %884 = vmatprep.subr.mxu0 0.0
        %885 = vmatpush1.msra.mxu0 0.0
        %886 = vmatprep.subr.mxu0 0.0
        %887 = vmatpush1.msra.mxu0 0.0
        %888 = vmatprep.subr.mxu0 0.0
        %889 = vmatpush1.msra.mxu0 0.0
        %890 = vmatprep.subr.mxu0 0.0
        %891 = vmatpush1.msra.mxu0 0.0
        %892 = vmatprep.subr.mxu0 0.0
        %893 = vmatpush1.msra.mxu0 0.0
        %894 = vmatprep.subr.mxu0 0.0
        %895 = vmatpush1.msra.mxu0 0.0
        %896 = vmatprep.subr.mxu0 0.0
        %897 = vmatpush1.msra.mxu0 0.0
        %898 = vmatprep.mubr.f32.mxu0 0.0
        %899 = vmatmul.mubr.f32.gmra.mrb[0].mxu0 %v607
        %v900 = vpop.f32.mrb[0].mxu0
        %v901 = vadd.f32 0.0, %v900
        %v902 = vpop.f32.mrb[0].mxu0
        %v903 = vadd.f32 0.0, %v902
        %904 = vmatprep.mubr.f32.mxu0 0.0
        %905 = vmatmul.mubr.f32.gmra.mrb[0].mxu0 %v610
        %v906 = vpop.f32.mrb[0].mxu0
        %v907 = vadd.f32 0.0, %v906
        %v908 = vpop.f32.mrb[0].mxu0
        %v909 = vadd.f32 0.0, %v908
        %910 = vmatprep.mubr.f32.mxu0 0.0
        %911 = vmatmul.mubr.f32.gmra.mrb[0].mxu0 %v613
        %v912 = vpop.f32.mrb[0].mxu0
        %v913 = vadd.f32 0.0, %v912
        %v914 = vpop.f32.mrb[0].mxu0
        %v915 = vadd.f32 0.0, %v914
        %916 = vdwg.mxu0
        %917 = vmatprep.subr.mxu0 %v797
        %918 = vmatpush1.msra.mxu0 %v796
        %919 = vmatprep.subr.mxu0 %v801
        %920 = vmatpush1.msra.mxu0 %v800
        %921 = vmatprep.subr.mxu0 %v805
        %922 = vmatpush1.msra.mxu0 %v804
        %923 = vmatprep.subr.mxu0 %v809
        %924 = vmatpush1.msra.mxu0 %v808
        %925 = vmatprep.subr.mxu0 %v813
        %926 = vmatpush1.msra.mxu0 %v812
        %927 = vmatprep.subr.mxu0 %v817
        %928 = vmatpush1.msra.mxu0 %v816
        %929 = vmatprep.subr.mxu0 %v832
        %930 = vmatpush1.msra.mxu0 %v829
        %931 = vmatprep.subr.mxu0 0.0
        %932 = vmatpush1.msra.mxu0 0.0
        %933 = vmatprep.subr.mxu0 0.0
        %934 = vmatpush1.msra.mxu0 0.0
        %935 = vmatprep.subr.mxu0 0.0
        %936 = vmatpush1.msra.mxu0 0.0
        %937 = vmatprep.subr.mxu0 0.0
        %938 = vmatpush1.msra.mxu0 0.0
        %939 = vmatprep.subr.mxu0 0.0
        %940 = vmatpush1.msra.mxu0 0.0
        %941 = vmatprep.subr.mxu0 0.0
        %942 = vmatpush1.msra.mxu0 0.0
        %943 = vmatprep.subr.mxu0 0.0
        %944 = vmatpush1.msra.mxu0 0.0
        %945 = vmatprep.subr.mxu0 0.0
        %946 = vmatpush1.msra.mxu0 0.0
        %947 = vmatprep.subr.mxu0 0.0
        %948 = vmatpush1.msra.mxu0 0.0
        %949 = vmatprep.subr.mxu0 0.0
        %950 = vmatpush1.msra.mxu0 0.0
        %951 = vmatprep.subr.mxu0 0.0
        %952 = vmatpush1.msra.mxu0 0.0
        %953 = vmatprep.subr.mxu0 0.0
        %954 = vmatpush1.msra.mxu0 0.0
        %955 = vmatprep.subr.mxu0 0.0
        %956 = vmatpush1.msra.mxu0 0.0
        %957 = vmatprep.subr.mxu0 0.0
        %958 = vmatpush1.msra.mxu0 0.0
        %959 = vmatprep.subr.mxu0 0.0
        %960 = vmatpush1.msra.mxu0 0.0
        %961 = vmatprep.subr.mxu0 0.0
        %962 = vmatpush1.msra.mxu0 0.0
        %963 = vmatprep.subr.mxu0 0.0
        %964 = vmatpush1.msra.mxu0 0.0
        %965 = vmatprep.subr.mxu0 0.0
        %966 = vmatpush1.msra.mxu0 0.0
        %967 = vmatprep.subr.mxu0 0.0
        %968 = vmatpush1.msra.mxu0 0.0
        %969 = vmatprep.subr.mxu0 0.0
        %970 = vmatpush1.msra.mxu0 0.0
        %971 = vmatprep.subr.mxu0 0.0
        %972 = vmatpush1.msra.mxu0 0.0
        %973 = vmatprep.subr.mxu0 0.0
        %974 = vmatpush1.msra.mxu0 0.0
        %975 = vmatprep.subr.mxu0 0.0
        %976 = vmatpush1.msra.mxu0 0.0
        %977 = vmatprep.subr.mxu0 0.0
        %978 = vmatpush1.msra.mxu0 0.0
        %979 = vmatprep.subr.mxu0 0.0
        %980 = vmatpush1.msra.mxu0 0.0
        %981 = vmatprep.mubr.f32.mxu0 0.0
        %982 = vmatmul.mubr.f32.gmra.mrb[0].mxu0 %v607
        %v983 = vpop.f32.mrb[0].mxu0
        %v984 = vadd.f32 0.0, %v983
        %v985 = vpop.f32.mrb[0].mxu0
        %v986 = vadd.f32 0.0, %v985
        %987 = vmatprep.mubr.f32.mxu0 0.0
        %988 = vmatmul.mubr.f32.gmra.mrb[0].mxu0 %v610
        %v989 = vpop.f32.mrb[0].mxu0
        %v990 = vadd.f32 0.0, %v989
        %v991 = vpop.f32.mrb[0].mxu0
        %v992 = vadd.f32 0.0, %v991
        %993 = vmatprep.mubr.f32.mxu0 0.0
        %994 = vmatmul.mubr.f32.gmra.mrb[0].mxu0 %v613
        %v995 = vpop.f32.mrb[0].mxu0
        %v996 = vadd.f32 0.0, %v995
        %v997 = vpop.f32.mrb[0].mxu0
        %v998 = vadd.f32 0.0, %v997
        %999 = vdwg.mxu0
        %v1000 = vmax.f32 %v695, %v901
        %v1001 = vmax.f32 %v697, %v903
        %v1002 = vmax.f32 %v778, %v984
        %v1003 = vmax.f32 %v780, %v986
        %v1004 = vmax.f32 %v701, %v907
        %v1005 = vmax.f32 %v703, %v909
        %v1006 = vmax.f32 %v784, %v990
        %v1007 = vmax.f32 %v786, %v992
        %v1008 = vmax.f32 %v707, %v913
        %v1009 = vmax.f32 %v709, %v915
        %v1010 = vmax.f32 %v790, %v996
        %v1011 = vmax.f32 %v792, %v998
        %v1012 = vld [vmem:[%s537 + $0x40] sm:$0xff]
        %v1013 = vld [vmem:[%s537 + $0x48] sm:$0xff]
        %v1014 = vld [vmem:[%s537 + $0x50] sm:$0xff]
        %v1015 = vld [vmem:[%s537 + $0x58] sm:$0xff]
        %v1016 = vld [vmem:[%s537 + $0xc0] sm:$0xff]
        %v1017 = vld [vmem:[%s537 + $0xc8] sm:$0xff]
        %v1018 = vld [vmem:[%s537 + $0xd0] sm:$0xff]
        %v1019 = vld [vmem:[%s537 + $0xd8] sm:$0xff]
        %v1020 = vld [vmem:[%s537 + $0x140] sm:$0xff]
        %v1021 = vld [vmem:[%s537 + $0x148] sm:$0xff]
        %v1022 = vld [vmem:[%s537 + $0x150] sm:$0xff]
        %v1023 = vld [vmem:[%s537 + $0x158] sm:$0xff]
        %v1024 = vld [vmem:[%s537 + $0x1c0] sm:$0xff]
        %v1025 = vld [vmem:[%s537 + $0x1c8] sm:$0xff]
        %v1026 = vld [vmem:[%s537 + $0x1d0] sm:$0xff]
        %v1027 = vld [vmem:[%s537 + $0x1d8] sm:$0xff]
        %v1028 = vld [vmem:[%s537 + $0x240] sm:$0xff]
        %v1029 = vld [vmem:[%s537 + $0x248] sm:$0xff]
        %v1030 = vld [vmem:[%s537 + $0x250] sm:$0xff]
        %v1031 = vld [vmem:[%s537 + $0x258] sm:$0xff]
        %v1032 = vld [vmem:[%s537 + $0x2c0] sm:$0xff]
        %v1033 = vld [vmem:[%s537 + $0x2c8] sm:$0xff]
        %v1034 = vld [vmem:[%s537 + $0x2d0] sm:$0xff]
        %v1035 = vld [vmem:[%s537 + $0x2d8] sm:$0xff]
        %v1036 = vld [vmem:[%s537 + $0x340] sm:$0x3]
        %v1037 = vld [vmem:[%s537 + $0x348] sm:$0x3]
        %v1038 = vld [vmem:[%s537 + $0x350] sm:$0x3]
        %v1039 = vld [vmem:[%s537 + $0x358] sm:$0x3]
        %v1041 = vsel %vm615, %v1036, 0
        %v1044 = vsel %vm615, %v1037, 0
        %v1047 = vsel %vm615, %v1038, 0
        %v1050 = vsel %vm615, %v1039, 0
        %1052 = vmatprep.subr.mxu0 %v1013
        %1053 = vmatpush1.msra.mxu0 %v1012
        %1054 = vmatprep.subr.mxu0 %v1017
        %1055 = vmatpush1.msra.mxu0 %v1016
        %1056 = vmatprep.subr.mxu0 %v1021
        %1057 = vmatpush1.msra.mxu0 %v1020
        %1058 = vmatprep.subr.mxu0 %v1025
        %1059 = vmatpush1.msra.mxu0 %v1024
        %1060 = vmatprep.subr.mxu0 %v1029
        %1061 = vmatpush1.msra.mxu0 %v1028
        %1062 = vmatprep.subr.mxu0 %v1033
        %1063 = vmatpush1.msra.mxu0 %v1032
        %1064 = vmatprep.subr.mxu0 %v1044
        %1065 = vmatpush1.msra.mxu0 %v1041
        %1066 = vmatprep.subr.mxu0 0.0
        %1067 = vmatpush1.msra.mxu0 0.0
        %1068 = vmatprep.subr.mxu0 0.0
        %1069 = vmatpush1.msra.mxu0 0.0
        %1070 = vmatprep.subr.mxu0 0.0
        %1071 = vmatpush1.msra.mxu0 0.0
        %1072 = vmatprep.subr.mxu0 0.0
        %1073 = vmatpush1.msra.mxu0 0.0
        %1074 = vmatprep.subr.mxu0 0.0
        %1075 = vmatpush1.msra.mxu0 0.0
        %1076 = vmatprep.subr.mxu0 0.0
        %1077 = vmatpush1.msra.mxu0 0.0
        %1078 = vmatprep.subr.mxu0 0.0
        %1079 = vmatpush1.msra.mxu0 0.0
        %1080 = vmatprep.subr.mxu0 0.0
        %1081 = vmatpush1.msra.mxu0 0.0
        %1082 = vmatprep.subr.mxu0 0.0
        %1083 = vmatpush1.msra.mxu0 0.0
        %1084 = vmatprep.subr.mxu0 0.0
        %1085 = vmatpush1.msra.mxu0 0.0
        %1086 = vmatprep.subr.mxu0 0.0
        %1087 = vmatpush1.msra.mxu0 0.0
        %1088 = vmatprep.subr.mxu0 0.0
        %1089 = vmatpush1.msra.mxu0 0.0
        %1090 = vmatprep.subr.mxu0 0.0
        %1091 = vmatpush1.msra.mxu0 0.0
        %1092 = vmatprep.subr.mxu0 0.0
        %1093 = vmatpush1.msra.mxu0 0.0
        %1094 = vmatprep.subr.mxu0 0.0
        %1095 = vmatpush1.msra.mxu0 0.0
        %1096 = vmatprep.subr.mxu0 0.0
        %1097 = vmatpush1.msra.mxu0 0.0
        %1098 = vmatprep.subr.mxu0 0.0
        %1099 = vmatpush1.msra.mxu0 0.0
        %1100 = vmatprep.subr.mxu0 0.0
        %1101 = vmatpush1.msra.mxu0 0.0
        %1102 = vmatprep.subr.mxu0 0.0
        %1103 = vmatpush1.msra.mxu0 0.0
        %1104 = vmatprep.subr.mxu0 0.0
        %1105 = vmatpush1.msra.mxu0 0.0
        %1106 = vmatprep.subr.mxu0 0.0
        %1107 = vmatpush1.msra.mxu0 0.0
        %1108 = vmatprep.subr.mxu0 0.0
        %1109 = vmatpush1.msra.mxu0 0.0
        %1110 = vmatprep.subr.mxu0 0.0
        %1111 = vmatpush1.msra.mxu0 0.0
        %1112 = vmatprep.subr.mxu0 0.0
        %1113 = vmatpush1.msra.mxu0 0.0
        %1114 = vmatprep.subr.mxu0 0.0
        %1115 = vmatpush1.msra.mxu0 0.0
        %1116 = vmatprep.mubr.f32.mxu0 0.0
        %1117 = vmatmul.mubr.f32.gmra.mrb[0].mxu0 %v607
        %v1118 = vpop.f32.mrb[0].mxu0
        %v1119 = vadd.f32 0.0, %v1118
        %v1120 = vpop.f32.mrb[0].mxu0
        %v1121 = vadd.f32 0.0, %v1120
        %1122 = vmatprep.mubr.f32.mxu0 0.0
        %1123 = vmatmul.mubr.f32.gmra.mrb[0].mxu0 %v610
        %v1124 = vpop.f32.mrb[0].mxu0
        %v1125 = vadd.f32 0.0, %v1124
        %v1126 = vpop.f32.mrb[0].mxu0
        %v1127 = vadd.f32 0.0, %v1126
        %1128 = vmatprep.mubr.f32.mxu0 0.0
        %1129 = vmatmul.mubr.f32.gmra.mrb[0].mxu0 %v613
        %v1130 = vpop.f32.mrb[0].mxu0
        %v1131 = vadd.f32 0.0, %v1130
        %v1132 = vpop.f32.mrb[0].mxu0
        %v1133 = vadd.f32 0.0, %v1132
        %1134 = vdwg.mxu0
        %1135 = vmatprep.subr.mxu0 %v1015
        %1136 = vmatpush1.msra.mxu0 %v1014
        %1137 = vmatprep.subr.mxu0 %v1019
        %1138 = vmatpush1.msra.mxu0 %v1018
        %1139 = vmatprep.subr.mxu0 %v1023
        %1140 = vmatpush1.msra.mxu0 %v1022
        %1141 = vmatprep.subr.mxu0 %v1027
        %1142 = vmatpush1.msra.mxu0 %v1026
        %1143 = vmatprep.subr.mxu0 %v1031
        %1144 = vmatpush1.msra.mxu0 %v1030
        %1145 = vmatprep.subr.mxu0 %v1035
        %1146 = vmatpush1.msra.mxu0 %v1034
        %1147 = vmatprep.subr.mxu0 %v1050
        %1148 = vmatpush1.msra.mxu0 %v1047
        %1149 = vmatprep.subr.mxu0 0.0
        %1150 = vmatpush1.msra.mxu0 0.0
        %1151 = vmatprep.subr.mxu0 0.0
        %1152 = vmatpush1.msra.mxu0 0.0
        %1153 = vmatprep.subr.mxu0 0.0
        %1154 = vmatpush1.msra.mxu0 0.0
        %1155 = vmatprep.subr.mxu0 0.0
        %1156 = vmatpush1.msra.mxu0 0.0
        %1157 = vmatprep.subr.mxu0 0.0
        %1158 = vmatpush1.msra.mxu0 0.0
        %1159 = vmatprep.subr.mxu0 0.0
        %1160 = vmatpush1.msra.mxu0 0.0
        %1161 = vmatprep.subr.mxu0 0.0
        %1162 = vmatpush1.msra.mxu0 0.0
        %1163 = vmatprep.subr.mxu0 0.0
        %1164 = vmatpush1.msra.mxu0 0.0
        %1165 = vmatprep.subr.mxu0 0.0
        %1166 = vmatpush1.msra.mxu0 0.0
        %1167 = vmatprep.subr.mxu0 0.0
        %1168 = vmatpush1.msra.mxu0 0.0
        %1169 = vmatprep.subr.mxu0 0.0
        %1170 = vmatpush1.msra.mxu0 0.0
        %1171 = vmatprep.subr.mxu0 0.0
        %1172 = vmatpush1.msra.mxu0 0.0
        %1173 = vmatprep.subr.mxu0 0.0
        %1174 = vmatpush1.msra.mxu0 0.0
        %1175 = vmatprep.subr.mxu0 0.0
        %1176 = vmatpush1.msra.mxu0 0.0
        %1177 = vmatprep.subr.mxu0 0.0
        %1178 = vmatpush1.msra.mxu0 0.0
        %1179 = vmatprep.subr.mxu0 0.0
        %1180 = vmatpush1.msra.mxu0 0.0
        %1181 = vmatprep.subr.mxu0 0.0
        %1182 = vmatpush1.msra.mxu0 0.0
        %1183 = vmatprep.subr.mxu0 0.0
        %1184 = vmatpush1.msra.mxu0 0.0
        %1185 = vmatprep.subr.mxu0 0.0
        %1186 = vmatpush1.msra.mxu0 0.0
        %1187 = vmatprep.subr.mxu0 0.0
        %1188 = vmatpush1.msra.mxu0 0.0
        %1189 = vmatprep.subr.mxu0 0.0
        %1190 = vmatpush1.msra.mxu0 0.0
        %1191 = vmatprep.subr.mxu0 0.0
        %1192 = vmatpush1.msra.mxu0 0.0
        %1193 = vmatprep.subr.mxu0 0.0
        %1194 = vmatpush1.msra.mxu0 0.0
        %1195 = vmatprep.subr.mxu0 0.0
        %1196 = vmatpush1.msra.mxu0 0.0
        %1197 = vmatprep.subr.mxu0 0.0
        %1198 = vmatpush1.msra.mxu0 0.0
        %1199 = vmatprep.mubr.f32.mxu0 0.0
        %1200 = vmatmul.mubr.f32.gmra.mrb[0].mxu0 %v607
        %v1201 = vpop.f32.mrb[0].mxu0
        %v1202 = vadd.f32 0.0, %v1201
        %v1203 = vpop.f32.mrb[0].mxu0
        %v1204 = vadd.f32 0.0, %v1203
        %1205 = vmatprep.mubr.f32.mxu0 0.0
        %1206 = vmatmul.mubr.f32.gmra.mrb[0].mxu0 %v610
        %v1207 = vpop.f32.mrb[0].mxu0
        %v1208 = vadd.f32 0.0, %v1207
        %v1209 = vpop.f32.mrb[0].mxu0
        %v1210 = vadd.f32 0.0, %v1209
        %1211 = vmatprep.mubr.f32.mxu0 0.0
        %1212 = vmatmul.mubr.f32.gmra.mrb[0].mxu0 %v613
        %v1213 = vpop.f32.mrb[0].mxu0
        %v1214 = vadd.f32 0.0, %v1213
        %v1215 = vpop.f32.mrb[0].mxu0
        %v1216 = vadd.f32 0.0, %v1215
        %1217 = vdwg.mxu0
        %v1218 = vmax.f32 %v1000, %v1119
        %v1219 = vmax.f32 %v1001, %v1121
        %v1220 = vmax.f32 %v1002, %v1202
        %v1221 = vmax.f32 %v1003, %v1204
        %v1222 = vmax.f32 %v1004, %v1125
        %v1223 = vmax.f32 %v1005, %v1127
        %v1224 = vmax.f32 %v1006, %v1208
        %v1225 = vmax.f32 %v1007, %v1210
        %v1226 = vmax.f32 %v1008, %v1131
        %v1227 = vmax.f32 %v1009, %v1133
        %v1228 = vmax.f32 %v1010, %v1214
        %v1229 = vmax.f32 %v1011, %v1216
        %v1230 = vld [vmem:[%s537 + $0x60] sm:$0xff]
        %v1231 = vld [vmem:[%s537 + $0x68] sm:$0xff]
        %v1232 = vld [vmem:[%s537 + $0x70] sm:$0xff]
        %v1233 = vld [vmem:[%s537 + $0x78] sm:$0xff]
        %v1234 = vld [vmem:[%s537 + $0xe0] sm:$0xff]
        %v1235 = vld [vmem:[%s537 + $0xe8] sm:$0xff]
        %v1236 = vld [vmem:[%s537 + $0xf0] sm:$0xff]
        %v1237 = vld [vmem:[%s537 + $0xf8] sm:$0xff]
        %v1238 = vld [vmem:[%s537 + $0x160] sm:$0xff]
        %v1239 = vld [vmem:[%s537 + $0x168] sm:$0xff]
        %v1240 = vld [vmem:[%s537 + $0x170] sm:$0xff]
        %v1241 = vld [vmem:[%s537 + $0x178] sm:$0xff]
        %v1242 = vld [vmem:[%s537 + $0x1e0] sm:$0xff]
        %v1243 = vld [vmem:[%s537 + $0x1e8] sm:$0xff]
        %v1244 = vld [vmem:[%s537 + $0x1f0] sm:$0xff]
        %v1245 = vld [vmem:[%s537 + $0x1f8] sm:$0xff]
        %v1246 = vld [vmem:[%s537 + $0x260] sm:$0xff]
        %v1247 = vld [vmem:[%s537 + $0x268] sm:$0xff]
        %v1248 = vld [vmem:[%s537 + $0x270] sm:$0xff]
        %v1249 = vld [vmem:[%s537 + $0x278] sm:$0xff]
        %v1250 = vld [vmem:[%s537 + $0x2e0] sm:$0xff]
        %v1251 = vld [vmem:[%s537 + $0x2e8] sm:$0xff]
        %v1252 = vld [vmem:[%s537 + $0x2f0] sm:$0xff]
        %v1253 = vld [vmem:[%s537 + $0x2f8] sm:$0xff]
        %v1254 = vld [vmem:[%s537 + $0x360] sm:$0x3]
        %v1255 = vld [vmem:[%s537 + $0x368] sm:$0x3]
        %v1256 = vld [vmem:[%s537 + $0x370] sm:$0x3]
        %v1257 = vld [vmem:[%s537 + $0x378] sm:$0x3]
        %v1259 = vsel %vm615, %v1254, 0
        %v1262 = vsel %vm615, %v1255, 0
        %v1265 = vsel %vm615, %v1256, 0
        %v1268 = vsel %vm615, %v1257, 0
        %1270 = vmatprep.subr.mxu0 %v1231
        %1271 = vmatpush1.msra.mxu0 %v1230
        %1272 = vmatprep.subr.mxu0 %v1235
        %1273 = vmatpush1.msra.mxu0 %v1234
        %1274 = vmatprep.subr.mxu0 %v1239
        %1275 = vmatpush1.msra.mxu0 %v1238
        %1276 = vmatprep.subr.mxu0 %v1243
        %1277 = vmatpush1.msra.mxu0 %v1242
        %1278 = vmatprep.subr.mxu0 %v1247
        %1279 = vmatpush1.msra.mxu0 %v1246
        %1280 = vmatprep.subr.mxu0 %v1251
        %1281 = vmatpush1.msra.mxu0 %v1250
        %1282 = vmatprep.subr.mxu0 %v1262
        %1283 = vmatpush1.msra.mxu0 %v1259
        %1284 = vmatprep.subr.mxu0 0.0
        %1285 = vmatpush1.msra.mxu0 0.0
        %1286 = vmatprep.subr.mxu0 0.0
        %1287 = vmatpush1.msra.mxu0 0.0
        %1288 = vmatprep.subr.mxu0 0.0
        %1289 = vmatpush1.msra.mxu0 0.0
        %1290 = vmatprep.subr.mxu0 0.0
        %1291 = vmatpush1.msra.mxu0 0.0
        %1292 = vmatprep.subr.mxu0 0.0
        %1293 = vmatpush1.msra.mxu0 0.0
        %1294 = vmatprep.subr.mxu0 0.0
        %1295 = vmatpush1.msra.mxu0 0.0
        %1296 = vmatprep.subr.mxu0 0.0
        %1297 = vmatpush1.msra.mxu0 0.0
        %1298 = vmatprep.subr.mxu0 0.0
        %1299 = vmatpush1.msra.mxu0 0.0
        %1300 = vmatprep.subr.mxu0 0.0
        %1301 = vmatpush1.msra.mxu0 0.0
        %1302 = vmatprep.subr.mxu0 0.0
        %1303 = vmatpush1.msra.mxu0 0.0
        %1304 = vmatprep.subr.mxu0 0.0
        %1305 = vmatpush1.msra.mxu0 0.0
        %1306 = vmatprep.subr.mxu0 0.0
        %1307 = vmatpush1.msra.mxu0 0.0
        %1308 = vmatprep.subr.mxu0 0.0
        %1309 = vmatpush1.msra.mxu0 0.0
        %1310 = vmatprep.subr.mxu0 0.0
        %1311 = vmatpush1.msra.mxu0 0.0
        %1312 = vmatprep.subr.mxu0 0.0
        %1313 = vmatpush1.msra.mxu0 0.0
        %1314 = vmatprep.subr.mxu0 0.0
        %1315 = vmatpush1.msra.mxu0 0.0
        %1316 = vmatprep.subr.mxu0 0.0
        %1317 = vmatpush1.msra.mxu0 0.0
        %1318 = vmatprep.subr.mxu0 0.0
        %1319 = vmatpush1.msra.mxu0 0.0
        %1320 = vmatprep.subr.mxu0 0.0
        %1321 = vmatpush1.msra.mxu0 0.0
        %1322 = vmatprep.subr.mxu0 0.0
        %1323 = vmatpush1.msra.mxu0 0.0
        %1324 = vmatprep.subr.mxu0 0.0
        %1325 = vmatpush1.msra.mxu0 0.0
        %1326 = vmatprep.subr.mxu0 0.0
        %1327 = vmatpush1.msra.mxu0 0.0
        %1328 = vmatprep.subr.mxu0 0.0
        %1329 = vmatpush1.msra.mxu0 0.0
        %1330 = vmatprep.subr.mxu0 0.0
        %1331 = vmatpush1.msra.mxu0 0.0
        %1332 = vmatprep.subr.mxu0 0.0
        %1333 = vmatpush1.msra.mxu0 0.0
        %1334 = vmatprep.mubr.f32.mxu0 0.0
        %1335 = vmatmul.mubr.f32.gmra.mrb[0].mxu0 %v607
        %v1336 = vpop.f32.mrb[0].mxu0
        %v1337 = vadd.f32 0.0, %v1336
        %v1338 = vpop.f32.mrb[0].mxu0
        %v1339 = vadd.f32 0.0, %v1338
        %1340 = vmatprep.mubr.f32.mxu0 0.0
        %1341 = vmatmul.mubr.f32.gmra.mrb[0].mxu0 %v610
        %v1342 = vpop.f32.mrb[0].mxu0
        %v1343 = vadd.f32 0.0, %v1342
        %v1344 = vpop.f32.mrb[0].mxu0
        %v1345 = vadd.f32 0.0, %v1344
        %1346 = vmatprep.mubr.f32.mxu0 0.0
        %1347 = vmatmul.mubr.f32.gmra.mrb[0].mxu0 %v613
        %v1348 = vpop.f32.mrb[0].mxu0
        %v1349 = vadd.f32 0.0, %v1348
        %v1350 = vpop.f32.mrb[0].mxu0
        %v1351 = vadd.f32 0.0, %v1350
        %1352 = vdwg.mxu0
        %1353 = vmatprep.subr.mxu0 %v1233
        %1354 = vmatpush1.msra.mxu0 %v1232
        %1355 = vmatprep.subr.mxu0 %v1237
        %1356 = vmatpush1.msra.mxu0 %v1236
        %1357 = vmatprep.subr.mxu0 %v1241
        %1358 = vmatpush1.msra.mxu0 %v1240
        %1359 = vmatprep.subr.mxu0 %v1245
        %1360 = vmatpush1.msra.mxu0 %v1244
        %1361 = vmatprep.subr.mxu0 %v1249
        %1362 = vmatpush1.msra.mxu0 %v1248
        %1363 = vmatprep.subr.mxu0 %v1253
        %1364 = vmatpush1.msra.mxu0 %v1252
        %1365 = vmatprep.subr.mxu0 %v1268
        %1366 = vmatpush1.msra.mxu0 %v1265
        %1367 = vmatprep.subr.mxu0 0.0
        %1368 = vmatpush1.msra.mxu0 0.0
        %1369 = vmatprep.subr.mxu0 0.0
        %1370 = vmatpush1.msra.mxu0 0.0
        %1371 = vmatprep.subr.mxu0 0.0
        %1372 = vmatpush1.msra.mxu0 0.0
        %1373 = vmatprep.subr.mxu0 0.0
        %1374 = vmatpush1.msra.mxu0 0.0
        %1375 = vmatprep.subr.mxu0 0.0
        %1376 = vmatpush1.msra.mxu0 0.0
        %1377 = vmatprep.subr.mxu0 0.0
        %1378 = vmatpush1.msra.mxu0 0.0
        %1379 = vmatprep.subr.mxu0 0.0
        %1380 = vmatpush1.msra.mxu0 0.0
        %1381 = vmatprep.subr.mxu0 0.0
        %1382 = vmatpush1.msra.mxu0 0.0
        %1383 = vmatprep.subr.mxu0 0.0
        %1384 = vmatpush1.msra.mxu0 0.0
        %1385 = vmatprep.subr.mxu0 0.0
        %1386 = vmatpush1.msra.mxu0 0.0
        %1387 = vmatprep.subr.mxu0 0.0
        %1388 = vmatpush1.msra.mxu0 0.0
        %1389 = vmatprep.subr.mxu0 0.0
        %1390 = vmatpush1.msra.mxu0 0.0
        %1391 = vmatprep.subr.mxu0 0.0
        %1392 = vmatpush1.msra.mxu0 0.0
        %1393 = vmatprep.subr.mxu0 0.0
        %1394 = vmatpush1.msra.mxu0 0.0
        %1395 = vmatprep.subr.mxu0 0.0
        %1396 = vmatpush1.msra.mxu0 0.0
        %1397 = vmatprep.subr.mxu0 0.0
        %1398 = vmatpush1.msra.mxu0 0.0
        %1399 = vmatprep.subr.mxu0 0.0
        %1400 = vmatpush1.msra.mxu0 0.0
        %1401 = vmatprep.subr.mxu0 0.0
        %1402 = vmatpush1.msra.mxu0 0.0
        %1403 = vmatprep.subr.mxu0 0.0
        %1404 = vmatpush1.msra.mxu0 0.0
        %1405 = vmatprep.subr.mxu0 0.0
        %1406 = vmatpush1.msra.mxu0 0.0
        %1407 = vmatprep.subr.mxu0 0.0
        %1408 = vmatpush1.msra.mxu0 0.0
        %1409 = vmatprep.subr.mxu0 0.0
        %1410 = vmatpush1.msra.mxu0 0.0
        %1411 = vmatprep.subr.mxu0 0.0
        %1412 = vmatpush1.msra.mxu0 0.0
        %1413 = vmatprep.subr.mxu0 0.0
        %1414 = vmatpush1.msra.mxu0 0.0
        %1415 = vmatprep.subr.mxu0 0.0
        %1416 = vmatpush1.msra.mxu0 0.0
        %1417 = vmatprep.mubr.f32.mxu0 0.0
        %1418 = vmatmul.mubr.f32.gmra.mrb[0].mxu0 %v607
        %v1419 = vpop.f32.mrb[0].mxu0
        %v1420 = vadd.f32 0.0, %v1419
        %v1421 = vpop.f32.mrb[0].mxu0
        %v1422 = vadd.f32 0.0, %v1421
        %1423 = vmatprep.mubr.f32.mxu0 0.0
        %1424 = vmatmul.mubr.f32.gmra.mrb[0].mxu0 %v610
        %v1425 = vpop.f32.mrb[0].mxu0
        %v1426 = vadd.f32 0.0, %v1425
        %v1427 = vpop.f32.mrb[0].mxu0
        %v1428 = vadd.f32 0.0, %v1427
        %1429 = vmatprep.mubr.f32.mxu0 0.0
        %1430 = vmatmul.mubr.f32.gmra.mrb[0].mxu0 %v613
        %v1431 = vpop.f32.mrb[0].mxu0
        %v1432 = vadd.f32 0.0, %v1431
        %v1433 = vpop.f32.mrb[0].mxu0
        %v1434 = vadd.f32 0.0, %v1433
        %1435 = vdwg.mxu0
        %v1436 = vmax.f32 %v1218, %v1337
        %v1437 = vmax.f32 %v1219, %v1339
        %v1438 = vmax.f32 %v1220, %v1420
        %v1439 = vmax.f32 %v1221, %v1422
        %v1440 = vmax.f32 %v1222, %v1343
        %v1441 = vmax.f32 %v1223, %v1345
        %v1442 = vmax.f32 %v1224, %v1426
        %v1443 = vmax.f32 %v1225, %v1428
        %v1444 = vmax.f32 %v1226, %v1349
        %v1445 = vmax.f32 %v1227, %v1351
        %v1446 = vmax.f32 %v1228, %v1432
        %v1447 = vmax.f32 %v1229, %v1434
        %v1448 = vld [vmem:[%s2] sm:$0xff]
        %v1449 = vld [vmem:[%s2 + $0x8] sm:$0xff]
        %v1450 = vld [vmem:[%s2 + $0x10] sm:$0xf]
        %1452 = vset.pattern.permute.xlu0 0
        %1453 = vperm.xlu0 %1452, %v1448
        %v1454 = vpop.permute.xlu0 %1453
        %1457 = vset.pattern.permute.xlu0 0
        %1458 = vperm.xlu0 %1457, %v1449
        %v1459 = vpop.permute.xlu0 %1458
        %1462 = vset.pattern.permute.xlu0 0
        %1463 = vperm.xlu0 %1462, %v1450
        %v1464 = vpop.permute.xlu0 %1463
        %v1466 = vadd.f32 %v1436, %v1454
        %v1467 = vadd.f32 %v1437, %v1454
        %v1468 = vadd.f32 %v1438, %v1454
        %v1469 = vadd.f32 %v1439, %v1454
        %v1470 = vadd.f32 %v1440, %v1459
        %v1471 = vadd.f32 %v1441, %v1459
        %v1472 = vadd.f32 %v1442, %v1459
        %v1473 = vadd.f32 %v1443, %v1459
        %v1474 = vadd.f32 %v1444, %v1464
        %v1475 = vadd.f32 %v1445, %v1464
        %v1476 = vadd.f32 %v1446, %v1464
        %v1477 = vadd.f32 %v1447, %v1464
        %v1478 = vmax.f32 %v1466, 0.0
        %v1479 = vmax.f32 %v1467, 0.0
        %v1480 = vmax.f32 %v1468, 0.0
        %v1481 = vmax.f32 %v1469, 0.0
        %v1482 = vmax.f32 %v1470, 0.0
        %v1483 = vmax.f32 %v1471, 0.0
        %v1484 = vmax.f32 %v1472, 0.0
        %v1485 = vmax.f32 %v1473, 0.0
        %v1486 = vmax.f32 %v1474, 0.0
        %v1487 = vmax.f32 %v1475, 0.0
        %v1488 = vmax.f32 %v1476, 0.0
        %v1489 = vmax.f32 %v1477, 0.0
        %vm1490 = vcmask 516096
        %1491 = vst.msk [vmem:[#allocation2] sm:$0x1] %vm1490, %v1478
        %v1493 = vrot.slane %v1478, 1
        %1494 = vrot.lane.b32.xlu0 %v1493, 64
        %v1495 = vpop.permute.xlu0 %1494
        %vm1497 = vcmask 1040896
        %1498 = vst.msk [vmem:[#allocation2] sm:$0x1] %vm1497, %v1495
        %v1499 = vrot.slane %v1478, 2
        %1501 = vst.msk [vmem:[#allocation2 + $0x8] sm:$0x1] %vm1490, %v1499
        %v1502 = vrot.slane %v1478, 3
        %1503 = vrot.lane.b32.xlu0 %v1502, 64
        %v1504 = vpop.permute.xlu0 %1503
        %1506 = vst.msk [vmem:[#allocation2 + $0x8] sm:$0x1] %vm1497, %v1504
        %v1507 = vrot.slane %v1478, 4
        %1509 = vst.msk [vmem:[#allocation2 + $0x10] sm:$0x1] %vm1490, %v1507
        %v1510 = vrot.slane %v1478, 5
        %1511 = vrot.lane.b32.xlu0 %v1510, 64
        %v1512 = vpop.permute.xlu0 %1511
        %1514 = vst.msk [vmem:[#allocation2 + $0x10] sm:$0x1] %vm1497, %v1512
        %v1515 = vrot.slane %v1478, 6
        %1517 = vst.msk [vmem:[#allocation2 + $0x18] sm:$0x1] %vm1490, %v1515
        %v1518 = vrot.slane %v1478, 7
        %1519 = vrot.lane.b32.xlu0 %v1518, 64
        %v1520 = vpop.permute.xlu0 %1519
        %1522 = vst.msk [vmem:[#allocation2 + $0x18] sm:$0x1] %vm1497, %v1520
        %1523 = vst.msk [vmem:[#allocation2 + $0x20] sm:$0x1] %vm1490, %v1482
        %v1525 = vrot.slane %v1482, 1
        %1526 = vrot.lane.b32.xlu0 %v1525, 64
        %v1527 = vpop.permute.xlu0 %1526
        %1529 = vst.msk [vmem:[#allocation2 + $0x20] sm:$0x1] %vm1497, %v1527
        %v1530 = vrot.slane %v1482, 2
        %1532 = vst.msk [vmem:[#allocation2 + $0x28] sm:$0x1] %vm1490, %v1530
        %v1533 = vrot.slane %v1482, 3
        %1534 = vrot.lane.b32.xlu0 %v1533, 64
        %v1535 = vpop.permute.xlu0 %1534
        %1537 = vst.msk [vmem:[#allocation2 + $0x28] sm:$0x1] %vm1497, %v1535
        %v1538 = vrot.slane %v1482, 4
        %1540 = vst.msk [vmem:[#allocation2 + $0x30] sm:$0x1] %vm1490, %v1538
        %v1541 = vrot.slane %v1482, 5
        %1542 = vrot.lane.b32.xlu0 %v1541, 64
        %v1543 = vpop.permute.xlu0 %1542
        %1545 = vst.msk [vmem:[#allocation2 + $0x30] sm:$0x1] %vm1497, %v1543
        %v1546 = vrot.slane %v1482, 6
        %1548 = vst.msk [vmem:[#allocation2 + $0x38] sm:$0x1] %vm1490, %v1546
        %v1549 = vrot.slane %v1482, 7
        %1550 = vrot.lane.b32.xlu0 %v1549, 64
        %v1551 = vpop.permute.xlu0 %1550
        %1553 = vst.msk [vmem:[#allocation2 + $0x38] sm:$0x1] %vm1497, %v1551
        %1554 = vst.msk [vmem:[#allocation2 + $0x40] sm:$0x1] %vm1490, %v1486
        %v1556 = vrot.slane %v1486, 1
        %1557 = vrot.lane.b32.xlu0 %v1556, 64
        %v1558 = vpop.permute.xlu0 %1557
        %1560 = vst.msk [vmem:[#allocation2 + $0x40] sm:$0x1] %vm1497, %v1558
        %v1561 = vrot.slane %v1486, 2
        %1563 = vst.msk [vmem:[#allocation2 + $0x48] sm:$0x1] %vm1490, %v1561
        %v1564 = vrot.slane %v1486, 3
        %1565 = vrot.lane.b32.xlu0 %v1564, 64
        %v1566 = vpop.permute.xlu0 %1565
        %1568 = vst.msk [vmem:[#allocation2 + $0x48] sm:$0x1] %vm1497, %v1566
        %1569 = vrot.lane.b32.xlu0 %v1478, 64
        %v1570 = vpop.permute.xlu0 %1569
        %1572 = vst.msk [vmem:[#allocation2 + $0x1] sm:$0x1] %vm1490, %v1570
        %1574 = vst.msk [vmem:[#allocation2 + $0x1] sm:$0x1] %vm1497, %v1493
        %1575 = vrot.lane.b32.xlu0 %v1499, 64
        %v1576 = vpop.permute.xlu0 %1575
        %1578 = vst.msk [vmem:[#allocation2 + $0x9] sm:$0x1] %vm1490, %v1576
        %1580 = vst.msk [vmem:[#allocation2 + $0x9] sm:$0x1] %vm1497, %v1502
        %1581 = vrot.lane.b32.xlu0 %v1507, 64
        %v1582 = vpop.permute.xlu0 %1581
        %1584 = vst.msk [vmem:[#allocation2 + $0x11] sm:$0x1] %vm1490, %v1582
        %1586 = vst.msk [vmem:[#allocation2 + $0x11] sm:$0x1] %vm1497, %v1510
        %1587 = vrot.lane.b32.xlu0 %v1515, 64
        %v1588 = vpop.permute.xlu0 %1587
        %1590 = vst.msk [vmem:[#allocation2 + $0x19] sm:$0x1] %vm1490, %v1588
        %1592 = vst.msk [vmem:[#allocation2 + $0x19] sm:$0x1] %vm1497, %v1518
        %1593 = vrot.lane.b32.xlu0 %v1482, 64
        %v1594 = vpop.permute.xlu0 %1593
        %1596 = vst.msk [vmem:[#allocation2 + $0x21] sm:$0x1] %vm1490, %v1594
        %1598 = vst.msk [vmem:[#allocation2 + $0x21] sm:$0x1] %vm1497, %v1525
        %1599 = vrot.lane.b32.xlu0 %v1530, 64
        %v1600 = vpop.permute.xlu0 %1599
        %1602 = vst.msk [vmem:[#allocation2 + $0x29] sm:$0x1] %vm1490, %v1600
        %1604 = vst.msk [vmem:[#allocation2 + $0x29] sm:$0x1] %vm1497, %v1533
        %1605 = vrot.lane.b32.xlu0 %v1538, 64
        %v1606 = vpop.permute.xlu0 %1605
        %1608 = vst.msk [vmem:[#allocation2 + $0x31] sm:$0x1] %vm1490, %v1606
        %1610 = vst.msk [vmem:[#allocation2 + $0x31] sm:$0x1] %vm1497, %v1541
        %1611 = vrot.lane.b32.xlu0 %v1546, 64
        %v1612 = vpop.permute.xlu0 %1611
        %1614 = vst.msk [vmem:[#allocation2 + $0x39] sm:$0x1] %vm1490, %v1612
        %1616 = vst.msk [vmem:[#allocation2 + $0x39] sm:$0x1] %vm1497, %v1549
        %1617 = vrot.lane.b32.xlu0 %v1486, 64
        %v1618 = vpop.permute.xlu0 %1617
        %1620 = vst.msk [vmem:[#allocation2 + $0x41] sm:$0x1] %vm1490, %v1618
        %1622 = vst.msk [vmem:[#allocation2 + $0x41] sm:$0x1] %vm1497, %v1556
        %1623 = vrot.lane.b32.xlu0 %v1561, 64
        %v1624 = vpop.permute.xlu0 %1623
        %1626 = vst.msk [vmem:[#allocation2 + $0x49] sm:$0x1] %vm1490, %v1624
        %1628 = vst.msk [vmem:[#allocation2 + $0x49] sm:$0x1] %vm1497, %v1564
        %1629 = vst.msk [vmem:[#allocation2 + $0x2] sm:$0x1] %vm1490, %v1479
        %v1631 = vrot.slane %v1479, 1
        %1632 = vrot.lane.b32.xlu0 %v1631, 64
        %v1633 = vpop.permute.xlu0 %1632
        %1635 = vst.msk [vmem:[#allocation2 + $0x2] sm:$0x1] %vm1497, %v1633
        %v1636 = vrot.slane %v1479, 2
        %1638 = vst.msk [vmem:[#allocation2 + $0xa] sm:$0x1] %vm1490, %v1636
        %v1639 = vrot.slane %v1479, 3
        %1640 = vrot.lane.b32.xlu0 %v1639, 64
        %v1641 = vpop.permute.xlu0 %1640
        %1643 = vst.msk [vmem:[#allocation2 + $0xa] sm:$0x1] %vm1497, %v1641
        %v1644 = vrot.slane %v1479, 4
        %1646 = vst.msk [vmem:[#allocation2 + $0x12] sm:$0x1] %vm1490, %v1644
        %v1647 = vrot.slane %v1479, 5
        %1648 = vrot.lane.b32.xlu0 %v1647, 64
        %v1649 = vpop.permute.xlu0 %1648
        %1651 = vst.msk [vmem:[#allocation2 + $0x12] sm:$0x1] %vm1497, %v1649
        %v1652 = vrot.slane %v1479, 6
        %1654 = vst.msk [vmem:[#allocation2 + $0x1a] sm:$0x1] %vm1490, %v1652
        %v1655 = vrot.slane %v1479, 7
        %1656 = vrot.lane.b32.xlu0 %v1655, 64
        %v1657 = vpop.permute.xlu0 %1656
        %1659 = vst.msk [vmem:[#allocation2 + $0x1a] sm:$0x1] %vm1497, %v1657
        %1660 = vst.msk [vmem:[#allocation2 + $0x22] sm:$0x1] %vm1490, %v1483
        %v1662 = vrot.slane %v1483, 1
        %1663 = vrot.lane.b32.xlu0 %v1662, 64
        %v1664 = vpop.permute.xlu0 %1663
        %1666 = vst.msk [vmem:[#allocation2 + $0x22] sm:$0x1] %vm1497, %v1664
        %v1667 = vrot.slane %v1483, 2
        %1669 = vst.msk [vmem:[#allocation2 + $0x2a] sm:$0x1] %vm1490, %v1667
        %v1670 = vrot.slane %v1483, 3
        %1671 = vrot.lane.b32.xlu0 %v1670, 64
        %v1672 = vpop.permute.xlu0 %1671
        %1674 = vst.msk [vmem:[#allocation2 + $0x2a] sm:$0x1] %vm1497, %v1672
        %v1675 = vrot.slane %v1483, 4
        %1677 = vst.msk [vmem:[#allocation2 + $0x32] sm:$0x1] %vm1490, %v1675
        %v1678 = vrot.slane %v1483, 5
        %1679 = vrot.lane.b32.xlu0 %v1678, 64
        %v1680 = vpop.permute.xlu0 %1679
        %1682 = vst.msk [vmem:[#allocation2 + $0x32] sm:$0x1] %vm1497, %v1680
        %v1683 = vrot.slane %v1483, 6
        %1685 = vst.msk [vmem:[#allocation2 + $0x3a] sm:$0x1] %vm1490, %v1683
        %v1686 = vrot.slane %v1483, 7
        %1687 = vrot.lane.b32.xlu0 %v1686, 64
        %v1688 = vpop.permute.xlu0 %1687
        %1690 = vst.msk [vmem:[#allocation2 + $0x3a] sm:$0x1] %vm1497, %v1688
        %1691 = vst.msk [vmem:[#allocation2 + $0x42] sm:$0x1] %vm1490, %v1487
        %v1693 = vrot.slane %v1487, 1
        %1694 = vrot.lane.b32.xlu0 %v1693, 64
        %v1695 = vpop.permute.xlu0 %1694
        %1697 = vst.msk [vmem:[#allocation2 + $0x42] sm:$0x1] %vm1497, %v1695
        %v1698 = vrot.slane %v1487, 2
        %1700 = vst.msk [vmem:[#allocation2 + $0x4a] sm:$0x1] %vm1490, %v1698
        %v1701 = vrot.slane %v1487, 3
        %1702 = vrot.lane.b32.xlu0 %v1701, 64
        %v1703 = vpop.permute.xlu0 %1702
        %1705 = vst.msk [vmem:[#allocation2 + $0x4a] sm:$0x1] %vm1497, %v1703
        %1706 = vrot.lane.b32.xlu0 %v1479, 64
        %v1707 = vpop.permute.xlu0 %1706
        %1709 = vst.msk [vmem:[#allocation2 + $0x3] sm:$0x1] %vm1490, %v1707
        %1711 = vst.msk [vmem:[#allocation2 + $0x3] sm:$0x1] %vm1497, %v1631
        %1712 = vrot.lane.b32.xlu0 %v1636, 64
        %v1713 = vpop.permute.xlu0 %1712
        %1715 = vst.msk [vmem:[#allocation2 + $0xb] sm:$0x1] %vm1490, %v1713
        %1717 = vst.msk [vmem:[#allocation2 + $0xb] sm:$0x1] %vm1497, %v1639
        %1718 = vrot.lane.b32.xlu0 %v1644, 64
        %v1719 = vpop.permute.xlu0 %1718
        %1721 = vst.msk [vmem:[#allocation2 + $0x13] sm:$0x1] %vm1490, %v1719
        %1723 = vst.msk [vmem:[#allocation2 + $0x13] sm:$0x1] %vm1497, %v1647
        %1724 = vrot.lane.b32.xlu0 %v1652, 64
        %v1725 = vpop.permute.xlu0 %1724
        %1727 = vst.msk [vmem:[#allocation2 + $0x1b] sm:$0x1] %vm1490, %v1725
        %1729 = vst.msk [vmem:[#allocation2 + $0x1b] sm:$0x1] %vm1497, %v1655
        %1730 = vrot.lane.b32.xlu0 %v1483, 64
        %v1731 = vpop.permute.xlu0 %1730
        %1733 = vst.msk [vmem:[#allocation2 + $0x23] sm:$0x1] %vm1490, %v1731
        %1735 = vst.msk [vmem:[#allocation2 + $0x23] sm:$0x1] %vm1497, %v1662
        %1736 = vrot.lane.b32.xlu0 %v1667, 64
        %v1737 = vpop.permute.xlu0 %1736
        %1739 = vst.msk [vmem:[#allocation2 + $0x2b] sm:$0x1] %vm1490, %v1737
        %1741 = vst.msk [vmem:[#allocation2 + $0x2b] sm:$0x1] %vm1497, %v1670
        %1742 = vrot.lane.b32.xlu0 %v1675, 64
        %v1743 = vpop.permute.xlu0 %1742
        %1745 = vst.msk [vmem:[#allocation2 + $0x33] sm:$0x1] %vm1490, %v1743
        %1747 = vst.msk [vmem:[#allocation2 + $0x33] sm:$0x1] %vm1497, %v1678
        %1748 = vrot.lane.b32.xlu0 %v1683, 64
        %v1749 = vpop.permute.xlu0 %1748
        %1751 = vst.msk [vmem:[#allocation2 + $0x3b] sm:$0x1] %vm1490, %v1749
        %1753 = vst.msk [vmem:[#allocation2 + $0x3b] sm:$0x1] %vm1497, %v1686
        %1754 = vrot.lane.b32.xlu0 %v1487, 64
        %v1755 = vpop.permute.xlu0 %1754
        %1757 = vst.msk [vmem:[#allocation2 + $0x43] sm:$0x1] %vm1490, %v1755
        %1759 = vst.msk [vmem:[#allocation2 + $0x43] sm:$0x1] %vm1497, %v1693
        %1760 = vrot.lane.b32.xlu0 %v1698, 64
        %v1761 = vpop.permute.xlu0 %1760
        %1763 = vst.msk [vmem:[#allocation2 + $0x4b] sm:$0x1] %vm1490, %v1761
        %1765 = vst.msk [vmem:[#allocation2 + $0x4b] sm:$0x1] %vm1497, %v1701
        %1766 = vst.msk [vmem:[#allocation2 + $0x4] sm:$0x1] %vm1490, %v1480
        %v1768 = vrot.slane %v1480, 1
        %1769 = vrot.lane.b32.xlu0 %v1768, 64
        %v1770 = vpop.permute.xlu0 %1769
        %1772 = vst.msk [vmem:[#allocation2 + $0x4] sm:$0x1] %vm1497, %v1770
        %v1773 = vrot.slane %v1480, 2
        %1775 = vst.msk [vmem:[#allocation2 + $0xc] sm:$0x1] %vm1490, %v1773
        %v1776 = vrot.slane %v1480, 3
        %1777 = vrot.lane.b32.xlu0 %v1776, 64
        %v1778 = vpop.permute.xlu0 %1777
        %1780 = vst.msk [vmem:[#allocation2 + $0xc] sm:$0x1] %vm1497, %v1778
        %v1781 = vrot.slane %v1480, 4
        %1783 = vst.msk [vmem:[#allocation2 + $0x14] sm:$0x1] %vm1490, %v1781
        %v1784 = vrot.slane %v1480, 5
        %1785 = vrot.lane.b32.xlu0 %v1784, 64
        %v1786 = vpop.permute.xlu0 %1785
        %1788 = vst.msk [vmem:[#allocation2 + $0x14] sm:$0x1] %vm1497, %v1786
        %v1789 = vrot.slane %v1480, 6
        %1791 = vst.msk [vmem:[#allocation2 + $0x1c] sm:$0x1] %vm1490, %v1789
        %v1792 = vrot.slane %v1480, 7
        %1793 = vrot.lane.b32.xlu0 %v1792, 64
        %v1794 = vpop.permute.xlu0 %1793
        %1796 = vst.msk [vmem:[#allocation2 + $0x1c] sm:$0x1] %vm1497, %v1794
        %1797 = vst.msk [vmem:[#allocation2 + $0x24] sm:$0x1] %vm1490, %v1484
        %v1799 = vrot.slane %v1484, 1
        %1800 = vrot.lane.b32.xlu0 %v1799, 64
        %v1801 = vpop.permute.xlu0 %1800
        %1803 = vst.msk [vmem:[#allocation2 + $0x24] sm:$0x1] %vm1497, %v1801
        %v1804 = vrot.slane %v1484, 2
        %1806 = vst.msk [vmem:[#allocation2 + $0x2c] sm:$0x1] %vm1490, %v1804
        %v1807 = vrot.slane %v1484, 3
        %1808 = vrot.lane.b32.xlu0 %v1807, 64
        %v1809 = vpop.permute.xlu0 %1808
        %1811 = vst.msk [vmem:[#allocation2 + $0x2c] sm:$0x1] %vm1497, %v1809
        %v1812 = vrot.slane %v1484, 4
        %1814 = vst.msk [vmem:[#allocation2 + $0x34] sm:$0x1] %vm1490, %v1812
        %v1815 = vrot.slane %v1484, 5
        %1816 = vrot.lane.b32.xlu0 %v1815, 64
        %v1817 = vpop.permute.xlu0 %1816
        %1819 = vst.msk [vmem:[#allocation2 + $0x34] sm:$0x1] %vm1497, %v1817
        %v1820 = vrot.slane %v1484, 6
        %1822 = vst.msk [vmem:[#allocation2 + $0x3c] sm:$0x1] %vm1490, %v1820
        %v1823 = vrot.slane %v1484, 7
        %1824 = vrot.lane.b32.xlu0 %v1823, 64
        %v1825 = vpop.permute.xlu0 %1824
        %1827 = vst.msk [vmem:[#allocation2 + $0x3c] sm:$0x1] %vm1497, %v1825
        %1828 = vst.msk [vmem:[#allocation2 + $0x44] sm:$0x1] %vm1490, %v1488
        %v1830 = vrot.slane %v1488, 1
        %1831 = vrot.lane.b32.xlu0 %v1830, 64
        %v1832 = vpop.permute.xlu0 %1831
        %1834 = vst.msk [vmem:[#allocation2 + $0x44] sm:$0x1] %vm1497, %v1832
        %v1835 = vrot.slane %v1488, 2
        %1837 = vst.msk [vmem:[#allocation2 + $0x4c] sm:$0x1] %vm1490, %v1835
        %v1838 = vrot.slane %v1488, 3
        %1839 = vrot.lane.b32.xlu0 %v1838, 64
        %v1840 = vpop.permute.xlu0 %1839
        %1842 = vst.msk [vmem:[#allocation2 + $0x4c] sm:$0x1] %vm1497, %v1840
        %1843 = vrot.lane.b32.xlu0 %v1480, 64
        %v1844 = vpop.permute.xlu0 %1843
        %1846 = vst.msk [vmem:[#allocation2 + $0x5] sm:$0x1] %vm1490, %v1844
        %1848 = vst.msk [vmem:[#allocation2 + $0x5] sm:$0x1] %vm1497, %v1768
        %1849 = vrot.lane.b32.xlu0 %v1773, 64
        %v1850 = vpop.permute.xlu0 %1849
        %1852 = vst.msk [vmem:[#allocation2 + $0xd] sm:$0x1] %vm1490, %v1850
        %1854 = vst.msk [vmem:[#allocation2 + $0xd] sm:$0x1] %vm1497, %v1776
        %1855 = vrot.lane.b32.xlu0 %v1781, 64
        %v1856 = vpop.permute.xlu0 %1855
        %1858 = vst.msk [vmem:[#allocation2 + $0x15] sm:$0x1] %vm1490, %v1856
        %1860 = vst.msk [vmem:[#allocation2 + $0x15] sm:$0x1] %vm1497, %v1784
        %1861 = vrot.lane.b32.xlu0 %v1789, 64
        %v1862 = vpop.permute.xlu0 %1861
        %1864 = vst.msk [vmem:[#allocation2 + $0x1d] sm:$0x1] %vm1490, %v1862
        %1866 = vst.msk [vmem:[#allocation2 + $0x1d] sm:$0x1] %vm1497, %v1792
        %1867 = vrot.lane.b32.xlu0 %v1484, 64
        %v1868 = vpop.permute.xlu0 %1867
        %1870 = vst.msk [vmem:[#allocation2 + $0x25] sm:$0x1] %vm1490, %v1868
        %1872 = vst.msk [vmem:[#allocation2 + $0x25] sm:$0x1] %vm1497, %v1799
        %1873 = vrot.lane.b32.xlu0 %v1804, 64
        %v1874 = vpop.permute.xlu0 %1873
        %1876 = vst.msk [vmem:[#allocation2 + $0x2d] sm:$0x1] %vm1490, %v1874
        %1878 = vst.msk [vmem:[#allocation2 + $0x2d] sm:$0x1] %vm1497, %v1807
        %1879 = vrot.lane.b32.xlu0 %v1812, 64
        %v1880 = vpop.permute.xlu0 %1879
        %1882 = vst.msk [vmem:[#allocation2 + $0x35] sm:$0x1] %vm1490, %v1880
        %1884 = vst.msk [vmem:[#allocation2 + $0x35] sm:$0x1] %vm1497, %v1815
        %1885 = vrot.lane.b32.xlu0 %v1820, 64
        %v1886 = vpop.permute.xlu0 %1885
        %1888 = vst.msk [vmem:[#allocation2 + $0x3d] sm:$0x1] %vm1490, %v1886
        %1890 = vst.msk [vmem:[#allocation2 + $0x3d] sm:$0x1] %vm1497, %v1823
        %1891 = vrot.lane.b32.xlu0 %v1488, 64
        %v1892 = vpop.permute.xlu0 %1891
        %1894 = vst.msk [vmem:[#allocation2 + $0x45] sm:$0x1] %vm1490, %v1892
        %1896 = vst.msk [vmem:[#allocation2 + $0x45] sm:$0x1] %vm1497, %v1830
        %1897 = vrot.lane.b32.xlu0 %v1835, 64
        %v1898 = vpop.permute.xlu0 %1897
        %1900 = vst.msk [vmem:[#allocation2 + $0x4d] sm:$0x1] %vm1490, %v1898
        %1902 = vst.msk [vmem:[#allocation2 + $0x4d] sm:$0x1] %vm1497, %v1838
        %1903 = vst.msk [vmem:[#allocation2 + $0x6] sm:$0x1] %vm1490, %v1481
        %v1905 = vrot.slane %v1481, 1
        %1906 = vrot.lane.b32.xlu0 %v1905, 64
        %v1907 = vpop.permute.xlu0 %1906
        %1909 = vst.msk [vmem:[#allocation2 + $0x6] sm:$0x1] %vm1497, %v1907
        %v1910 = vrot.slane %v1481, 2
        %1912 = vst.msk [vmem:[#allocation2 + $0xe] sm:$0x1] %vm1490, %v1910
        %v1913 = vrot.slane %v1481, 3
        %1914 = vrot.lane.b32.xlu0 %v1913, 64
        %v1915 = vpop.permute.xlu0 %1914
        %1917 = vst.msk [vmem:[#allocation2 + $0xe] sm:$0x1] %vm1497, %v1915
        %v1918 = vrot.slane %v1481, 4
        %1920 = vst.msk [vmem:[#allocation2 + $0x16] sm:$0x1] %vm1490, %v1918
        %v1921 = vrot.slane %v1481, 5
        %1922 = vrot.lane.b32.xlu0 %v1921, 64
        %v1923 = vpop.permute.xlu0 %1922
        %1925 = vst.msk [vmem:[#allocation2 + $0x16] sm:$0x1] %vm1497, %v1923
        %v1926 = vrot.slane %v1481, 6
        %1928 = vst.msk [vmem:[#allocation2 + $0x1e] sm:$0x1] %vm1490, %v1926
        %v1929 = vrot.slane %v1481, 7
        %1930 = vrot.lane.b32.xlu0 %v1929, 64
        %v1931 = vpop.permute.xlu0 %1930
        %1933 = vst.msk [vmem:[#allocation2 + $0x1e] sm:$0x1] %vm1497, %v1931
        %1934 = vst.msk [vmem:[#allocation2 + $0x26] sm:$0x1] %vm1490, %v1485
        %v1936 = vrot.slane %v1485, 1
        %1937 = vrot.lane.b32.xlu0 %v1936, 64
        %v1938 = vpop.permute.xlu0 %1937
        %1940 = vst.msk [vmem:[#allocation2 + $0x26] sm:$0x1] %vm1497, %v1938
        %v1941 = vrot.slane %v1485, 2
        %1943 = vst.msk [vmem:[#allocation2 + $0x2e] sm:$0x1] %vm1490, %v1941
        %v1944 = vrot.slane %v1485, 3
        %1945 = vrot.lane.b32.xlu0 %v1944, 64
        %v1946 = vpop.permute.xlu0 %1945
        %1948 = vst.msk [vmem:[#allocation2 + $0x2e] sm:$0x1] %vm1497, %v1946
        %v1949 = vrot.slane %v1485, 4
        %1951 = vst.msk [vmem:[#allocation2 + $0x36] sm:$0x1] %vm1490, %v1949
        %v1952 = vrot.slane %v1485, 5
        %1953 = vrot.lane.b32.xlu0 %v1952, 64
        %v1954 = vpop.permute.xlu0 %1953
        %1956 = vst.msk [vmem:[#allocation2 + $0x36] sm:$0x1] %vm1497, %v1954
        %v1957 = vrot.slane %v1485, 6
        %1959 = vst.msk [vmem:[#allocation2 + $0x3e] sm:$0x1] %vm1490, %v1957
        %v1960 = vrot.slane %v1485, 7
        %1961 = vrot.lane.b32.xlu0 %v1960, 64
        %v1962 = vpop.permute.xlu0 %1961
        %1964 = vst.msk [vmem:[#allocation2 + $0x3e] sm:$0x1] %vm1497, %v1962
        %1965 = vst.msk [vmem:[#allocation2 + $0x46] sm:$0x1] %vm1490, %v1489
        %v1967 = vrot.slane %v1489, 1
        %1968 = vrot.lane.b32.xlu0 %v1967, 64
        %v1969 = vpop.permute.xlu0 %1968
        %1971 = vst.msk [vmem:[#allocation2 + $0x46] sm:$0x1] %vm1497, %v1969
        %v1972 = vrot.slane %v1489, 2
        %1974 = vst.msk [vmem:[#allocation2 + $0x4e] sm:$0x1] %vm1490, %v1972
        %v1975 = vrot.slane %v1489, 3
        %1976 = vrot.lane.b32.xlu0 %v1975, 64
        %v1977 = vpop.permute.xlu0 %1976
        %1979 = vst.msk [vmem:[#allocation2 + $0x4e] sm:$0x1] %vm1497, %v1977
        %1980 = vrot.lane.b32.xlu0 %v1481, 64
        %v1981 = vpop.permute.xlu0 %1980
        %1983 = vst.msk [vmem:[#allocation2 + $0x7] sm:$0x1] %vm1490, %v1981
        %1985 = vst.msk [vmem:[#allocation2 + $0x7] sm:$0x1] %vm1497, %v1905
        %1986 = vrot.lane.b32.xlu0 %v1910, 64
        %v1987 = vpop.permute.xlu0 %1986
        %1989 = vst.msk [vmem:[#allocation2 + $0xf] sm:$0x1] %vm1490, %v1987
        %1991 = vst.msk [vmem:[#allocation2 + $0xf] sm:$0x1] %vm1497, %v1913
        %1992 = vrot.lane.b32.xlu0 %v1918, 64
        %v1993 = vpop.permute.xlu0 %1992
        %1995 = vst.msk [vmem:[#allocation2 + $0x17] sm:$0x1] %vm1490, %v1993
        %1997 = vst.msk [vmem:[#allocation2 + $0x17] sm:$0x1] %vm1497, %v1921
        %1998 = vrot.lane.b32.xlu0 %v1926, 64
        %v1999 = vpop.permute.xlu0 %1998
        %2001 = vst.msk [vmem:[#allocation2 + $0x1f] sm:$0x1] %vm1490, %v1999
        %2003 = vst.msk [vmem:[#allocation2 + $0x1f] sm:$0x1] %vm1497, %v1929
        %2004 = vrot.lane.b32.xlu0 %v1485, 64
        %v2005 = vpop.permute.xlu0 %2004
        %2007 = vst.msk [vmem:[#allocation2 + $0x27] sm:$0x1] %vm1490, %v2005
        %2009 = vst.msk [vmem:[#allocation2 + $0x27] sm:$0x1] %vm1497, %v1936
        %2010 = vrot.lane.b32.xlu0 %v1941, 64
        %v2011 = vpop.permute.xlu0 %2010
        %2013 = vst.msk [vmem:[#allocation2 + $0x2f] sm:$0x1] %vm1490, %v2011
        %2015 = vst.msk [vmem:[#allocation2 + $0x2f] sm:$0x1] %vm1497, %v1944
        %2016 = vrot.lane.b32.xlu0 %v1949, 64
        %v2017 = vpop.permute.xlu0 %2016
        %2019 = vst.msk [vmem:[#allocation2 + $0x37] sm:$0x1] %vm1490, %v2017
        %2021 = vst.msk [vmem:[#allocation2 + $0x37] sm:$0x1] %vm1497, %v1952
        %2022 = vrot.lane.b32.xlu0 %v1957, 64
        %v2023 = vpop.permute.xlu0 %2022
        %2025 = vst.msk [vmem:[#allocation2 + $0x3f] sm:$0x1] %vm1490, %v2023
        %2027 = vst.msk [vmem:[#allocation2 + $0x3f] sm:$0x1] %vm1497, %v1960
        %2028 = vrot.lane.b32.xlu0 %v1489, 64
        %v2029 = vpop.permute.xlu0 %2028
        %2031 = vst.msk [vmem:[#allocation2 + $0x47] sm:$0x1] %vm1490, %v2029
        %2033 = vst.msk [vmem:[#allocation2 + $0x47] sm:$0x1] %vm1497, %v1967
        %2034 = vrot.lane.b32.xlu0 %v1972, 64
        %v2035 = vpop.permute.xlu0 %2034
        %2037 = vst.msk [vmem:[#allocation2 + $0x4f] sm:$0x1] %vm1490, %v2035
        %2039 = vst.msk [vmem:[#allocation2 + $0x4f] sm:$0x1] %vm1497, %v1975
        %v2040 = vld [vmem:[#allocation2] sm:$0xff]
        %v2041 = vld [vmem:[#allocation2 + $0x8] sm:$0xff]
        %v2042 = vld [vmem:[#allocation2 + $0x10] sm:$0xff]
        %v2043 = vld [vmem:[#allocation2 + $0x18] sm:$0xff]
        %v2044 = vld [vmem:[#allocation2 + $0x20] sm:$0xff]
        %v2045 = vld [vmem:[#allocation2 + $0x28] sm:$0xff]
        %v2046 = vld [vmem:[#allocation2 + $0x30] sm:$0xff]
        %v2047 = vld [vmem:[#allocation2 + $0x38] sm:$0xff]
        %v2048 = vld [vmem:[#allocation2 + $0x40] sm:$0xff]
        %v2049 = vld [vmem:[#allocation2 + $0x48] sm:$0xff]
        %v2050 = vld [vmem:[%s3] sm:$0xff]
        %v2051 = vld [vmem:[%s3 + $0x8] sm:$0xff]
        %v2052 = vld [vmem:[%s3 + $0x10] sm:$0xff]
        %v2053 = vld [vmem:[%s3 + $0x18] sm:$0xff]
        %v2054 = vld [vmem:[%s3 + $0x20] sm:$0xff]
        %v2055 = vld [vmem:[%s3 + $0x28] sm:$0xff]
        %v2056 = vld [vmem:[%s3 + $0x30] sm:$0xff]
        %v2057 = vld [vmem:[%s3 + $0x38] sm:$0xff]
        %v2058 = vld [vmem:[%s3 + $0x40] sm:$0xff]
        %v2059 = vld [vmem:[%s3 + $0x48] sm:$0xff]
        %v2060 = vld [vmem:[%s3 + $0x50] sm:$0xff]
        %v2061 = vld [vmem:[%s3 + $0x58] sm:$0xff]
        %v2062 = vld [vmem:[%s3 + $0x60] sm:$0xff]
        %v2063 = vld [vmem:[%s3 + $0x68] sm:$0xff]
        %v2064 = vld [vmem:[%s3 + $0x70] sm:$0xff]
        %v2065 = vld [vmem:[%s3 + $0x78] sm:$0xff]
        %v2066 = vld [vmem:[%s3 + $0x80] sm:$0xff]
        %v2067 = vld [vmem:[%s3 + $0x88] sm:$0xff]
        %v2068 = vld [vmem:[%s3 + $0x90] sm:$0xff]
        %v2069 = vld [vmem:[%s3 + $0x98] sm:$0xff]
        %v2070 = vld [vmem:[%s3 + $0xa0] sm:$0xff]
        %v2071 = vld [vmem:[%s3 + $0xa8] sm:$0xff]
        %v2072 = vld [vmem:[%s3 + $0xb0] sm:$0xff]
        %v2073 = vld [vmem:[%s3 + $0xb8] sm:$0xff]
        %v2074 = vld [vmem:[%s3 + $0xc0] sm:$0xff]
        %v2075 = vld [vmem:[%s3 + $0xc8] sm:$0xff]
        %v2076 = vld [vmem:[%s3 + $0xd0] sm:$0xff]
        %v2077 = vld [vmem:[%s3 + $0xd8] sm:$0xff]
        %v2078 = vld [vmem:[%s3 + $0xe0] sm:$0xff]
        %v2079 = vld [vmem:[%s3 + $0xe8] sm:$0xff]
        %v2080 = vld [vmem:[%s3 + $0xf0] sm:$0xff]
        %v2081 = vld [vmem:[%s3 + $0xf8] sm:$0xff]
        %v2082 = vld [vmem:[%s3 + $0x100] sm:$0xff]
        %v2083 = vld [vmem:[%s3 + $0x108] sm:$0xff]
        %v2084 = vld [vmem:[%s3 + $0x110] sm:$0xff]
        %v2085 = vld [vmem:[%s3 + $0x118] sm:$0xff]
        %v2086 = vld [vmem:[%s3 + $0x120] sm:$0xff]
        %v2087 = vld [vmem:[%s3 + $0x128] sm:$0xff]
        %v2088 = vld [vmem:[%s3 + $0x130] sm:$0xff]
        %v2089 = vld [vmem:[%s3 + $0x138] sm:$0xff]
        %v2090 = vld [vmem:[%s3 + $0x140] sm:$0xff]
        %v2091 = vld [vmem:[%s3 + $0x148] sm:$0xff]
        %v2092 = vld [vmem:[%s3 + $0x150] sm:$0xff]
        %v2093 = vld [vmem:[%s3 + $0x158] sm:$0xff]
        %v2094 = vld [vmem:[%s3 + $0x160] sm:$0xff]
        %v2095 = vld [vmem:[%s3 + $0x168] sm:$0xff]
        %v2096 = vld [vmem:[%s3 + $0x170] sm:$0xff]
        %v2097 = vld [vmem:[%s3 + $0x178] sm:$0xff]
        %v2098 = vld [vmem:[%s3 + $0x180] sm:$0xff]
        %v2099 = vld [vmem:[%s3 + $0x188] sm:$0xff]
        %v2100 = vld [vmem:[%s3 + $0x190] sm:$0xff]
        %v2101 = vld [vmem:[%s3 + $0x198] sm:$0xff]
        %v2102 = vld [vmem:[%s3 + $0x1a0] sm:$0xff]
        %v2103 = vld [vmem:[%s3 + $0x1a8] sm:$0xff]
        %v2104 = vld [vmem:[%s3 + $0x1b0] sm:$0xff]
        %v2105 = vld [vmem:[%s3 + $0x1b8] sm:$0xff]
        %v2106 = vld [vmem:[%s3 + $0x1c0] sm:$0xff]
        %v2107 = vld [vmem:[%s3 + $0x1c8] sm:$0xff]
        %v2108 = vld [vmem:[%s3 + $0x1d0] sm:$0xff]
        %v2109 = vld [vmem:[%s3 + $0x1d8] sm:$0xff]
        %v2110 = vld [vmem:[%s3 + $0x1e0] sm:$0xff]
        %v2111 = vld [vmem:[%s3 + $0x1e8] sm:$0xff]
        %v2112 = vld [vmem:[%s3 + $0x1f0] sm:$0xff]
        %v2113 = vld [vmem:[%s3 + $0x1f8] sm:$0xff]
        %v2114 = vld [vmem:[%s3 + $0x200] sm:$0xff]
        %v2115 = vld [vmem:[%s3 + $0x208] sm:$0xff]
        %v2116 = vld [vmem:[%s3 + $0x210] sm:$0xff]
        %v2117 = vld [vmem:[%s3 + $0x218] sm:$0xff]
        %v2118 = vld [vmem:[%s3 + $0x220] sm:$0xff]
        %v2119 = vld [vmem:[%s3 + $0x228] sm:$0xff]
        %v2120 = vld [vmem:[%s3 + $0x230] sm:$0xff]
        %v2121 = vld [vmem:[%s3 + $0x238] sm:$0xff]
        %v2122 = vld [vmem:[%s3 + $0x240] sm:$0xff]
        %v2123 = vld [vmem:[%s3 + $0x248] sm:$0xff]
        %v2124 = vld [vmem:[%s3 + $0x250] sm:$0xff]
        %v2125 = vld [vmem:[%s3 + $0x258] sm:$0xff]
        %v2126 = vld [vmem:[%s3 + $0x260] sm:$0xff]
        %v2127 = vld [vmem:[%s3 + $0x268] sm:$0xff]
        %v2128 = vld [vmem:[%s3 + $0x270] sm:$0xff]
        %v2129 = vld [vmem:[%s3 + $0x278] sm:$0xff]
        %v2130 = vld [vmem:[%s3 + $0x280] sm:$0xff]
        %v2131 = vld [vmem:[%s3 + $0x288] sm:$0xff]
        %v2132 = vld [vmem:[%s3 + $0x290] sm:$0xff]
        %v2133 = vld [vmem:[%s3 + $0x298] sm:$0xff]
        %v2134 = vld [vmem:[%s3 + $0x2a0] sm:$0xff]
        %v2135 = vld [vmem:[%s3 + $0x2a8] sm:$0xff]
        %v2136 = vld [vmem:[%s3 + $0x2b0] sm:$0xff]
        %v2137 = vld [vmem:[%s3 + $0x2b8] sm:$0xff]
        %v2138 = vld [vmem:[%s3 + $0x2c0] sm:$0xff]
        %v2139 = vld [vmem:[%s3 + $0x2c8] sm:$0xff]
        %v2140 = vld [vmem:[%s3 + $0x2d0] sm:$0xff]
        %v2141 = vld [vmem:[%s3 + $0x2d8] sm:$0xff]
        %v2142 = vld [vmem:[%s3 + $0x2e0] sm:$0xff]
        %v2143 = vld [vmem:[%s3 + $0x2e8] sm:$0xff]
        %v2144 = vld [vmem:[%s3 + $0x2f0] sm:$0xff]
        %v2145 = vld [vmem:[%s3 + $0x2f8] sm:$0xff]
        %v2146 = vld [vmem:[%s3 + $0x300] sm:$0xff]
        %v2147 = vld [vmem:[%s3 + $0x308] sm:$0xff]
        %v2148 = vld [vmem:[%s3 + $0x310] sm:$0xff]
        %v2149 = vld [vmem:[%s3 + $0x318] sm:$0xff]
        %v2150 = vld [vmem:[%s3 + $0x320] sm:$0xff]
        %v2151 = vld [vmem:[%s3 + $0x328] sm:$0xff]
        %v2152 = vld [vmem:[%s3 + $0x330] sm:$0xff]
        %v2153 = vld [vmem:[%s3 + $0x338] sm:$0xff]
        %v2154 = vld [vmem:[%s3 + $0x340] sm:$0xff]
        %v2155 = vld [vmem:[%s3 + $0x348] sm:$0xff]
        %v2156 = vld [vmem:[%s3 + $0x350] sm:$0xff]
        %v2157 = vld [vmem:[%s3 + $0x358] sm:$0xff]
        %v2158 = vld [vmem:[%s3 + $0x360] sm:$0xff]
        %v2159 = vld [vmem:[%s3 + $0x368] sm:$0xff]
        %v2160 = vld [vmem:[%s3 + $0x370] sm:$0xff]
        %v2161 = vld [vmem:[%s3 + $0x378] sm:$0xff]
        %v2162 = vld [vmem:[%s3 + $0x380] sm:$0xff]
        %v2163 = vld [vmem:[%s3 + $0x388] sm:$0xff]
        %v2164 = vld [vmem:[%s3 + $0x390] sm:$0xff]
        %v2165 = vld [vmem:[%s3 + $0x398] sm:$0xff]
        %v2166 = vld [vmem:[%s3 + $0x3a0] sm:$0xff]
        %v2167 = vld [vmem:[%s3 + $0x3a8] sm:$0xff]
        %v2168 = vld [vmem:[%s3 + $0x3b0] sm:$0xff]
        %v2169 = vld [vmem:[%s3 + $0x3b8] sm:$0xff]
        %v2170 = vld [vmem:[%s3 + $0x3c0] sm:$0xff]
        %v2171 = vld [vmem:[%s3 + $0x3c8] sm:$0xff]
        %v2172 = vld [vmem:[%s3 + $0x3d0] sm:$0xff]
        %v2173 = vld [vmem:[%s3 + $0x3d8] sm:$0xff]
        %v2174 = vld [vmem:[%s3 + $0x3e0] sm:$0xff]
        %v2175 = vld [vmem:[%s3 + $0x3e8] sm:$0xff]
        %v2176 = vld [vmem:[%s3 + $0x3f0] sm:$0xff]
        %v2177 = vld [vmem:[%s3 + $0x3f8] sm:$0xff]
        %v2178 = vld [vmem:[%s3 + $0x400] sm:$0xff]
        %v2179 = vld [vmem:[%s3 + $0x408] sm:$0xff]
        %v2180 = vld [vmem:[%s3 + $0x410] sm:$0xff]
        %v2181 = vld [vmem:[%s3 + $0x418] sm:$0xff]
        %v2182 = vld [vmem:[%s3 + $0x420] sm:$0xff]
        %v2183 = vld [vmem:[%s3 + $0x428] sm:$0xff]
        %v2184 = vld [vmem:[%s3 + $0x430] sm:$0xff]
        %v2185 = vld [vmem:[%s3 + $0x438] sm:$0xff]
        %v2186 = vld [vmem:[%s3 + $0x440] sm:$0xff]
        %v2187 = vld [vmem:[%s3 + $0x448] sm:$0xff]
        %v2188 = vld [vmem:[%s3 + $0x450] sm:$0xff]
        %v2189 = vld [vmem:[%s3 + $0x458] sm:$0xff]
        %v2190 = vld [vmem:[%s3 + $0x460] sm:$0xff]
        %v2191 = vld [vmem:[%s3 + $0x468] sm:$0xff]
        %v2192 = vld [vmem:[%s3 + $0x470] sm:$0xff]
        %v2193 = vld [vmem:[%s3 + $0x478] sm:$0xff]
        %v2194 = vld [vmem:[%s3 + $0x480] sm:$0xff]
        %v2195 = vld [vmem:[%s3 + $0x488] sm:$0xff]
        %v2196 = vld [vmem:[%s3 + $0x490] sm:$0xff]
        %v2197 = vld [vmem:[%s3 + $0x498] sm:$0xff]
        %v2198 = vld [vmem:[%s3 + $0x4a0] sm:$0xff]
        %v2199 = vld [vmem:[%s3 + $0x4a8] sm:$0xff]
        %v2200 = vld [vmem:[%s3 + $0x4b0] sm:$0xff]
        %v2201 = vld [vmem:[%s3 + $0x4b8] sm:$0xff]
        %v2202 = vld [vmem:[%s3 + $0x4c0] sm:$0xff]
        %v2203 = vld [vmem:[%s3 + $0x4c8] sm:$0xff]
        %v2204 = vld [vmem:[%s3 + $0x4d0] sm:$0xff]
        %v2205 = vld [vmem:[%s3 + $0x4d8] sm:$0xff]
        %v2206 = vld [vmem:[%s3 + $0x4e0] sm:$0xff]
        %v2207 = vld [vmem:[%s3 + $0x4e8] sm:$0xff]
        %v2208 = vld [vmem:[%s3 + $0x4f0] sm:$0xff]
        %v2209 = vld [vmem:[%s3 + $0x4f8] sm:$0xff]
        %v2210 = vld [vmem:[%s3 + $0x500] sm:$0xff]
        %v2211 = vld [vmem:[%s3 + $0x508] sm:$0xff]
        %v2212 = vld [vmem:[%s3 + $0x510] sm:$0xff]
        %v2213 = vld [vmem:[%s3 + $0x518] sm:$0xff]
        %v2214 = vld [vmem:[%s3 + $0x520] sm:$0xff]
        %v2215 = vld [vmem:[%s3 + $0x528] sm:$0xff]
        %v2216 = vld [vmem:[%s3 + $0x530] sm:$0xff]
        %v2217 = vld [vmem:[%s3 + $0x538] sm:$0xff]
        %v2218 = vld [vmem:[%s3 + $0x540] sm:$0xff]
        %v2219 = vld [vmem:[%s3 + $0x548] sm:$0xff]
        %v2220 = vld [vmem:[%s3 + $0x550] sm:$0xff]
        %v2221 = vld [vmem:[%s3 + $0x558] sm:$0xff]
        %v2222 = vld [vmem:[%s3 + $0x560] sm:$0xff]
        %v2223 = vld [vmem:[%s3 + $0x568] sm:$0xff]
        %v2224 = vld [vmem:[%s3 + $0x570] sm:$0xff]
        %v2225 = vld [vmem:[%s3 + $0x578] sm:$0xff]
        %v2226 = vld [vmem:[%s3 + $0x580] sm:$0xff]
        %v2227 = vld [vmem:[%s3 + $0x588] sm:$0xff]
        %v2228 = vld [vmem:[%s3 + $0x590] sm:$0xff]
        %v2229 = vld [vmem:[%s3 + $0x598] sm:$0xff]
        %v2230 = vld [vmem:[%s3 + $0x5a0] sm:$0xff]
        %v2231 = vld [vmem:[%s3 + $0x5a8] sm:$0xff]
        %v2232 = vld [vmem:[%s3 + $0x5b0] sm:$0xff]
        %v2233 = vld [vmem:[%s3 + $0x5b8] sm:$0xff]
        %v2234 = vld [vmem:[%s3 + $0x5c0] sm:$0xff]
        %v2235 = vld [vmem:[%s3 + $0x5c8] sm:$0xff]
        %v2236 = vld [vmem:[%s3 + $0x5d0] sm:$0xff]
        %v2237 = vld [vmem:[%s3 + $0x5d8] sm:$0xff]
        %v2238 = vld [vmem:[%s3 + $0x5e0] sm:$0xff]
        %v2239 = vld [vmem:[%s3 + $0x5e8] sm:$0xff]
        %v2240 = vld [vmem:[%s3 + $0x5f0] sm:$0xff]
        %v2241 = vld [vmem:[%s3 + $0x5f8] sm:$0xff]
        %v2242 = vld [vmem:[%s3 + $0x600] sm:$0xff]
        %v2243 = vld [vmem:[%s3 + $0x608] sm:$0xff]
        %v2244 = vld [vmem:[%s3 + $0x610] sm:$0xff]
        %v2245 = vld [vmem:[%s3 + $0x618] sm:$0xff]
        %v2246 = vld [vmem:[%s3 + $0x620] sm:$0xff]
        %v2247 = vld [vmem:[%s3 + $0x628] sm:$0xff]
        %v2248 = vld [vmem:[%s3 + $0x630] sm:$0xff]
        %v2249 = vld [vmem:[%s3 + $0x638] sm:$0xff]
        %v2250 = vld [vmem:[%s3 + $0x640] sm:$0xff]
        %v2251 = vld [vmem:[%s3 + $0x648] sm:$0xff]
        %v2252 = vld [vmem:[%s3 + $0x650] sm:$0xff]
        %v2253 = vld [vmem:[%s3 + $0x658] sm:$0xff]
        %v2254 = vld [vmem:[%s3 + $0x660] sm:$0xff]
        %v2255 = vld [vmem:[%s3 + $0x668] sm:$0xff]
        %v2256 = vld [vmem:[%s3 + $0x670] sm:$0xff]
        %v2257 = vld [vmem:[%s3 + $0x678] sm:$0xff]
        %v2258 = vld [vmem:[%s3 + $0x680] sm:$0xff]
        %v2259 = vld [vmem:[%s3 + $0x688] sm:$0xff]
        %v2260 = vld [vmem:[%s3 + $0x690] sm:$0xff]
        %v2261 = vld [vmem:[%s3 + $0x698] sm:$0xff]
        %v2262 = vld [vmem:[%s3 + $0x6a0] sm:$0xff]
        %v2263 = vld [vmem:[%s3 + $0x6a8] sm:$0xff]
        %v2264 = vld [vmem:[%s3 + $0x6b0] sm:$0xff]
        %v2265 = vld [vmem:[%s3 + $0x6b8] sm:$0xff]
        %v2266 = vld [vmem:[%s3 + $0x6c0] sm:$0xff]
        %v2267 = vld [vmem:[%s3 + $0x6c8] sm:$0xff]
        %v2268 = vld [vmem:[%s3 + $0x6d0] sm:$0xff]
        %v2269 = vld [vmem:[%s3 + $0x6d8] sm:$0xff]
        %v2270 = vld [vmem:[%s3 + $0x6e0] sm:$0xff]
        %v2271 = vld [vmem:[%s3 + $0x6e8] sm:$0xff]
        %v2272 = vld [vmem:[%s3 + $0x6f0] sm:$0xff]
        %v2273 = vld [vmem:[%s3 + $0x6f8] sm:$0xff]
        %v2274 = vld [vmem:[%s3 + $0x700] sm:$0xff]
        %v2275 = vld [vmem:[%s3 + $0x708] sm:$0xff]
        %v2276 = vld [vmem:[%s3 + $0x710] sm:$0xff]
        %v2277 = vld [vmem:[%s3 + $0x718] sm:$0xff]
        %v2278 = vld [vmem:[%s3 + $0x720] sm:$0xff]
        %v2279 = vld [vmem:[%s3 + $0x728] sm:$0xff]
        %v2280 = vld [vmem:[%s3 + $0x730] sm:$0xff]
        %v2281 = vld [vmem:[%s3 + $0x738] sm:$0xff]
        %v2282 = vld [vmem:[%s3 + $0x740] sm:$0xff]
        %v2283 = vld [vmem:[%s3 + $0x748] sm:$0xff]
        %v2284 = vld [vmem:[%s3 + $0x750] sm:$0xff]
        %v2285 = vld [vmem:[%s3 + $0x758] sm:$0xff]
        %v2286 = vld [vmem:[%s3 + $0x760] sm:$0xff]
        %v2287 = vld [vmem:[%s3 + $0x768] sm:$0xff]
        %v2288 = vld [vmem:[%s3 + $0x770] sm:$0xff]
        %v2289 = vld [vmem:[%s3 + $0x778] sm:$0xff]
        %v2290 = vld [vmem:[%s3 + $0x780] sm:$0xff]
        %v2291 = vld [vmem:[%s3 + $0x788] sm:$0xff]
        %v2292 = vld [vmem:[%s3 + $0x790] sm:$0xff]
        %v2293 = vld [vmem:[%s3 + $0x798] sm:$0xff]
        %v2294 = vld [vmem:[%s3 + $0x7a0] sm:$0xff]
        %v2295 = vld [vmem:[%s3 + $0x7a8] sm:$0xff]
        %v2296 = vld [vmem:[%s3 + $0x7b0] sm:$0xff]
        %v2297 = vld [vmem:[%s3 + $0x7b8] sm:$0xff]
        %v2298 = vld [vmem:[%s3 + $0x7c0] sm:$0xff]
        %v2299 = vld [vmem:[%s3 + $0x7c8] sm:$0xff]
        %v2300 = vld [vmem:[%s3 + $0x7d0] sm:$0xff]
        %v2301 = vld [vmem:[%s3 + $0x7d8] sm:$0xff]
        %v2302 = vld [vmem:[%s3 + $0x7e0] sm:$0xff]
        %v2303 = vld [vmem:[%s3 + $0x7e8] sm:$0xff]
        %v2304 = vld [vmem:[%s3 + $0x7f0] sm:$0xff]
        %v2305 = vld [vmem:[%s3 + $0x7f8] sm:$0xff]
        %v2306 = vld [vmem:[%s3 + $0x800] sm:$0xff]
        %v2307 = vld [vmem:[%s3 + $0x808] sm:$0xff]
        %v2308 = vld [vmem:[%s3 + $0x810] sm:$0xff]
        %v2309 = vld [vmem:[%s3 + $0x818] sm:$0xff]
        %v2310 = vld [vmem:[%s3 + $0x820] sm:$0xff]
        %v2311 = vld [vmem:[%s3 + $0x828] sm:$0xff]
        %v2312 = vld [vmem:[%s3 + $0x830] sm:$0xff]
        %v2313 = vld [vmem:[%s3 + $0x838] sm:$0xff]
        %v2314 = vld [vmem:[%s3 + $0x840] sm:$0xff]
        %v2315 = vld [vmem:[%s3 + $0x848] sm:$0xff]
        %v2316 = vld [vmem:[%s3 + $0x850] sm:$0xff]
        %v2317 = vld [vmem:[%s3 + $0x858] sm:$0xff]
        %v2318 = vld [vmem:[%s3 + $0x860] sm:$0xff]
        %v2319 = vld [vmem:[%s3 + $0x868] sm:$0xff]
        %v2320 = vld [vmem:[%s3 + $0x870] sm:$0xff]
        %v2321 = vld [vmem:[%s3 + $0x878] sm:$0xff]
        %v2322 = vld [vmem:[%s3 + $0x880] sm:$0xff]
        %v2323 = vld [vmem:[%s3 + $0x888] sm:$0xff]
        %v2324 = vld [vmem:[%s3 + $0x890] sm:$0xff]
        %v2325 = vld [vmem:[%s3 + $0x898] sm:$0xff]
        %v2326 = vld [vmem:[%s3 + $0x8a0] sm:$0xff]
        %v2327 = vld [vmem:[%s3 + $0x8a8] sm:$0xff]
        %v2328 = vld [vmem:[%s3 + $0x8b0] sm:$0xff]
        %v2329 = vld [vmem:[%s3 + $0x8b8] sm:$0xff]
        %v2330 = vld [vmem:[%s3 + $0x8c0] sm:$0xff]
        %v2331 = vld [vmem:[%s3 + $0x8c8] sm:$0xff]
        %v2332 = vld [vmem:[%s3 + $0x8d0] sm:$0xff]
        %v2333 = vld [vmem:[%s3 + $0x8d8] sm:$0xff]
        %v2334 = vld [vmem:[%s3 + $0x8e0] sm:$0xff]
        %v2335 = vld [vmem:[%s3 + $0x8e8] sm:$0xff]
        %v2336 = vld [vmem:[%s3 + $0x8f0] sm:$0xff]
        %v2337 = vld [vmem:[%s3 + $0x8f8] sm:$0xff]
        %v2338 = vld [vmem:[%s3 + $0x900] sm:$0xff]
        %v2339 = vld [vmem:[%s3 + $0x908] sm:$0xff]
        %v2340 = vld [vmem:[%s3 + $0x910] sm:$0xff]
        %v2341 = vld [vmem:[%s3 + $0x918] sm:$0xff]
        %v2342 = vld [vmem:[%s3 + $0x920] sm:$0xff]
        %v2343 = vld [vmem:[%s3 + $0x928] sm:$0xff]
        %v2344 = vld [vmem:[%s3 + $0x930] sm:$0xff]
        %v2345 = vld [vmem:[%s3 + $0x938] sm:$0xff]
        %v2346 = vld [vmem:[%s3 + $0x940] sm:$0xff]
        %v2347 = vld [vmem:[%s3 + $0x948] sm:$0xff]
        %v2348 = vld [vmem:[%s3 + $0x950] sm:$0xff]
        %v2349 = vld [vmem:[%s3 + $0x958] sm:$0xff]
        %v2350 = vld [vmem:[%s3 + $0x960] sm:$0xff]
        %v2351 = vld [vmem:[%s3 + $0x968] sm:$0xff]
        %v2352 = vld [vmem:[%s3 + $0x970] sm:$0xff]
        %v2353 = vld [vmem:[%s3 + $0x978] sm:$0xff]
        %v2354 = vld [vmem:[%s3 + $0x980] sm:$0xff]
        %v2355 = vld [vmem:[%s3 + $0x988] sm:$0xff]
        %v2356 = vld [vmem:[%s3 + $0x990] sm:$0xff]
        %v2357 = vld [vmem:[%s3 + $0x998] sm:$0xff]
        %v2358 = vld [vmem:[%s3 + $0x9a0] sm:$0xff]
        %v2359 = vld [vmem:[%s3 + $0x9a8] sm:$0xff]
        %v2360 = vld [vmem:[%s3 + $0x9b0] sm:$0xff]
        %v2361 = vld [vmem:[%s3 + $0x9b8] sm:$0xff]
        %v2362 = vld [vmem:[%s3 + $0x9c0] sm:$0xff]
        %v2363 = vld [vmem:[%s3 + $0x9c8] sm:$0xff]
        %v2364 = vld [vmem:[%s3 + $0x9d0] sm:$0xff]
        %v2365 = vld [vmem:[%s3 + $0x9d8] sm:$0xff]
        %v2366 = vld [vmem:[%s3 + $0x9e0] sm:$0xff]
        %v2367 = vld [vmem:[%s3 + $0x9e8] sm:$0xff]
        %v2368 = vld [vmem:[%s3 + $0x9f0] sm:$0xff]
        %v2369 = vld [vmem:[%s3 + $0x9f8] sm:$0xff]
        %v2370 = vld [vmem:[%s3 + $0xa00] sm:$0xff]
        %v2371 = vld [vmem:[%s3 + $0xa08] sm:$0xff]
        %v2372 = vld [vmem:[%s3 + $0xa10] sm:$0xff]
        %v2373 = vld [vmem:[%s3 + $0xa18] sm:$0xff]
        %v2374 = vld [vmem:[%s3 + $0xa20] sm:$0xff]
        %v2375 = vld [vmem:[%s3 + $0xa28] sm:$0xff]
        %v2376 = vld [vmem:[%s3 + $0xa30] sm:$0xff]
        %v2377 = vld [vmem:[%s3 + $0xa38] sm:$0xff]
        %v2378 = vld [vmem:[%s3 + $0xa40] sm:$0xff]
        %v2379 = vld [vmem:[%s3 + $0xa48] sm:$0xff]
        %v2380 = vld [vmem:[%s3 + $0xa50] sm:$0xff]
        %v2381 = vld [vmem:[%s3 + $0xa58] sm:$0xff]
        %v2382 = vld [vmem:[%s3 + $0xa60] sm:$0xff]
        %v2383 = vld [vmem:[%s3 + $0xa68] sm:$0xff]
        %v2384 = vld [vmem:[%s3 + $0xa70] sm:$0xff]
        %v2385 = vld [vmem:[%s3 + $0xa78] sm:$0xff]
        %v2386 = vld [vmem:[%s3 + $0xa80] sm:$0xff]
        %v2387 = vld [vmem:[%s3 + $0xa88] sm:$0xff]
        %v2388 = vld [vmem:[%s3 + $0xa90] sm:$0xff]
        %v2389 = vld [vmem:[%s3 + $0xa98] sm:$0xff]
        %v2390 = vld [vmem:[%s3 + $0xaa0] sm:$0xff]
        %v2391 = vld [vmem:[%s3 + $0xaa8] sm:$0xff]
        %v2392 = vld [vmem:[%s3 + $0xab0] sm:$0xff]
        %v2393 = vld [vmem:[%s3 + $0xab8] sm:$0xff]
        %v2394 = vld [vmem:[%s3 + $0xac0] sm:$0xff]
        %v2395 = vld [vmem:[%s3 + $0xac8] sm:$0xff]
        %v2396 = vld [vmem:[%s3 + $0xad0] sm:$0xff]
        %v2397 = vld [vmem:[%s3 + $0xad8] sm:$0xff]
        %v2398 = vld [vmem:[%s3 + $0xae0] sm:$0xff]
        %v2399 = vld [vmem:[%s3 + $0xae8] sm:$0xff]
        %v2400 = vld [vmem:[%s3 + $0xaf0] sm:$0xff]
        %v2401 = vld [vmem:[%s3 + $0xaf8] sm:$0xff]
        %v2402 = vld [vmem:[%s3 + $0xb00] sm:$0xff]
        %v2403 = vld [vmem:[%s3 + $0xb08] sm:$0xff]
        %v2404 = vld [vmem:[%s3 + $0xb10] sm:$0xff]
        %v2405 = vld [vmem:[%s3 + $0xb18] sm:$0xff]
        %v2406 = vld [vmem:[%s3 + $0xb20] sm:$0xff]
        %v2407 = vld [vmem:[%s3 + $0xb28] sm:$0xff]
        %v2408 = vld [vmem:[%s3 + $0xb30] sm:$0xff]
        %v2409 = vld [vmem:[%s3 + $0xb38] sm:$0xff]
        %v2410 = vld [vmem:[%s3 + $0xb40] sm:$0xff]
        %v2411 = vld [vmem:[%s3 + $0xb48] sm:$0xff]
        %v2412 = vld [vmem:[%s3 + $0xb50] sm:$0xff]
        %v2413 = vld [vmem:[%s3 + $0xb58] sm:$0xff]
        %v2414 = vld [vmem:[%s3 + $0xb60] sm:$0xff]
        %v2415 = vld [vmem:[%s3 + $0xb68] sm:$0xff]
        %v2416 = vld [vmem:[%s3 + $0xb70] sm:$0xff]
        %v2417 = vld [vmem:[%s3 + $0xb78] sm:$0xff]
        %v2418 = vld [vmem:[%s3 + $0xb80] sm:$0xff]
        %v2419 = vld [vmem:[%s3 + $0xb88] sm:$0xff]
        %v2420 = vld [vmem:[%s3 + $0xb90] sm:$0xff]
        %v2421 = vld [vmem:[%s3 + $0xb98] sm:$0xff]
        %v2422 = vld [vmem:[%s3 + $0xba0] sm:$0xff]
        %v2423 = vld [vmem:[%s3 + $0xba8] sm:$0xff]
        %v2424 = vld [vmem:[%s3 + $0xbb0] sm:$0xff]
        %v2425 = vld [vmem:[%s3 + $0xbb8] sm:$0xff]
        %v2426 = vld [vmem:[%s3 + $0xbc0] sm:$0xff]
        %v2427 = vld [vmem:[%s3 + $0xbc8] sm:$0xff]
        %v2428 = vld [vmem:[%s3 + $0xbd0] sm:$0xff]
        %v2429 = vld [vmem:[%s3 + $0xbd8] sm:$0xff]
        %v2430 = vld [vmem:[%s3 + $0xbe0] sm:$0xff]
        %v2431 = vld [vmem:[%s3 + $0xbe8] sm:$0xff]
        %v2432 = vld [vmem:[%s3 + $0xbf0] sm:$0xff]
        %v2433 = vld [vmem:[%s3 + $0xbf8] sm:$0xff]
        %v2434 = vld [vmem:[%s3 + $0xc00] sm:$0xff]
        %v2435 = vld [vmem:[%s3 + $0xc08] sm:$0xff]
        %v2436 = vld [vmem:[%s3 + $0xc10] sm:$0xff]
        %v2437 = vld [vmem:[%s3 + $0xc18] sm:$0xff]
        %v2438 = vld [vmem:[%s3 + $0xc20] sm:$0xff]
        %v2439 = vld [vmem:[%s3 + $0xc28] sm:$0xff]
        %v2440 = vld [vmem:[%s3 + $0xc30] sm:$0xff]
        %v2441 = vld [vmem:[%s3 + $0xc38] sm:$0xff]
        %v2442 = vld [vmem:[%s3 + $0xc40] sm:$0xff]
        %v2443 = vld [vmem:[%s3 + $0xc48] sm:$0xff]
        %v2444 = vld [vmem:[%s3 + $0xc50] sm:$0xff]
        %v2445 = vld [vmem:[%s3 + $0xc58] sm:$0xff]
        %v2446 = vld [vmem:[%s3 + $0xc60] sm:$0xff]
        %v2447 = vld [vmem:[%s3 + $0xc68] sm:$0xff]
        %v2448 = vld [vmem:[%s3 + $0xc70] sm:$0xff]
        %v2449 = vld [vmem:[%s3 + $0xc78] sm:$0xff]
        %v2450 = vld [vmem:[%s3 + $0xc80] sm:$0xff]
        %v2451 = vld [vmem:[%s3 + $0xc88] sm:$0xff]
        %v2452 = vld [vmem:[%s3 + $0xc90] sm:$0xff]
        %v2453 = vld [vmem:[%s3 + $0xc98] sm:$0xff]
        %v2454 = vld [vmem:[%s3 + $0xca0] sm:$0xff]
        %v2455 = vld [vmem:[%s3 + $0xca8] sm:$0xff]
        %v2456 = vld [vmem:[%s3 + $0xcb0] sm:$0xff]
        %v2457 = vld [vmem:[%s3 + $0xcb8] sm:$0xff]
        %v2458 = vld [vmem:[%s3 + $0xcc0] sm:$0xff]
        %v2459 = vld [vmem:[%s3 + $0xcc8] sm:$0xff]
        %v2460 = vld [vmem:[%s3 + $0xcd0] sm:$0xff]
        %v2461 = vld [vmem:[%s3 + $0xcd8] sm:$0xff]
        %v2462 = vld [vmem:[%s3 + $0xce0] sm:$0xff]
        %v2463 = vld [vmem:[%s3 + $0xce8] sm:$0xff]
        %v2464 = vld [vmem:[%s3 + $0xcf0] sm:$0xff]
        %v2465 = vld [vmem:[%s3 + $0xcf8] sm:$0xff]
        %v2466 = vld [vmem:[%s3 + $0xd00] sm:$0xff]
        %v2467 = vld [vmem:[%s3 + $0xd08] sm:$0xff]
        %v2468 = vld [vmem:[%s3 + $0xd10] sm:$0xff]
        %v2469 = vld [vmem:[%s3 + $0xd18] sm:$0xff]
        %v2470 = vld [vmem:[%s3 + $0xd20] sm:$0xff]
        %v2471 = vld [vmem:[%s3 + $0xd28] sm:$0xff]
        %v2472 = vld [vmem:[%s3 + $0xd30] sm:$0xff]
        %v2473 = vld [vmem:[%s3 + $0xd38] sm:$0xff]
        %v2474 = vld [vmem:[%s3 + $0xd40] sm:$0xff]
        %v2475 = vld [vmem:[%s3 + $0xd48] sm:$0xff]
        %v2476 = vld [vmem:[%s3 + $0xd50] sm:$0xff]
        %v2477 = vld [vmem:[%s3 + $0xd58] sm:$0xff]
        %v2478 = vld [vmem:[%s3 + $0xd60] sm:$0xff]
        %v2479 = vld [vmem:[%s3 + $0xd68] sm:$0xff]
        %v2480 = vld [vmem:[%s3 + $0xd70] sm:$0xff]
        %v2481 = vld [vmem:[%s3 + $0xd78] sm:$0xff]
        %v2482 = vld [vmem:[%s3 + $0xd80] sm:$0xff]
        %v2483 = vld [vmem:[%s3 + $0xd88] sm:$0xff]
        %v2484 = vld [vmem:[%s3 + $0xd90] sm:$0xff]
        %v2485 = vld [vmem:[%s3 + $0xd98] sm:$0xff]
        %v2486 = vld [vmem:[%s3 + $0xda0] sm:$0xff]
        %v2487 = vld [vmem:[%s3 + $0xda8] sm:$0xff]
        %v2488 = vld [vmem:[%s3 + $0xdb0] sm:$0xff]
        %v2489 = vld [vmem:[%s3 + $0xdb8] sm:$0xff]
        %v2490 = vld [vmem:[%s3 + $0xdc0] sm:$0xff]
        %v2491 = vld [vmem:[%s3 + $0xdc8] sm:$0xff]
        %v2492 = vld [vmem:[%s3 + $0xdd0] sm:$0xff]
        %v2493 = vld [vmem:[%s3 + $0xdd8] sm:$0xff]
        %v2494 = vld [vmem:[%s3 + $0xde0] sm:$0xff]
        %v2495 = vld [vmem:[%s3 + $0xde8] sm:$0xff]
        %v2496 = vld [vmem:[%s3 + $0xdf0] sm:$0xff]
        %v2497 = vld [vmem:[%s3 + $0xdf8] sm:$0xff]
        %v2498 = vld [vmem:[%s3 + $0xe00] sm:$0xff]
        %v2499 = vld [vmem:[%s3 + $0xe08] sm:$0xff]
        %v2500 = vld [vmem:[%s3 + $0xe10] sm:$0xff]
        %v2501 = vld [vmem:[%s3 + $0xe18] sm:$0xff]
        %v2502 = vld [vmem:[%s3 + $0xe20] sm:$0xff]
        %v2503 = vld [vmem:[%s3 + $0xe28] sm:$0xff]
        %v2504 = vld [vmem:[%s3 + $0xe30] sm:$0xff]
        %v2505 = vld [vmem:[%s3 + $0xe38] sm:$0xff]
        %v2506 = vld [vmem:[%s3 + $0xe40] sm:$0xff]
        %v2507 = vld [vmem:[%s3 + $0xe48] sm:$0xff]
        %v2508 = vld [vmem:[%s3 + $0xe50] sm:$0xff]
        %v2509 = vld [vmem:[%s3 + $0xe58] sm:$0xff]
        %v2510 = vld [vmem:[%s3 + $0xe60] sm:$0xff]
        %v2511 = vld [vmem:[%s3 + $0xe68] sm:$0xff]
        %v2512 = vld [vmem:[%s3 + $0xe70] sm:$0xff]
        %v2513 = vld [vmem:[%s3 + $0xe78] sm:$0xff]
        %v2514 = vld [vmem:[%s3 + $0xe80] sm:$0xff]
        %v2515 = vld [vmem:[%s3 + $0xe88] sm:$0xff]
        %v2516 = vld [vmem:[%s3 + $0xe90] sm:$0xff]
        %v2517 = vld [vmem:[%s3 + $0xe98] sm:$0xff]
        %v2518 = vld [vmem:[%s3 + $0xea0] sm:$0xff]
        %v2519 = vld [vmem:[%s3 + $0xea8] sm:$0xff]
        %v2520 = vld [vmem:[%s3 + $0xeb0] sm:$0xff]
        %v2521 = vld [vmem:[%s3 + $0xeb8] sm:$0xff]
        %v2522 = vld [vmem:[%s3 + $0xec0] sm:$0xff]
        %v2523 = vld [vmem:[%s3 + $0xec8] sm:$0xff]
        %v2524 = vld [vmem:[%s3 + $0xed0] sm:$0xff]
        %v2525 = vld [vmem:[%s3 + $0xed8] sm:$0xff]
        %v2526 = vld [vmem:[%s3 + $0xee0] sm:$0xff]
        %v2527 = vld [vmem:[%s3 + $0xee8] sm:$0xff]
        %v2528 = vld [vmem:[%s3 + $0xef0] sm:$0xff]
        %v2529 = vld [vmem:[%s3 + $0xef8] sm:$0xff]
        %v2530 = vld [vmem:[%s4] sm:$0x7]
        %v2532 = vlaneseq
        %v2533 = vshrl.u32 %v2532, 7
        %v2534 = vsub.s32 0, %v2533
        %v2535 = vrot.slane %v2530, %v2534
        %v2536 = vlaneseq
        %v2537 = vshrl.u32 %v2536, 7
        %v2538 = vsub.s32 1, %v2537
        %v2539 = vrot.slane %v2530, %v2538
        %v2540 = vlaneseq
        %v2541 = vshrl.u32 %v2540, 7
        %v2542 = vsub.s32 2, %v2541
        %v2543 = vrot.slane %v2530, %v2542
        %2547 = vmatprep.subr.mxu0 %v2051
        %2548 = vmatpush1.msra.mxu0 %v2050
        %2549 = vmatprep.subr.mxu0 %v2054
        %2550 = vmatpush1.msra.mxu0 %v2053
        %2551 = vmatprep.subr.mxu0 %v2057
        %2552 = vmatpush1.msra.mxu0 %v2056
        %2553 = vmatprep.subr.mxu0 %v2060
        %2554 = vmatpush1.msra.mxu0 %v2059
        %2555 = vmatprep.subr.mxu0 %v2063
        %2556 = vmatpush1.msra.mxu0 %v2062
        %2557 = vmatprep.subr.mxu0 %v2066
        %2558 = vmatpush1.msra.mxu0 %v2065
        %2559 = vmatprep.subr.mxu0 %v2069
        %2560 = vmatpush1.msra.mxu0 %v2068
        %2561 = vmatprep.subr.mxu0 %v2072
        %2562 = vmatpush1.msra.mxu0 %v2071
        %2563 = vmatprep.subr.mxu0 %v2075
        %2564 = vmatpush1.msra.mxu0 %v2074
        %2565 = vmatprep.subr.mxu0 %v2078
        %2566 = vmatpush1.msra.mxu0 %v2077
        %2567 = vmatprep.subr.mxu0 %v2081
        %2568 = vmatpush1.msra.mxu0 %v2080
        %2569 = vmatprep.subr.mxu0 %v2084
        %2570 = vmatpush1.msra.mxu0 %v2083
        %2571 = vmatprep.subr.mxu0 %v2087
        %2572 = vmatpush1.msra.mxu0 %v2086
        %2573 = vmatprep.subr.mxu0 %v2090
        %2574 = vmatpush1.msra.mxu0 %v2089
        %2575 = vmatprep.subr.mxu0 %v2093
        %2576 = vmatpush1.msra.mxu0 %v2092
        %2577 = vmatprep.subr.mxu0 %v2096
        %2578 = vmatpush1.msra.mxu0 %v2095
        %2579 = vmatprep.subr.mxu0 %v2099
        %2580 = vmatpush1.msra.mxu0 %v2098
        %2581 = vmatprep.subr.mxu0 %v2102
        %2582 = vmatpush1.msra.mxu0 %v2101
        %2583 = vmatprep.subr.mxu0 %v2105
        %2584 = vmatpush1.msra.mxu0 %v2104
        %2585 = vmatprep.subr.mxu0 %v2108
        %2586 = vmatpush1.msra.mxu0 %v2107
        %2587 = vmatprep.subr.mxu0 %v2111
        %2588 = vmatpush1.msra.mxu0 %v2110
        %2589 = vmatprep.subr.mxu0 %v2114
        %2590 = vmatpush1.msra.mxu0 %v2113
        %2591 = vmatprep.subr.mxu0 %v2117
        %2592 = vmatpush1.msra.mxu0 %v2116
        %2593 = vmatprep.subr.mxu0 %v2120
        %2594 = vmatpush1.msra.mxu0 %v2119
        %2595 = vmatprep.subr.mxu0 %v2123
        %2596 = vmatpush1.msra.mxu0 %v2122
        %2597 = vmatprep.subr.mxu0 %v2126
        %2598 = vmatpush1.msra.mxu0 %v2125
        %2599 = vmatprep.subr.mxu0 %v2129
        %2600 = vmatpush1.msra.mxu0 %v2128
        %2601 = vmatprep.subr.mxu0 %v2132
        %2602 = vmatpush1.msra.mxu0 %v2131
        %2603 = vmatprep.subr.mxu0 %v2135
        %2604 = vmatpush1.msra.mxu0 %v2134
        %2605 = vmatprep.subr.mxu0 %v2138
        %2606 = vmatpush1.msra.mxu0 %v2137
        %2607 = vmatprep.subr.mxu0 %v2141
        %2608 = vmatpush1.msra.mxu0 %v2140
        %2609 = vmatprep.subr.mxu0 %v2144
        %2610 = vmatpush1.msra.mxu0 %v2143
        %2611 = vmatprep.mubr.f32.mxu0 %v2041
        %2612 = vmatmul.mubr.f32.gmra.mrb[0].mxu0 %v2040
        %v2613 = vpop.f32.mrb[0].mxu0
        %v2614 = vadd.f32 %v2535, %v2613
        %v2615 = vpop.f32.mrb[0].mxu0
        %v2616 = vadd.f32 %v2539, %v2615
        %2617 = vdwg.mxu0
        %2618 = vmatprep.subr.mxu0 %v2147
        %2619 = vmatpush1.msra.mxu0 %v2146
        %2620 = vmatprep.subr.mxu0 %v2150
        %2621 = vmatpush1.msra.mxu0 %v2149
        %2622 = vmatprep.subr.mxu0 %v2153
        %2623 = vmatpush1.msra.mxu0 %v2152
        %2624 = vmatprep.subr.mxu0 %v2156
        %2625 = vmatpush1.msra.mxu0 %v2155
        %2626 = vmatprep.subr.mxu0 %v2159
        %2627 = vmatpush1.msra.mxu0 %v2158
        %2628 = vmatprep.subr.mxu0 %v2162
        %2629 = vmatpush1.msra.mxu0 %v2161
        %2630 = vmatprep.subr.mxu0 %v2165
        %2631 = vmatpush1.msra.mxu0 %v2164
        %2632 = vmatprep.subr.mxu0 %v2168
        %2633 = vmatpush1.msra.mxu0 %v2167
        %2634 = vmatprep.subr.mxu0 %v2171
        %2635 = vmatpush1.msra.mxu0 %v2170
        %2636 = vmatprep.subr.mxu0 %v2174
        %2637 = vmatpush1.msra.mxu0 %v2173
        %2638 = vmatprep.subr.mxu0 %v2177
        %2639 = vmatpush1.msra.mxu0 %v2176
        %2640 = vmatprep.subr.mxu0 %v2180
        %2641 = vmatpush1.msra.mxu0 %v2179
        %2642 = vmatprep.subr.mxu0 %v2183
        %2643 = vmatpush1.msra.mxu0 %v2182
        %2644 = vmatprep.subr.mxu0 %v2186
        %2645 = vmatpush1.msra.mxu0 %v2185
        %2646 = vmatprep.subr.mxu0 %v2189
        %2647 = vmatpush1.msra.mxu0 %v2188
        %2648 = vmatprep.subr.mxu0 %v2192
        %2649 = vmatpush1.msra.mxu0 %v2191
        %2650 = vmatprep.subr.mxu0 %v2195
        %2651 = vmatpush1.msra.mxu0 %v2194
        %2652 = vmatprep.subr.mxu0 %v2198
        %2653 = vmatpush1.msra.mxu0 %v2197
        %2654 = vmatprep.subr.mxu0 %v2201
        %2655 = vmatpush1.msra.mxu0 %v2200
        %2656 = vmatprep.subr.mxu0 %v2204
        %2657 = vmatpush1.msra.mxu0 %v2203
        %2658 = vmatprep.subr.mxu0 %v2207
        %2659 = vmatpush1.msra.mxu0 %v2206
        %2660 = vmatprep.subr.mxu0 %v2210
        %2661 = vmatpush1.msra.mxu0 %v2209
        %2662 = vmatprep.subr.mxu0 %v2213
        %2663 = vmatpush1.msra.mxu0 %v2212
        %2664 = vmatprep.subr.mxu0 %v2216
        %2665 = vmatpush1.msra.mxu0 %v2215
        %2666 = vmatprep.subr.mxu0 %v2219
        %2667 = vmatpush1.msra.mxu0 %v2218
        %2668 = vmatprep.subr.mxu0 %v2222
        %2669 = vmatpush1.msra.mxu0 %v2221
        %2670 = vmatprep.subr.mxu0 %v2225
        %2671 = vmatpush1.msra.mxu0 %v2224
        %2672 = vmatprep.subr.mxu0 %v2228
        %2673 = vmatpush1.msra.mxu0 %v2227
        %2674 = vmatprep.subr.mxu0 %v2231
        %2675 = vmatpush1.msra.mxu0 %v2230
        %2676 = vmatprep.subr.mxu0 %v2234
        %2677 = vmatpush1.msra.mxu0 %v2233
        %2678 = vmatprep.subr.mxu0 %v2237
        %2679 = vmatpush1.msra.mxu0 %v2236
        %2680 = vmatprep.subr.mxu0 %v2240
        %2681 = vmatpush1.msra.mxu0 %v2239
        %2682 = vmatprep.mubr.f32.mxu0 %v2043
        %2683 = vmatmul.mubr.f32.gmra.mrb[0].mxu0 %v2042
        %v2684 = vpop.f32.mrb[0].mxu0
        %v2685 = vadd.f32 %v2614, %v2684
        %v2686 = vpop.f32.mrb[0].mxu0
        %v2687 = vadd.f32 %v2616, %v2686
        %2688 = vdwg.mxu0
        %2689 = vmatprep.subr.mxu0 %v2243
        %2690 = vmatpush1.msra.mxu0 %v2242
        %2691 = vmatprep.subr.mxu0 %v2246
        %2692 = vmatpush1.msra.mxu0 %v2245
        %2693 = vmatprep.subr.mxu0 %v2249
        %2694 = vmatpush1.msra.mxu0 %v2248
        %2695 = vmatprep.subr.mxu0 %v2252
        %2696 = vmatpush1.msra.mxu0 %v2251
        %2697 = vmatprep.subr.mxu0 %v2255
        %2698 = vmatpush1.msra.mxu0 %v2254
        %2699 = vmatprep.subr.mxu0 %v2258
        %2700 = vmatpush1.msra.mxu0 %v2257
        %2701 = vmatprep.subr.mxu0 %v2261
        %2702 = vmatpush1.msra.mxu0 %v2260
        %2703 = vmatprep.subr.mxu0 %v2264
        %2704 = vmatpush1.msra.mxu0 %v2263
        %2705 = vmatprep.subr.mxu0 %v2267
        %2706 = vmatpush1.msra.mxu0 %v2266
        %2707 = vmatprep.subr.mxu0 %v2270
        %2708 = vmatpush1.msra.mxu0 %v2269
        %2709 = vmatprep.subr.mxu0 %v2273
        %2710 = vmatpush1.msra.mxu0 %v2272
        %2711 = vmatprep.subr.mxu0 %v2276
        %2712 = vmatpush1.msra.mxu0 %v2275
        %2713 = vmatprep.subr.mxu0 %v2279
        %2714 = vmatpush1.msra.mxu0 %v2278
        %2715 = vmatprep.subr.mxu0 %v2282
        %2716 = vmatpush1.msra.mxu0 %v2281
        %2717 = vmatprep.subr.mxu0 %v2285
        %2718 = vmatpush1.msra.mxu0 %v2284
        %2719 = vmatprep.subr.mxu0 %v2288
        %2720 = vmatpush1.msra.mxu0 %v2287
        %2721 = vmatprep.subr.mxu0 %v2291
        %2722 = vmatpush1.msra.mxu0 %v2290
        %2723 = vmatprep.subr.mxu0 %v2294
        %2724 = vmatpush1.msra.mxu0 %v2293
        %2725 = vmatprep.subr.mxu0 %v2297
        %2726 = vmatpush1.msra.mxu0 %v2296
        %2727 = vmatprep.subr.mxu0 %v2300
        %2728 = vmatpush1.msra.mxu0 %v2299
        %2729 = vmatprep.subr.mxu0 %v2303
        %2730 = vmatpush1.msra.mxu0 %v2302
        %2731 = vmatprep.subr.mxu0 %v2306
        %2732 = vmatpush1.msra.mxu0 %v2305
        %2733 = vmatprep.subr.mxu0 %v2309
        %2734 = vmatpush1.msra.mxu0 %v2308
        %2735 = vmatprep.subr.mxu0 %v2312
        %2736 = vmatpush1.msra.mxu0 %v2311
        %2737 = vmatprep.subr.mxu0 %v2315
        %2738 = vmatpush1.msra.mxu0 %v2314
        %2739 = vmatprep.subr.mxu0 %v2318
        %2740 = vmatpush1.msra.mxu0 %v2317
        %2741 = vmatprep.subr.mxu0 %v2321
        %2742 = vmatpush1.msra.mxu0 %v2320
        %2743 = vmatprep.subr.mxu0 %v2324
        %2744 = vmatpush1.msra.mxu0 %v2323
        %2745 = vmatprep.subr.mxu0 %v2327
        %2746 = vmatpush1.msra.mxu0 %v2326
        %2747 = vmatprep.subr.mxu0 %v2330
        %2748 = vmatpush1.msra.mxu0 %v2329
        %2749 = vmatprep.subr.mxu0 %v2333
        %2750 = vmatpush1.msra.mxu0 %v2332
        %2751 = vmatprep.subr.mxu0 %v2336
        %2752 = vmatpush1.msra.mxu0 %v2335
        %2753 = vmatprep.mubr.f32.mxu0 %v2045
        %2754 = vmatmul.mubr.f32.gmra.mrb[0].mxu0 %v2044
        %v2755 = vpop.f32.mrb[0].mxu0
        %v2756 = vadd.f32 %v2685, %v2755
        %v2757 = vpop.f32.mrb[0].mxu0
        %v2758 = vadd.f32 %v2687, %v2757
        %2759 = vdwg.mxu0
        %2760 = vmatprep.subr.mxu0 %v2339
        %2761 = vmatpush1.msra.mxu0 %v2338
        %2762 = vmatprep.subr.mxu0 %v2342
        %2763 = vmatpush1.msra.mxu0 %v2341
        %2764 = vmatprep.subr.mxu0 %v2345
        %2765 = vmatpush1.msra.mxu0 %v2344
        %2766 = vmatprep.subr.mxu0 %v2348
        %2767 = vmatpush1.msra.mxu0 %v2347
        %2768 = vmatprep.subr.mxu0 %v2351
        %2769 = vmatpush1.msra.mxu0 %v2350
        %2770 = vmatprep.subr.mxu0 %v2354
        %2771 = vmatpush1.msra.mxu0 %v2353
        %2772 = vmatprep.subr.mxu0 %v2357
        %2773 = vmatpush1.msra.mxu0 %v2356
        %2774 = vmatprep.subr.mxu0 %v2360
        %2775 = vmatpush1.msra.mxu0 %v2359
        %2776 = vmatprep.subr.mxu0 %v2363
        %2777 = vmatpush1.msra.mxu0 %v2362
        %2778 = vmatprep.subr.mxu0 %v2366
        %2779 = vmatpush1.msra.mxu0 %v2365
        %2780 = vmatprep.subr.mxu0 %v2369
        %2781 = vmatpush1.msra.mxu0 %v2368
        %2782 = vmatprep.subr.mxu0 %v2372
        %2783 = vmatpush1.msra.mxu0 %v2371
        %2784 = vmatprep.subr.mxu0 %v2375
        %2785 = vmatpush1.msra.mxu0 %v2374
        %2786 = vmatprep.subr.mxu0 %v2378
        %2787 = vmatpush1.msra.mxu0 %v2377
        %2788 = vmatprep.subr.mxu0 %v2381
        %2789 = vmatpush1.msra.mxu0 %v2380
        %2790 = vmatprep.subr.mxu0 %v2384
        %2791 = vmatpush1.msra.mxu0 %v2383
        %2792 = vmatprep.subr.mxu0 %v2387
        %2793 = vmatpush1.msra.mxu0 %v2386
        %2794 = vmatprep.subr.mxu0 %v2390
        %2795 = vmatpush1.msra.mxu0 %v2389
        %2796 = vmatprep.subr.mxu0 %v2393
        %2797 = vmatpush1.msra.mxu0 %v2392
        %2798 = vmatprep.subr.mxu0 %v2396
        %2799 = vmatpush1.msra.mxu0 %v2395
        %2800 = vmatprep.subr.mxu0 %v2399
        %2801 = vmatpush1.msra.mxu0 %v2398
        %2802 = vmatprep.subr.mxu0 %v2402
        %2803 = vmatpush1.msra.mxu0 %v2401
        %2804 = vmatprep.subr.mxu0 %v2405
        %2805 = vmatpush1.msra.mxu0 %v2404
        %2806 = vmatprep.subr.mxu0 %v2408
        %2807 = vmatpush1.msra.mxu0 %v2407
        %2808 = vmatprep.subr.mxu0 %v2411
        %2809 = vmatpush1.msra.mxu0 %v2410
        %2810 = vmatprep.subr.mxu0 %v2414
        %2811 = vmatpush1.msra.mxu0 %v2413
        %2812 = vmatprep.subr.mxu0 %v2417
        %2813 = vmatpush1.msra.mxu0 %v2416
        %2814 = vmatprep.subr.mxu0 %v2420
        %2815 = vmatpush1.msra.mxu0 %v2419
        %2816 = vmatprep.subr.mxu0 %v2423
        %2817 = vmatpush1.msra.mxu0 %v2422
        %2818 = vmatprep.subr.mxu0 %v2426
        %2819 = vmatpush1.msra.mxu0 %v2425
        %2820 = vmatprep.subr.mxu0 %v2429
        %2821 = vmatpush1.msra.mxu0 %v2428
        %2822 = vmatprep.subr.mxu0 %v2432
        %2823 = vmatpush1.msra.mxu0 %v2431
        %2824 = vmatprep.mubr.f32.mxu0 %v2047
        %2825 = vmatmul.mubr.f32.gmra.mrb[0].mxu0 %v2046
        %v2826 = vpop.f32.mrb[0].mxu0
        %v2827 = vadd.f32 %v2756, %v2826
        %v2828 = vpop.f32.mrb[0].mxu0
        %v2829 = vadd.f32 %v2758, %v2828
        %2830 = vdwg.mxu0
        %2831 = vmatprep.subr.mxu0 %v2435
        %2832 = vmatpush1.msra.mxu0 %v2434
        %2833 = vmatprep.subr.mxu0 %v2438
        %2834 = vmatpush1.msra.mxu0 %v2437
        %2835 = vmatprep.subr.mxu0 %v2441
        %2836 = vmatpush1.msra.mxu0 %v2440
        %2837 = vmatprep.subr.mxu0 %v2444
        %2838 = vmatpush1.msra.mxu0 %v2443
        %2839 = vmatprep.subr.mxu0 %v2447
        %2840 = vmatpush1.msra.mxu0 %v2446
        %2841 = vmatprep.subr.mxu0 %v2450
        %2842 = vmatpush1.msra.mxu0 %v2449
        %2843 = vmatprep.subr.mxu0 %v2453
        %2844 = vmatpush1.msra.mxu0 %v2452
        %2845 = vmatprep.subr.mxu0 %v2456
        %2846 = vmatpush1.msra.mxu0 %v2455
        %2847 = vmatprep.subr.mxu0 %v2459
        %2848 = vmatpush1.msra.mxu0 %v2458
        %2849 = vmatprep.subr.mxu0 %v2462
        %2850 = vmatpush1.msra.mxu0 %v2461
        %2851 = vmatprep.subr.mxu0 %v2465
        %2852 = vmatpush1.msra.mxu0 %v2464
        %2853 = vmatprep.subr.mxu0 %v2468
        %2854 = vmatpush1.msra.mxu0 %v2467
        %2855 = vmatprep.subr.mxu0 %v2471
        %2856 = vmatpush1.msra.mxu0 %v2470
        %2857 = vmatprep.subr.mxu0 %v2474
        %2858 = vmatpush1.msra.mxu0 %v2473
        %2859 = vmatprep.subr.mxu0 %v2477
        %2860 = vmatpush1.msra.mxu0 %v2476
        %2861 = vmatprep.subr.mxu0 %v2480
        %2862 = vmatpush1.msra.mxu0 %v2479
        %2863 = vmatprep.subr.mxu0 %v2483
        %2864 = vmatpush1.msra.mxu0 %v2482
        %2865 = vmatprep.subr.mxu0 %v2486
        %2866 = vmatpush1.msra.mxu0 %v2485
        %2867 = vmatprep.subr.mxu0 %v2489
        %2868 = vmatpush1.msra.mxu0 %v2488
        %2869 = vmatprep.subr.mxu0 %v2492
        %2870 = vmatpush1.msra.mxu0 %v2491
        %2871 = vmatprep.subr.mxu0 %v2495
        %2872 = vmatpush1.msra.mxu0 %v2494
        %2873 = vmatprep.subr.mxu0 %v2498
        %2874 = vmatpush1.msra.mxu0 %v2497
        %2875 = vmatprep.subr.mxu0 %v2501
        %2876 = vmatpush1.msra.mxu0 %v2500
        %2877 = vmatprep.subr.mxu0 %v2504
        %2878 = vmatpush1.msra.mxu0 %v2503
        %2879 = vmatprep.subr.mxu0 %v2507
        %2880 = vmatpush1.msra.mxu0 %v2506
        %2881 = vmatprep.subr.mxu0 %v2510
        %2882 = vmatpush1.msra.mxu0 %v2509
        %2883 = vmatprep.subr.mxu0 %v2513
        %2884 = vmatpush1.msra.mxu0 %v2512
        %2885 = vmatprep.subr.mxu0 %v2516
        %2886 = vmatpush1.msra.mxu0 %v2515
        %2887 = vmatprep.subr.mxu0 %v2519
        %2888 = vmatpush1.msra.mxu0 %v2518
        %2889 = vmatprep.subr.mxu0 %v2522
        %2890 = vmatpush1.msra.mxu0 %v2521
        %2891 = vmatprep.subr.mxu0 %v2525
        %2892 = vmatpush1.msra.mxu0 %v2524
        %2893 = vmatprep.subr.mxu0 %v2528
        %2894 = vmatpush1.msra.mxu0 %v2527
        %2895 = vmatprep.mubr.f32.mxu0 %v2049
        %2896 = vmatmul.mubr.f32.gmra.mrb[0].mxu0 %v2048
        %v2897 = vpop.f32.mrb[0].mxu0
        %v2898 = vadd.f32 %v2827, %v2897
        %v2899 = vpop.f32.mrb[0].mxu0
        %v2900 = vadd.f32 %v2829, %v2899
        %2901 = vdwg.mxu0
        %2902 = vmatprep.subr.mxu0 0.0
        %2903 = vmatpush1.msra.mxu0 %v2052
        %2904 = vmatprep.subr.mxu0 0.0
        %2905 = vmatpush1.msra.mxu0 %v2055
        %2906 = vmatprep.subr.mxu0 0.0
        %2907 = vmatpush1.msra.mxu0 %v2058
        %2908 = vmatprep.subr.mxu0 0.0
        %2909 = vmatpush1.msra.mxu0 %v2061
        %2910 = vmatprep.subr.mxu0 0.0
        %2911 = vmatpush1.msra.mxu0 %v2064
        %2912 = vmatprep.subr.mxu0 0.0
        %2913 = vmatpush1.msra.mxu0 %v2067
        %2914 = vmatprep.subr.mxu0 0.0
        %2915 = vmatpush1.msra.mxu0 %v2070
        %2916 = vmatprep.subr.mxu0 0.0
        %2917 = vmatpush1.msra.mxu0 %v2073
        %2918 = vmatprep.subr.mxu0 0.0
        %2919 = vmatpush1.msra.mxu0 %v2076
        %2920 = vmatprep.subr.mxu0 0.0
        %2921 = vmatpush1.msra.mxu0 %v2079
        %2922 = vmatprep.subr.mxu0 0.0
        %2923 = vmatpush1.msra.mxu0 %v2082
        %2924 = vmatprep.subr.mxu0 0.0
        %2925 = vmatpush1.msra.mxu0 %v2085
        %2926 = vmatprep.subr.mxu0 0.0
        %2927 = vmatpush1.msra.mxu0 %v2088
        %2928 = vmatprep.subr.mxu0 0.0
        %2929 = vmatpush1.msra.mxu0 %v2091
        %2930 = vmatprep.subr.mxu0 0.0
        %2931 = vmatpush1.msra.mxu0 %v2094
        %2932 = vmatprep.subr.mxu0 0.0
        %2933 = vmatpush1.msra.mxu0 %v2097
        %2934 = vmatprep.subr.mxu0 0.0
        %2935 = vmatpush1.msra.mxu0 %v2100
        %2936 = vmatprep.subr.mxu0 0.0
        %2937 = vmatpush1.msra.mxu0 %v2103
        %2938 = vmatprep.subr.mxu0 0.0
        %2939 = vmatpush1.msra.mxu0 %v2106
        %2940 = vmatprep.subr.mxu0 0.0
        %2941 = vmatpush1.msra.mxu0 %v2109
        %2942 = vmatprep.subr.mxu0 0.0
        %2943 = vmatpush1.msra.mxu0 %v2112
        %2944 = vmatprep.subr.mxu0 0.0
        %2945 = vmatpush1.msra.mxu0 %v2115
        %2946 = vmatprep.subr.mxu0 0.0
        %2947 = vmatpush1.msra.mxu0 %v2118
        %2948 = vmatprep.subr.mxu0 0.0
        %2949 = vmatpush1.msra.mxu0 %v2121
        %2950 = vmatprep.subr.mxu0 0.0
        %2951 = vmatpush1.msra.mxu0 %v2124
        %2952 = vmatprep.subr.mxu0 0.0
        %2953 = vmatpush1.msra.mxu0 %v2127
        %2954 = vmatprep.subr.mxu0 0.0
        %2955 = vmatpush1.msra.mxu0 %v2130
        %2956 = vmatprep.subr.mxu0 0.0
        %2957 = vmatpush1.msra.mxu0 %v2133
        %2958 = vmatprep.subr.mxu0 0.0
        %2959 = vmatpush1.msra.mxu0 %v2136
        %2960 = vmatprep.subr.mxu0 0.0
        %2961 = vmatpush1.msra.mxu0 %v2139
        %2962 = vmatprep.subr.mxu0 0.0
        %2963 = vmatpush1.msra.mxu0 %v2142
        %2964 = vmatprep.subr.mxu0 0.0
        %2965 = vmatpush1.msra.mxu0 %v2145
        %2966 = vmatprep.mubr.f32.mxu0 %v2041
        %2967 = vmatmul.mubr.f32.gmra.mrb[0].mxu0 %v2040
        %v2968 = vpop.f32.mrb[0].mxu0
        %v2969 = vadd.f32 %v2543, %v2968
        %v2970 = vpop.f32.mrb[0].mxu0
        %2971 = vdwg.mxu0
        %2972 = vmatprep.subr.mxu0 0.0
        %2973 = vmatpush1.msra.mxu0 %v2148
        %2974 = vmatprep.subr.mxu0 0.0
        %2975 = vmatpush1.msra.mxu0 %v2151
        %2976 = vmatprep.subr.mxu0 0.0
        %2977 = vmatpush1.msra.mxu0 %v2154
        %2978 = vmatprep.subr.mxu0 0.0
        %2979 = vmatpush1.msra.mxu0 %v2157
        %2980 = vmatprep.subr.mxu0 0.0
        %2981 = vmatpush1.msra.mxu0 %v2160
        %2982 = vmatprep.subr.mxu0 0.0
        %2983 = vmatpush1.msra.mxu0 %v2163
        %2984 = vmatprep.subr.mxu0 0.0
        %2985 = vmatpush1.msra.mxu0 %v2166
        %2986 = vmatprep.subr.mxu0 0.0
        %2987 = vmatpush1.msra.mxu0 %v2169
        %2988 = vmatprep.subr.mxu0 0.0
        %2989 = vmatpush1.msra.mxu0 %v2172
        %2990 = vmatprep.subr.mxu0 0.0
        %2991 = vmatpush1.msra.mxu0 %v2175
        %2992 = vmatprep.subr.mxu0 0.0
        %2993 = vmatpush1.msra.mxu0 %v2178
        %2994 = vmatprep.subr.mxu0 0.0
        %2995 = vmatpush1.msra.mxu0 %v2181
        %2996 = vmatprep.subr.mxu0 0.0
        %2997 = vmatpush1.msra.mxu0 %v2184
        %2998 = vmatprep.subr.mxu0 0.0
        %2999 = vmatpush1.msra.mxu0 %v2187
        %3000 = vmatprep.subr.mxu0 0.0
        %3001 = vmatpush1.msra.mxu0 %v2190
        %3002 = vmatprep.subr.mxu0 0.0
        %3003 = vmatpush1.msra.mxu0 %v2193
        %3004 = vmatprep.subr.mxu0 0.0
        %3005 = vmatpush1.msra.mxu0 %v2196
        %3006 = vmatprep.subr.mxu0 0.0
        %3007 = vmatpush1.msra.mxu0 %v2199
        %3008 = vmatprep.subr.mxu0 0.0
        %3009 = vmatpush1.msra.mxu0 %v2202
        %3010 = vmatprep.subr.mxu0 0.0
        %3011 = vmatpush1.msra.mxu0 %v2205
        %3012 = vmatprep.subr.mxu0 0.0
        %3013 = vmatpush1.msra.mxu0 %v2208
        %3014 = vmatprep.subr.mxu0 0.0
        %3015 = vmatpush1.msra.mxu0 %v2211
        %3016 = vmatprep.subr.mxu0 0.0
        %3017 = vmatpush1.msra.mxu0 %v2214
        %3018 = vmatprep.subr.mxu0 0.0
        %3019 = vmatpush1.msra.mxu0 %v2217
        %3020 = vmatprep.subr.mxu0 0.0
        %3021 = vmatpush1.msra.mxu0 %v2220
        %3022 = vmatprep.subr.mxu0 0.0
        %3023 = vmatpush1.msra.mxu0 %v2223
        %3024 = vmatprep.subr.mxu0 0.0
        %3025 = vmatpush1.msra.mxu0 %v2226
        %3026 = vmatprep.subr.mxu0 0.0
        %3027 = vmatpush1.msra.mxu0 %v2229
        %3028 = vmatprep.subr.mxu0 0.0
        %3029 = vmatpush1.msra.mxu0 %v2232
        %3030 = vmatprep.subr.mxu0 0.0
        %3031 = vmatpush1.msra.mxu0 %v2235
        %3032 = vmatprep.subr.mxu0 0.0
        %3033 = vmatpush1.msra.mxu0 %v2238
        %3034 = vmatprep.subr.mxu0 0.0
        %3035 = vmatpush1.msra.mxu0 %v2241
        %3036 = vmatprep.mubr.f32.mxu0 %v2043
        %3037 = vmatmul.mubr.f32.gmra.mrb[0].mxu0 %v2042
        %v3038 = vpop.f32.mrb[0].mxu0
        %v3039 = vadd.f32 %v2969, %v3038
        %v3040 = vpop.f32.mrb[0].mxu0
        %3041 = vdwg.mxu0
        %3042 = vmatprep.subr.mxu0 0.0
        %3043 = vmatpush1.msra.mxu0 %v2244
        %3044 = vmatprep.subr.mxu0 0.0
        %3045 = vmatpush1.msra.mxu0 %v2247
        %3046 = vmatprep.subr.mxu0 0.0
        %3047 = vmatpush1.msra.mxu0 %v2250
        %3048 = vmatprep.subr.mxu0 0.0
        %3049 = vmatpush1.msra.mxu0 %v2253
        %3050 = vmatprep.subr.mxu0 0.0
        %3051 = vmatpush1.msra.mxu0 %v2256
        %3052 = vmatprep.subr.mxu0 0.0
        %3053 = vmatpush1.msra.mxu0 %v2259
        %3054 = vmatprep.subr.mxu0 0.0
        %3055 = vmatpush1.msra.mxu0 %v2262
        %3056 = vmatprep.subr.mxu0 0.0
        %3057 = vmatpush1.msra.mxu0 %v2265
        %3058 = vmatprep.subr.mxu0 0.0
        %3059 = vmatpush1.msra.mxu0 %v2268
        %3060 = vmatprep.subr.mxu0 0.0
        %3061 = vmatpush1.msra.mxu0 %v2271
        %3062 = vmatprep.subr.mxu0 0.0
        %3063 = vmatpush1.msra.mxu0 %v2274
        %3064 = vmatprep.subr.mxu0 0.0
        %3065 = vmatpush1.msra.mxu0 %v2277
        %3066 = vmatprep.subr.mxu0 0.0
        %3067 = vmatpush1.msra.mxu0 %v2280
        %3068 = vmatprep.subr.mxu0 0.0
        %3069 = vmatpush1.msra.mxu0 %v2283
        %3070 = vmatprep.subr.mxu0 0.0
        %3071 = vmatpush1.msra.mxu0 %v2286
        %3072 = vmatprep.subr.mxu0 0.0
        %3073 = vmatpush1.msra.mxu0 %v2289
        %3074 = vmatprep.subr.mxu0 0.0
        %3075 = vmatpush1.msra.mxu0 %v2292
        %3076 = vmatprep.subr.mxu0 0.0
        %3077 = vmatpush1.msra.mxu0 %v2295
        %3078 = vmatprep.subr.mxu0 0.0
        %3079 = vmatpush1.msra.mxu0 %v2298
        %3080 = vmatprep.subr.mxu0 0.0
        %3081 = vmatpush1.msra.mxu0 %v2301
        %3082 = vmatprep.subr.mxu0 0.0
        %3083 = vmatpush1.msra.mxu0 %v2304
        %3084 = vmatprep.subr.mxu0 0.0
        %3085 = vmatpush1.msra.mxu0 %v2307
        %3086 = vmatprep.subr.mxu0 0.0
        %3087 = vmatpush1.msra.mxu0 %v2310
        %3088 = vmatprep.subr.mxu0 0.0
        %3089 = vmatpush1.msra.mxu0 %v2313
        %3090 = vmatprep.subr.mxu0 0.0
        %3091 = vmatpush1.msra.mxu0 %v2316
        %3092 = vmatprep.subr.mxu0 0.0
        %3093 = vmatpush1.msra.mxu0 %v2319
        %3094 = vmatprep.subr.mxu0 0.0
        %3095 = vmatpush1.msra.mxu0 %v2322
        %3096 = vmatprep.subr.mxu0 0.0
        %3097 = vmatpush1.msra.mxu0 %v2325
        %3098 = vmatprep.subr.mxu0 0.0
        %3099 = vmatpush1.msra.mxu0 %v2328
        %3100 = vmatprep.subr.mxu0 0.0
        %3101 = vmatpush1.msra.mxu0 %v2331
        %3102 = vmatprep.subr.mxu0 0.0
        %3103 = vmatpush1.msra.mxu0 %v2334
        %3104 = vmatprep.subr.mxu0 0.0
        %3105 = vmatpush1.msra.mxu0 %v2337
        %3106 = vmatprep.mubr.f32.mxu0 %v2045
        %3107 = vmatmul.mubr.f32.gmra.mrb[0].mxu0 %v2044
        %v3108 = vpop.f32.mrb[0].mxu0
        %v3109 = vadd.f32 %v3039, %v3108
        %v3110 = vpop.f32.mrb[0].mxu0
        %3111 = vdwg.mxu0
        %3112 = vmatprep.subr.mxu0 0.0
        %3113 = vmatpush1.msra.mxu0 %v2340
        %3114 = vmatprep.subr.mxu0 0.0
        %3115 = vmatpush1.msra.mxu0 %v2343
        %3116 = vmatprep.subr.mxu0 0.0
        %3117 = vmatpush1.msra.mxu0 %v2346
        %3118 = vmatprep.subr.mxu0 0.0
        %3119 = vmatpush1.msra.mxu0 %v2349
        %3120 = vmatprep.subr.mxu0 0.0
        %3121 = vmatpush1.msra.mxu0 %v2352
        %3122 = vmatprep.subr.mxu0 0.0
        %3123 = vmatpush1.msra.mxu0 %v2355
        %3124 = vmatprep.subr.mxu0 0.0
        %3125 = vmatpush1.msra.mxu0 %v2358
        %3126 = vmatprep.subr.mxu0 0.0
        %3127 = vmatpush1.msra.mxu0 %v2361
        %3128 = vmatprep.subr.mxu0 0.0
        %3129 = vmatpush1.msra.mxu0 %v2364
        %3130 = vmatprep.subr.mxu0 0.0
        %3131 = vmatpush1.msra.mxu0 %v2367
        %3132 = vmatprep.subr.mxu0 0.0
        %3133 = vmatpush1.msra.mxu0 %v2370
        %3134 = vmatprep.subr.mxu0 0.0
        %3135 = vmatpush1.msra.mxu0 %v2373
        %3136 = vmatprep.subr.mxu0 0.0
        %3137 = vmatpush1.msra.mxu0 %v2376
        %3138 = vmatprep.subr.mxu0 0.0
        %3139 = vmatpush1.msra.mxu0 %v2379
        %3140 = vmatprep.subr.mxu0 0.0
        %3141 = vmatpush1.msra.mxu0 %v2382
        %3142 = vmatprep.subr.mxu0 0.0
        %3143 = vmatpush1.msra.mxu0 %v2385
        %3144 = vmatprep.subr.mxu0 0.0
        %3145 = vmatpush1.msra.mxu0 %v2388
        %3146 = vmatprep.subr.mxu0 0.0
        %3147 = vmatpush1.msra.mxu0 %v2391
        %3148 = vmatprep.subr.mxu0 0.0
        %3149 = vmatpush1.msra.mxu0 %v2394
        %3150 = vmatprep.subr.mxu0 0.0
        %3151 = vmatpush1.msra.mxu0 %v2397
        %3152 = vmatprep.subr.mxu0 0.0
        %3153 = vmatpush1.msra.mxu0 %v2400
        %3154 = vmatprep.subr.mxu0 0.0
        %3155 = vmatpush1.msra.mxu0 %v2403
        %3156 = vmatprep.subr.mxu0 0.0
        %3157 = vmatpush1.msra.mxu0 %v2406
        %3158 = vmatprep.subr.mxu0 0.0
        %3159 = vmatpush1.msra.mxu0 %v2409
        %3160 = vmatprep.subr.mxu0 0.0
        %3161 = vmatpush1.msra.mxu0 %v2412
        %3162 = vmatprep.subr.mxu0 0.0
        %3163 = vmatpush1.msra.mxu0 %v2415
        %3164 = vmatprep.subr.mxu0 0.0
        %3165 = vmatpush1.msra.mxu0 %v2418
        %3166 = vmatprep.subr.mxu0 0.0
        %3167 = vmatpush1.msra.mxu0 %v2421
        %3168 = vmatprep.subr.mxu0 0.0
        %3169 = vmatpush1.msra.mxu0 %v2424
        %3170 = vmatprep.subr.mxu0 0.0
        %3171 = vmatpush1.msra.mxu0 %v2427
        %3172 = vmatprep.subr.mxu0 0.0
        %3173 = vmatpush1.msra.mxu0 %v2430
        %3174 = vmatprep.subr.mxu0 0.0
        %3175 = vmatpush1.msra.mxu0 %v2433
        %3176 = vmatprep.mubr.f32.mxu0 %v2047
        %3177 = vmatmul.mubr.f32.gmra.mrb[0].mxu0 %v2046
        %v3178 = vpop.f32.mrb[0].mxu0
        %v3179 = vadd.f32 %v3109, %v3178
        %v3180 = vpop.f32.mrb[0].mxu0
        %3181 = vdwg.mxu0
        %3182 = vmatprep.subr.mxu0 0.0
        %3183 = vmatpush1.msra.mxu0 %v2436
        %3184 = vmatprep.subr.mxu0 0.0
        %3185 = vmatpush1.msra.mxu0 %v2439
        %3186 = vmatprep.subr.mxu0 0.0
        %3187 = vmatpush1.msra.mxu0 %v2442
        %3188 = vmatprep.subr.mxu0 0.0
        %3189 = vmatpush1.msra.mxu0 %v2445
        %3190 = vmatprep.subr.mxu0 0.0
        %3191 = vmatpush1.msra.mxu0 %v2448
        %3192 = vmatprep.subr.mxu0 0.0
        %3193 = vmatpush1.msra.mxu0 %v2451
        %3194 = vmatprep.subr.mxu0 0.0
        %3195 = vmatpush1.msra.mxu0 %v2454
        %3196 = vmatprep.subr.mxu0 0.0
        %3197 = vmatpush1.msra.mxu0 %v2457
        %3198 = vmatprep.subr.mxu0 0.0
        %3199 = vmatpush1.msra.mxu0 %v2460
        %3200 = vmatprep.subr.mxu0 0.0
        %3201 = vmatpush1.msra.mxu0 %v2463
        %3202 = vmatprep.subr.mxu0 0.0
        %3203 = vmatpush1.msra.mxu0 %v2466
        %3204 = vmatprep.subr.mxu0 0.0
        %3205 = vmatpush1.msra.mxu0 %v2469
        %3206 = vmatprep.subr.mxu0 0.0
        %3207 = vmatpush1.msra.mxu0 %v2472
        %3208 = vmatprep.subr.mxu0 0.0
        %3209 = vmatpush1.msra.mxu0 %v2475
        %3210 = vmatprep.subr.mxu0 0.0
        %3211 = vmatpush1.msra.mxu0 %v2478
        %3212 = vmatprep.subr.mxu0 0.0
        %3213 = vmatpush1.msra.mxu0 %v2481
        %3214 = vmatprep.subr.mxu0 0.0
        %3215 = vmatpush1.msra.mxu0 %v2484
        %3216 = vmatprep.subr.mxu0 0.0
        %3217 = vmatpush1.msra.mxu0 %v2487
        %3218 = vmatprep.subr.mxu0 0.0
        %3219 = vmatpush1.msra.mxu0 %v2490
        %3220 = vmatprep.subr.mxu0 0.0
        %3221 = vmatpush1.msra.mxu0 %v2493
        %3222 = vmatprep.subr.mxu0 0.0
        %3223 = vmatpush1.msra.mxu0 %v2496
        %3224 = vmatprep.subr.mxu0 0.0
        %3225 = vmatpush1.msra.mxu0 %v2499
        %3226 = vmatprep.subr.mxu0 0.0
        %3227 = vmatpush1.msra.mxu0 %v2502
        %3228 = vmatprep.subr.mxu0 0.0
        %3229 = vmatpush1.msra.mxu0 %v2505
        %3230 = vmatprep.subr.mxu0 0.0
        %3231 = vmatpush1.msra.mxu0 %v2508
        %3232 = vmatprep.subr.mxu0 0.0
        %3233 = vmatpush1.msra.mxu0 %v2511
        %3234 = vmatprep.subr.mxu0 0.0
        %3235 = vmatpush1.msra.mxu0 %v2514
        %3236 = vmatprep.subr.mxu0 0.0
        %3237 = vmatpush1.msra.mxu0 %v2517
        %3238 = vmatprep.subr.mxu0 0.0
        %3239 = vmatpush1.msra.mxu0 %v2520
        %3240 = vmatprep.subr.mxu0 0.0
        %3241 = vmatpush1.msra.mxu0 %v2523
        %3242 = vmatprep.subr.mxu0 0.0
        %3243 = vmatpush1.msra.mxu0 %v2526
        %3244 = vmatprep.subr.mxu0 0.0
        %3245 = vmatpush1.msra.mxu0 %v2529
        %3246 = vmatprep.mubr.f32.mxu0 %v2049
        %3247 = vmatmul.mubr.f32.gmra.mrb[0].mxu0 %v2048
        %v3248 = vpop.f32.mrb[0].mxu0
        %v3249 = vadd.f32 %v3179, %v3248
        %v3250 = vpop.f32.mrb[0].mxu0
        %3251 = vdwg.mxu0
        %v3252 = vmax.f32 %v2898, 0.0
        %v3253 = vmax.f32 %v2900, 0.0
        %v3254 = vmax.f32 %v3249, 0.0
        %v3255 = vld [vmem:[%s5] sm:$0xff]
        %v3256 = vld [vmem:[%s5 + $0x8] sm:$0xff]
        %v3257 = vld [vmem:[%s5 + $0x10] sm:$0xff]
        %v3258 = vld [vmem:[%s5 + $0x18] sm:$0xff]
        %v3259 = vld [vmem:[%s5 + $0x20] sm:$0xff]
        %v3260 = vld [vmem:[%s5 + $0x28] sm:$0xff]
        %v3261 = vld [vmem:[%s5 + $0x30] sm:$0xff]
        %v3262 = vld [vmem:[%s5 + $0x38] sm:$0xff]
        %v3263 = vld [vmem:[%s5 + $0x40] sm:$0xff]
        %v3264 = vld [vmem:[%s5 + $0x48] sm:$0xff]
        %v3265 = vld [vmem:[%s5 + $0x50] sm:$0xff]
        %v3266 = vld [vmem:[%s5 + $0x58] sm:$0xff]
        %v3267 = vld [vmem:[%s5 + $0x60] sm:$0xff]
        %v3268 = vld [vmem:[%s5 + $0x68] sm:$0xff]
        %v3269 = vld [vmem:[%s5 + $0x70] sm:$0xff]
        %v3270 = vld [vmem:[%s5 + $0x78] sm:$0xff]
        %v3271 = vld [vmem:[%s5 + $0x80] sm:$0xff]
        %v3272 = vld [vmem:[%s5 + $0x88] sm:$0xff]
        %v3273 = vld [vmem:[%s5 + $0x90] sm:$0xff]
        %v3274 = vld [vmem:[%s5 + $0x98] sm:$0xff]
        %v3275 = vld [vmem:[%s5 + $0xa0] sm:$0xff]
        %v3276 = vld [vmem:[%s5 + $0xa8] sm:$0xff]
        %v3277 = vld [vmem:[%s5 + $0xb0] sm:$0xff]
        %v3278 = vld [vmem:[%s5 + $0xb8] sm:$0xff]
        %v3279 = vld [vmem:[%s5 + $0xc0] sm:$0xff]
        %v3280 = vld [vmem:[%s5 + $0xc8] sm:$0xff]
        %v3281 = vld [vmem:[%s5 + $0xd0] sm:$0xff]
        %v3282 = vld [vmem:[%s5 + $0xd8] sm:$0xff]
        %v3283 = vld [vmem:[%s5 + $0xe0] sm:$0xff]
        %v3284 = vld [vmem:[%s5 + $0xe8] sm:$0xff]
        %v3285 = vld [vmem:[%s5 + $0xf0] sm:$0xff]
        %v3286 = vld [vmem:[%s5 + $0xf8] sm:$0xff]
        %v3287 = vld [vmem:[%s5 + $0x100] sm:$0xff]
        %v3288 = vld [vmem:[%s5 + $0x108] sm:$0xff]
        %v3289 = vld [vmem:[%s5 + $0x110] sm:$0xff]
        %v3290 = vld [vmem:[%s5 + $0x118] sm:$0xff]
        %v3291 = vld [vmem:[%s5 + $0x120] sm:$0xff]
        %v3292 = vld [vmem:[%s5 + $0x128] sm:$0xff]
        %v3293 = vld [vmem:[%s5 + $0x130] sm:$0xff]
        %v3294 = vld [vmem:[%s5 + $0x138] sm:$0xff]
        %v3295 = vld [vmem:[%s6] sm:$0x1]
        %v3297 = vlaneseq
        %v3298 = vshrl.u32 %v3297, 7
        %v3299 = vsub.s32 0, %v3298
        %v3300 = vrot.slane %v3295, %v3299
        %vm3302 = vcmask 523264
        %v3304 = vsel %vm3302, %v3254, 0
        %3306 = vmatprep.subr.mxu0 0.0
        %3307 = vmatpush1.msra.mxu0 %v3255
        %3308 = vmatprep.subr.mxu0 0.0
        %3309 = vmatpush1.msra.mxu0 %v3256
        %3310 = vmatprep.subr.mxu0 0.0
        %3311 = vmatpush1.msra.mxu0 %v3257
        %3312 = vmatprep.subr.mxu0 0.0
        %3313 = vmatpush1.msra.mxu0 %v3258
        %3314 = vmatprep.subr.mxu0 0.0
        %3315 = vmatpush1.msra.mxu0 %v3259
        %3316 = vmatprep.subr.mxu0 0.0
        %3317 = vmatpush1.msra.mxu0 %v3260
        %3318 = vmatprep.subr.mxu0 0.0
        %3319 = vmatpush1.msra.mxu0 %v3261
        %3320 = vmatprep.subr.mxu0 0.0
        %3321 = vmatpush1.msra.mxu0 %v3262
        %3322 = vmatprep.subr.mxu0 0.0
        %3323 = vmatpush1.msra.mxu0 %v3263
        %3324 = vmatprep.subr.mxu0 0.0
        %3325 = vmatpush1.msra.mxu0 %v3264
        %3326 = vmatprep.subr.mxu0 0.0
        %3327 = vmatpush1.msra.mxu0 %v3265
        %3328 = vmatprep.subr.mxu0 0.0
        %3329 = vmatpush1.msra.mxu0 %v3266
        %3330 = vmatprep.subr.mxu0 0.0
        %3331 = vmatpush1.msra.mxu0 %v3267
        %3332 = vmatprep.subr.mxu0 0.0
        %3333 = vmatpush1.msra.mxu0 %v3268
        %3334 = vmatprep.subr.mxu0 0.0
        %3335 = vmatpush1.msra.mxu0 %v3269
        %3336 = vmatprep.subr.mxu0 0.0
        %3337 = vmatpush1.msra.mxu0 %v3270
        %3338 = vmatprep.subr.mxu0 0.0
        %3339 = vmatpush1.msra.mxu0 %v3271
        %3340 = vmatprep.subr.mxu0 0.0
        %3341 = vmatpush1.msra.mxu0 %v3272
        %3342 = vmatprep.subr.mxu0 0.0
        %3343 = vmatpush1.msra.mxu0 %v3273
        %3344 = vmatprep.subr.mxu0 0.0
        %3345 = vmatpush1.msra.mxu0 %v3274
        %3346 = vmatprep.subr.mxu0 0.0
        %3347 = vmatpush1.msra.mxu0 %v3275
        %3348 = vmatprep.subr.mxu0 0.0
        %3349 = vmatpush1.msra.mxu0 %v3276
        %3350 = vmatprep.subr.mxu0 0.0
        %3351 = vmatpush1.msra.mxu0 %v3277
        %3352 = vmatprep.subr.mxu0 0.0
        %3353 = vmatpush1.msra.mxu0 %v3278
        %3354 = vmatprep.subr.mxu0 0.0
        %3355 = vmatpush1.msra.mxu0 %v3279
        %3356 = vmatprep.subr.mxu0 0.0
        %3357 = vmatpush1.msra.mxu0 %v3280
        %3358 = vmatprep.subr.mxu0 0.0
        %3359 = vmatpush1.msra.mxu0 %v3281
        %3360 = vmatprep.subr.mxu0 0.0
        %3361 = vmatpush1.msra.mxu0 %v3282
        %3362 = vmatprep.subr.mxu0 0.0
        %3363 = vmatpush1.msra.mxu0 %v3283
        %3364 = vmatprep.subr.mxu0 0.0
        %3365 = vmatpush1.msra.mxu0 %v3284
        %3366 = vmatprep.subr.mxu0 0.0
        %3367 = vmatpush1.msra.mxu0 %v3285
        %3368 = vmatprep.subr.mxu0 0.0
        %3369 = vmatpush1.msra.mxu0 %v3286
        %3370 = vmatprep.mubr.f32.mxu0 %v3253
        %3371 = vmatmul.mubr.f32.gmra.mrb[0].mxu0 %v3252
        %v3372 = vpop.f32.mrb[0].mxu0
        %v3373 = vadd.f32 %v3300, %v3372
        %v3374 = vpop.f32.mrb[0].mxu0
        %3375 = vdwg.mxu0
        %3376 = vmatprep.subr.mxu0 0.0
        %3377 = vmatpush1.msra.mxu0 %v3287
        %3378 = vmatprep.subr.mxu0 0.0
        %3379 = vmatpush1.msra.mxu0 %v3288
        %3380 = vmatprep.subr.mxu0 0.0
        %3381 = vmatpush1.msra.mxu0 %v3289
        %3382 = vmatprep.subr.mxu0 0.0
        %3383 = vmatpush1.msra.mxu0 %v3290
        %3384 = vmatprep.subr.mxu0 0.0
        %3385 = vmatpush1.msra.mxu0 %v3291
        %3386 = vmatprep.subr.mxu0 0.0
        %3387 = vmatpush1.msra.mxu0 %v3292
        %3388 = vmatprep.subr.mxu0 0.0
        %3389 = vmatpush1.msra.mxu0 %v3293
        %3390 = vmatprep.subr.mxu0 0.0
        %3391 = vmatpush1.msra.mxu0 %v3294
        %3392 = vmatprep.subr.mxu0 0.0
        %3393 = vmatpush1.msra.mxu0 0.0
        %3394 = vmatprep.subr.mxu0 0.0
        %3395 = vmatpush1.msra.mxu0 0.0
        %3396 = vmatprep.subr.mxu0 0.0
        %3397 = vmatpush1.msra.mxu0 0.0
        %3398 = vmatprep.subr.mxu0 0.0
        %3399 = vmatpush1.msra.mxu0 0.0
        %3400 = vmatprep.subr.mxu0 0.0
        %3401 = vmatpush1.msra.mxu0 0.0
        %3402 = vmatprep.subr.mxu0 0.0
        %3403 = vmatpush1.msra.mxu0 0.0
        %3404 = vmatprep.subr.mxu0 0.0
        %3405 = vmatpush1.msra.mxu0 0.0
        %3406 = vmatprep.subr.mxu0 0.0
        %3407 = vmatpush1.msra.mxu0 0.0
        %3408 = vmatprep.subr.mxu0 0.0
        %3409 = vmatpush1.msra.mxu0 0.0
        %3410 = vmatprep.subr.mxu0 0.0
        %3411 = vmatpush1.msra.mxu0 0.0
        %3412 = vmatprep.subr.mxu0 0.0
        %3413 = vmatpush1.msra.mxu0 0.0
        %3414 = vmatprep.subr.mxu0 0.0
        %3415 = vmatpush1.msra.mxu0 0.0
        %3416 = vmatprep.subr.mxu0 0.0
        %3417 = vmatpush1.msra.mxu0 0.0
        %3418 = vmatprep.subr.mxu0 0.0
        %3419 = vmatpush1.msra.mxu0 0.0
        %3420 = vmatprep.subr.mxu0 0.0
        %3421 = vmatpush1.msra.mxu0 0.0
        %3422 = vmatprep.subr.mxu0 0.0
        %3423 = vmatpush1.msra.mxu0 0.0
        %3424 = vmatprep.subr.mxu0 0.0
        %3425 = vmatpush1.msra.mxu0 0.0
        %3426 = vmatprep.subr.mxu0 0.0
        %3427 = vmatpush1.msra.mxu0 0.0
        %3428 = vmatprep.subr.mxu0 0.0
        %3429 = vmatpush1.msra.mxu0 0.0
        %3430 = vmatprep.subr.mxu0 0.0
        %3431 = vmatpush1.msra.mxu0 0.0
        %3432 = vmatprep.subr.mxu0 0.0
        %3433 = vmatpush1.msra.mxu0 0.0
        %3434 = vmatprep.subr.mxu0 0.0
        %3435 = vmatpush1.msra.mxu0 0.0
        %3436 = vmatprep.subr.mxu0 0.0
        %3437 = vmatpush1.msra.mxu0 0.0
        %3438 = vmatprep.subr.mxu0 0.0
        %3439 = vmatpush1.msra.mxu0 0.0
        %3440 = vmatprep.mubr.f32.mxu0 0.0
        %3441 = vmatmul.mubr.f32.gmra.mrb[0].mxu0 %v3304
        %v3442 = vpop.f32.mrb[0].mxu0
        %v3443 = vadd.f32 %v3373, %v3442
        %v3444 = vpop.f32.mrb[0].mxu0
        %3445 = vdwg.mxu0
        %v3446 = vmax.f32 %v3443, 0.0
        %v3447 = vld [vmem:[%s7] sm:$0xff]
        %v3448 = vld [vmem:[%s7 + $0x8] sm:$0xff]
        %v3449 = vld [vmem:[%s7 + $0x10] sm:$0xff]
        %v3450 = vld [vmem:[%s7 + $0x18] sm:$0xff]
        %v3451 = vld [vmem:[%s8] sm:$0x1]
        %v3453 = vlaneseq
        %v3454 = vshrl.u32 %v3453, 7
        %v3455 = vsub.s32 0, %v3454
        %v3456 = vrot.slane %v3451, %v3455
        %vm3458 = vcmask 261120
        %v3460 = vsel %vm3458, %v3446, 0
        %3462 = vmatprep.subr.mxu0 0.0
        %3463 = vmatpush1.msra.mxu0 %v3447
        %3464 = vmatprep.subr.mxu0 0.0
        %3465 = vmatpush1.msra.mxu0 %v3448
        %3466 = vmatprep.subr.mxu0 0.0
        %3467 = vmatpush1.msra.mxu0 %v3449
        %3468 = vmatprep.subr.mxu0 0.0
        %3469 = vmatpush1.msra.mxu0 %v3450
        %3470 = vmatprep.subr.mxu0 0.0
        %3471 = vmatpush1.msra.mxu0 0.0
        %3472 = vmatprep.subr.mxu0 0.0
        %3473 = vmatpush1.msra.mxu0 0.0
        %3474 = vmatprep.subr.mxu0 0.0
        %3475 = vmatpush1.msra.mxu0 0.0
        %3476 = vmatprep.subr.mxu0 0.0
        %3477 = vmatpush1.msra.mxu0 0.0
        %3478 = vmatprep.subr.mxu0 0.0
        %3479 = vmatpush1.msra.mxu0 0.0
        %3480 = vmatprep.subr.mxu0 0.0
        %3481 = vmatpush1.msra.mxu0 0.0
        %3482 = vmatprep.subr.mxu0 0.0
        %3483 = vmatpush1.msra.mxu0 0.0
        %3484 = vmatprep.subr.mxu0 0.0
        %3485 = vmatpush1.msra.mxu0 0.0
        %3486 = vmatprep.subr.mxu0 0.0
        %3487 = vmatpush1.msra.mxu0 0.0
        %3488 = vmatprep.subr.mxu0 0.0
        %3489 = vmatpush1.msra.mxu0 0.0
        %3490 = vmatprep.subr.mxu0 0.0
        %3491 = vmatpush1.msra.mxu0 0.0
        %3492 = vmatprep.subr.mxu0 0.0
        %3493 = vmatpush1.msra.mxu0 0.0
        %3494 = vmatprep.subr.mxu0 0.0
        %3495 = vmatpush1.msra.mxu0 0.0
        %3496 = vmatprep.subr.mxu0 0.0
        %3497 = vmatpush1.msra.mxu0 0.0
        %3498 = vmatprep.subr.mxu0 0.0
        %3499 = vmatpush1.msra.mxu0 0.0
        %3500 = vmatprep.subr.mxu0 0.0
        %3501 = vmatpush1.msra.mxu0 0.0
        %3502 = vmatprep.subr.mxu0 0.0
        %3503 = vmatpush1.msra.mxu0 0.0
        %3504 = vmatprep.subr.mxu0 0.0
        %3505 = vmatpush1.msra.mxu0 0.0
        %3506 = vmatprep.subr.mxu0 0.0
        %3507 = vmatpush1.msra.mxu0 0.0
        %3508 = vmatprep.subr.mxu0 0.0
        %3509 = vmatpush1.msra.mxu0 0.0
        %3510 = vmatprep.subr.mxu0 0.0
        %3511 = vmatpush1.msra.mxu0 0.0
        %3512 = vmatprep.subr.mxu0 0.0
        %3513 = vmatpush1.msra.mxu0 0.0
        %3514 = vmatprep.subr.mxu0 0.0
        %3515 = vmatpush1.msra.mxu0 0.0
        %3516 = vmatprep.subr.mxu0 0.0
        %3517 = vmatpush1.msra.mxu0 0.0
        %3518 = vmatprep.subr.mxu0 0.0
        %3519 = vmatpush1.msra.mxu0 0.0
        %3520 = vmatprep.subr.mxu0 0.0
        %3521 = vmatpush1.msra.mxu0 0.0
        %3522 = vmatprep.subr.mxu0 0.0
        %3523 = vmatpush1.msra.mxu0 0.0
        %3524 = vmatprep.subr.mxu0 0.0
        %3525 = vmatpush1.msra.mxu0 0.0
        %3526 = vmatprep.mubr.f32.mxu0 0.0
        %3527 = vmatmul.mubr.f32.gmra.mrb[0].mxu0 %v3460
        %v3528 = vpop.f32.mrb[0].mxu0
        %v3529 = vadd.f32 %v3456, %v3528
        %v3530 = vpop.f32.mrb[0].mxu0
        %3531 = vdwg.mxu0
        %3532 = vst.msk [vmem:[%s573] sm:$0xff] %vm3458, %v3529
        %p3533 = scmp.lt.s32.totalorder %s20, 1
        %s3534 = scalar_select %p3533, %s20, 1
        %s3535 = smul.addr %s3534, 8
        %s3536 = scalar_lea.vmem %s9, %s3535
        // Predicated region
        $region80: #{_forward_impl.1} parent=74 // pred_check
          %p3537 = pneg %p232
        $region81: #{_forward_impl.1} parent=74 // pred_check_branch
          %3539 = sbr.rel (%p3537) target = $region83
        $region82: #{_forward_impl.1} parent=74 // pred_region
          _
        $region83: #{_forward_impl.1} parent=74 // pred_fallthru
          _
      $region75: #{_forward_impl.1} parent=5 // pred_fallthru
        _
      %p3540 = scmp.le.s32.totalorder 2, %s15
      // Predicated region
      $region84: #{_forward_impl.1} parent=5 // pred_check
        %p3541 = pneg %p3540
      $region85: #{_forward_impl.1} parent=5 // pred_check_branch
        %3543 = sbr.rel (%p3541) target = $region87
      $region86: #{_forward_impl.1} parent=5 // pred_region
        %s3544 = ssub.s32 %s15, 2
        // Predicated region
        $region88: #{_forward_impl.1} parent=86 // pred_check
          %p3545 = pneg %p238
        $region89: #{_forward_impl.1} parent=86 // pred_check_branch
          %3547 = sbr.rel (%p3545) target = $region91
        $region90: #{_forward_impl.1} parent=86 // pred_region
          %p3548 = scmp.lt.s32.totalorder %s21, 1
          %s3549 = scalar_select %p3548, %s21, 1
          %s3550 = smul.addr %s3549, 8
          %s3551 = scalar_lea.vmem %s9, %s3550
        $region91: #{_forward_impl.1} parent=86 // pred_fallthru
          _
      $region87: #{_forward_impl.1} parent=5 // pred_fallthru
        _
    $region6: #{_forward_impl.1} parent=1 // loop_footer
      %s19 = sadd.s32 1, %s15
    $region7: #{_forward_impl.1} parent=1 // loop_footer_branch
      %14 = sbr.rel target = $region3
    $region8: #{_forward_impl.1} parent=1 // loop_exit
      _

</llo_original>
